<compile_context>
chip_gen: v5e
topology: v5e:2x2
jax: 0.10.0
libtpu: 0.0.40
codegen_flags: <defaults>
</compile_context>

<pallas_src>
import jax
import jax.numpy as jnp
from jax.experimental import pallas as pl
from jax.experimental.pallas import tpu as pltpu

EPS = 1e-5  # GCT epsilon


def clam_kernel(h_ref, w1_ref, b1_ref, alpha_ref, gamma_ref, beta_ref,
                wab_ref, bab_ref, wc_ref, bc_ref,
                wcls_t_ref, bcls_ref, out_ref, x_acc_ref):
    k = pl.program_id(0)

    # --- attention_net[0]: Linear(L, H), K-blocked, f32 accumulation ---
    @pl.when(k == 0)
    def _():
        x_acc_ref[...] = jnp.zeros_like(x_acc_ref)

    x_acc_ref[...] += jnp.dot(h_ref[...], w1_ref[...],
                              preferred_element_type=jnp.float32)

    # --- epilogue on the last K step ---
    @pl.when(k == pl.num_programs(0) - 1)
    def _():
        x = x_acc_ref[...] + b1_ref[...]                         # (N, H) f32

        # attention_net[1]: GCT(H), mode='l2'.  For the 2-D input of this
        # module the l2 embedding is a single scalar sum over (instances,
        # channels) broadcast against alpha — matches the torch code.
        s = jnp.sum(x * x)
        embedding = jnp.sqrt(s + EPS) * alpha_ref[...]           # (1, H)
        norm = gamma_ref[...] * jax.lax.rsqrt(
            jnp.mean(embedding * embedding) + EPS)               # (1, H)
        gate = 1.0 + jnp.tanh(embedding * norm + beta_ref[...])  # (1, H)

        # attention_net[2]: ReLU
        x = jnp.maximum(x * gate, 0.0)
        xb = x.astype(jnp.bfloat16)                              # MXU operand

        # attention_net[3]: Attn_Net_Gated with fused (wa|wb) matmul.
        ab = jnp.dot(xb, wab_ref[...],
                     preferred_element_type=jnp.float32) + bab_ref[...]  # (N, 2D)
        d = ab.shape[1] // 2
        a = jnp.tanh(ab[:, :d])
        b = jax.nn.sigmoid(ab[:, d:])
        A = jnp.dot((a * b).astype(jnp.bfloat16), wc_ref[...],
                    preferred_element_type=jnp.float32) + bc_ref[...]    # (N, C)

        # A.T then softmax(dim=1)  ==  softmax over the instance axis of A,
        # folded into the bag reduction:
        #   logits[c] = (sum_n e[n,c]*scores[n,c]) / (sum_n e[n,c]) + bcls[c]
        # where scores[n,c] = classifiers[c](x[n]) pre-bias.
        A = A - jnp.max(A, axis=0, keepdims=True)
        e = jnp.exp(A)                                           # (N, C)
        scores = jnp.dot(xb, wcls_t_ref[...],
                         preferred_element_type=jnp.float32)     # (N, C)
        num = jnp.sum(e * scores, axis=0, keepdims=True)         # (1, C)
        den = jnp.sum(e, axis=0, keepdims=True)                  # (1, C)
        logits = num * pl.reciprocal(den, approx=True) + bcls_ref[...]
        out_ref[...] = logits.astype(out_ref.dtype)


def clam_mb_reg_gct(h, params, *, tk=256):
    N, L = h.shape
    H = params["w1"].shape[1]
    C = params["bcls"].shape[-1]
    assert L % tk == 0, (L, tk)
    kt = L // tk

    # Weight prep in the wrapper: bf16 MXU operands, fused wa|wb / ba|bb.
    hb = h.astype(jnp.bfloat16)
    w1 = params["w1"].astype(jnp.bfloat16)
    wab = jnp.concatenate([params["wa"], params["wb"]], axis=1).astype(jnp.bfloat16)
    bab = jnp.concatenate([params["ba"], params["bb"]], axis=1)          # f32
    wc = params["wc"].astype(jnp.bfloat16)
    wcls_t = params["wcls_t"].astype(jnp.bfloat16)
    D2 = wab.shape[1]

    args = (hb, w1,
            params["b1"], params["alpha"], params["gamma"], params["beta"],
            wab, bab, wc, params["bc"], wcls_t, params["bcls"])

    def resident(shape):
        # Constant block index => DMA'd once, stays VMEM-resident across K steps.
        return pl.BlockSpec(shape, lambda k: (0, 0))

    in_specs = [
        pl.BlockSpec((N, tk), lambda k: (0, k)),     # h   : stream K tiles
        pl.BlockSpec((tk, H), lambda k: (k, 0)),     # w1  : stream K tiles
        resident((1, H)),                            # b1
        resident((1, H)),                            # alpha
        resident((1, H)),                            # gamma
        resident((1, H)),                            # beta
        resident((H, D2)),                           # wa|wb
        resident((1, D2)),                           # ba|bb
        resident((params["wc"].shape[0], C)),        # wc
        resident((1, C)),                            # bc
        resident((H, C)),                            # wcls_t
        resident((1, C)),                            # bcls
    ]

    return pl.pallas_call(
        clam_kernel,
        out_shape=jax.ShapeDtypeStruct((1, C), jnp.float32),
        grid_spec=pltpu.PrefetchScalarGridSpec(
            num_scalar_prefetch=0,
            grid=(kt,),
            in_specs=in_specs,
            out_specs=pl.BlockSpec((1, C), lambda k: (0, 0)),
            scratch_shapes=[pltpu.VMEM((N, H), jnp.float32)],
        ),
        compiler_params=pltpu.CompilerParams(
            dimension_semantics=("arbitrary",)),      # K is a reduction axis
    )(*args)


def init_params(key, L=1024, H=512, D=256, n_classes=21):
    ks = jax.random.split(key, 12)

    def lin(k, fan_in, fan_out):
        return (jax.random.normal(k, (fan_in, fan_out), jnp.float32)
                * (1.0 / jnp.sqrt(jnp.float32(fan_in))))

    return dict(
        # attention_net[0]: Linear(L, H)
        w1=lin(ks[0], L, H),
        b1=jax.random.normal(ks[1], (1, H), jnp.float32) * 0.01,
        # attention_net[1]: GCT(H) params (alpha init = 1 like torch; gamma/beta
        # small randoms so the gate path is exercised)
        alpha=jnp.ones((1, H), jnp.float32),
        gamma=jax.random.normal(ks[2], (1, H), jnp.float32) * 0.1,
        beta=jax.random.normal(ks[3], (1, H), jnp.float32) * 0.1,
        # Attn_Net_Gated
        wa=lin(ks[4], H, D),
        ba=jax.random.normal(ks[5], (1, D), jnp.float32) * 0.01,
        wb=lin(ks[6], H, D),
        bb=jax.random.normal(ks[7], (1, D), jnp.float32) * 0.01,
        wc=lin(ks[8], D, n_classes),
        bc=jax.random.normal(ks[9], (1, n_classes), jnp.float32) * 0.01,
        # n_classes independent Linear(H, 1) bag classifiers, stacked transposed (H, C)
        wcls_t=lin(ks[10], H, n_classes),
        bcls=jax.random.normal(ks[11], (1, n_classes), jnp.float32) * 0.01,
    )


def reference(h, p):
    # Pure-JAX f32 reference mirroring the PyTorch forward step by step.
    x = h @ p["w1"] + p["b1"]
    s = jnp.sum(x * x)
    emb = jnp.sqrt(s + EPS) * p["alpha"]
    norm = p["gamma"] / jnp.sqrt(jnp.mean(emb * emb) + EPS)
    gate = 1.0 + jnp.tanh(emb * norm + p["beta"])
    x = jnp.maximum(x * gate, 0.0)
    a = jnp.tanh(x @ p["wa"] + p["ba"])
    b = jax.nn.sigmoid(x @ p["wb"] + p["bb"])
    A = (a * b) @ p["wc"] + p["bc"]            # (N, C)
    At = A.T                                   # transpose(A, 1, 0)
    P = jax.nn.softmax(At, axis=1)             # softmax over instances
    M = P @ x                                  # (C, H)
    logits = jnp.sum(M * p["wcls_t"].T, axis=1)[None, :] + p["bcls"]
    return logits


if __name__ == "__main__":
    key = jax.random.PRNGKey(0)
    kh, kp = jax.random.split(key)

    # small-bag example: 64 instances, size_dict['small'] = [1024, 512, 256], 21 classes
    N, L, H, D, C = 64, 1024, 512, 256, 21
    h = jax.random.normal(kh, (N, L), jnp.float32)
    params = init_params(kp, L=L, H=H, D=D, n_classes=C)

    out = jax.block_until_ready(clam_mb_reg_gct(h, params))
    ref = reference(h, params)

    assert out.shape == (1, C), out.shape
    # bf16 MXU operands vs f32 reference -> relaxed but still tight tolerance.
    assert jnp.allclose(out, ref, rtol=1e-2, atol=2e-2), (out, ref)
    print("KERNEL_OK")
</pallas_src>

<mosaic_0001>
module attributes {stable_mosaic.version = 11 : i64} {
  func.func @clam_kernel(%arg0: i32, %arg1: memref<64x256xbf16, #tpu.memory_space<vmem>>, %arg2: memref<256x512xbf16, #tpu.memory_space<vmem>>, %arg3: memref<1x512xf32, #tpu.memory_space<vmem>>, %arg4: memref<1x512xf32, #tpu.memory_space<vmem>>, %arg5: memref<1x512xf32, #tpu.memory_space<vmem>>, %arg6: memref<1x512xf32, #tpu.memory_space<vmem>>, %arg7: memref<512x512xbf16, #tpu.memory_space<vmem>>, %arg8: memref<1x512xf32, #tpu.memory_space<vmem>>, %arg9: memref<256x21xbf16, #tpu.memory_space<vmem>>, %arg10: memref<1x21xf32, #tpu.memory_space<vmem>>, %arg11: memref<512x21xbf16, #tpu.memory_space<vmem>>, %arg12: memref<1x21xf32, #tpu.memory_space<vmem>>, %arg13: memref<1x21xf32, #tpu.memory_space<vmem>>, %arg14: memref<64x512xf32, #tpu.memory_space<vmem>>) attributes {dimension_semantics = [#tpu.dimension_semantics<arbitrary>], iteration_bounds = array<i64: 4>, scalar_prefetch = 0 : i64, scratch_operands = 1 : i64, tpu.core_type = #tpu.core_type<tc>, window_params = [{transform_indices = @transform_0, window_bounds = array<i64: 64, 256>}, {transform_indices = @transform_1, window_bounds = array<i64: 256, 512>}, {pipeline_mode = #tpu.pipeline_mode<synchronous>, transform_indices = @transform_2, window_bounds = array<i64: 1, 512>}, {pipeline_mode = #tpu.pipeline_mode<synchronous>, transform_indices = @transform_3, window_bounds = array<i64: 1, 512>}, {pipeline_mode = #tpu.pipeline_mode<synchronous>, transform_indices = @transform_4, window_bounds = array<i64: 1, 512>}, {pipeline_mode = #tpu.pipeline_mode<synchronous>, transform_indices = @transform_5, window_bounds = array<i64: 1, 512>}, {pipeline_mode = #tpu.pipeline_mode<synchronous>, transform_indices = @transform_6, window_bounds = array<i64: 512, 512>}, {pipeline_mode = #tpu.pipeline_mode<synchronous>, transform_indices = @transform_7, window_bounds = array<i64: 1, 512>}, {pipeline_mode = #tpu.pipeline_mode<synchronous>, transform_indices = @transform_8, window_bounds = array<i64: 256, 21>}, {pipeline_mode = #tpu.pipeline_mode<synchronous>, transform_indices = @transform_9, window_bounds = array<i64: 1, 21>}, {pipeline_mode = #tpu.pipeline_mode<synchronous>, transform_indices = @transform_10, window_bounds = array<i64: 512, 21>}, {pipeline_mode = #tpu.pipeline_mode<synchronous>, transform_indices = @transform_11, window_bounds = array<i64: 1, 21>}, {pipeline_mode = #tpu.pipeline_mode<synchronous>, transform_indices = @transform_12, window_bounds = array<i64: 1, 21>}]} {
    %c0_i32 = arith.constant 0 : i32
    %0 = arith.cmpi eq, %arg0, %c0_i32 : i32
    %1 = arith.extui %0 : i1 to i32
    %c0_i32_0 = arith.constant 0 : i32
    %2 = arith.cmpi ne, %1, %c0_i32_0 : i32
    scf.if %2 {
      %cst_9 = arith.constant 0.000000e+00 : f32
      %12 = vector.broadcast %cst_9 : f32 to vector<64x512xf32>
      %c0_10 = arith.constant 0 : index
      %c0_11 = arith.constant 0 : index
      %13 = vector.load %arg14[%c0_10, %c0_11] : memref<64x512xf32, #tpu.memory_space<vmem>>, vector<64x512xf32>
      tpu.vector_store %arg14[%c0_10, %c0_11], %12 {strides = array<i32>} : memref<64x512xf32, #tpu.memory_space<vmem>>, vector<64x512xf32>,
    } else {
    }
    %c0 = arith.constant 0 : index
    %c0_1 = arith.constant 0 : index
    %3 = vector.load %arg14[%c0, %c0_1] : memref<64x512xf32, #tpu.memory_space<vmem>>, vector<64x512xf32>
    %c0_2 = arith.constant 0 : index
    %c0_3 = arith.constant 0 : index
    %4 = vector.load %arg1[%c0_2, %c0_3] : memref<64x256xbf16, #tpu.memory_space<vmem>>, vector<64x256xbf16>
    %c0_4 = arith.constant 0 : index
    %c0_5 = arith.constant 0 : index
    %5 = vector.load %arg2[%c0_4, %c0_5] : memref<256x512xbf16, #tpu.memory_space<vmem>>, vector<256x512xbf16>
    %cst = arith.constant dense<0.000000e+00> : vector<64x512xf32>
    %6 = tpu.matmul %4, %5, %cst {dimension_numbers = #tpu.dot_dimension_numbers<[1], [0], [0], [1], [0, 0, 1, 1], [], []>} : vector<64x256xbf16>, vector<256x512xbf16>, vector<64x512xf32> -> vector<64x512xf32>
    %7 = arith.addf %3, %6 : vector<64x512xf32>
    %c0_6 = arith.constant 0 : index
    %c0_7 = arith.constant 0 : index
    %8 = vector.load %arg14[%c0_6, %c0_7] : memref<64x512xf32, #tpu.memory_space<vmem>>, vector<64x512xf32>
    tpu.vector_store %arg14[%c0_6, %c0_7], %7 {strides = array<i32>} : memref<64x512xf32, #tpu.memory_space<vmem>>, vector<64x512xf32>,
    %c3_i32 = arith.constant 3 : i32
    %9 = arith.cmpi eq, %arg0, %c3_i32 : i32
    %10 = arith.extui %9 : i1 to i32
    %c0_i32_8 = arith.constant 0 : i32
    %11 = arith.cmpi ne, %10, %c0_i32_8 : i32
    scf.if %11 {
      %c0_9 = arith.constant 0 : index
      %c0_10 = arith.constant 0 : index
      %12 = vector.load %arg14[%c0_9, %c0_10] : memref<64x512xf32, #tpu.memory_space<vmem>>, vector<64x512xf32>
      %c0_11 = arith.constant 0 : index
      %c0_12 = arith.constant 0 : index
      %13 = vector.load %arg3[%c0_11, %c0_12] : memref<1x512xf32, #tpu.memory_space<vmem>>, vector<1x512xf32>
      %14 = vector.broadcast %13 : vector<1x512xf32> to vector<64x512xf32>
      %15 = arith.addf %12, %14 : vector<64x512xf32>
      %16 = arith.mulf %15, %15 : vector<64x512xf32>
      %17 = vector.shape_cast %16 : vector<64x512xf32> to vector<1x64x512xf32>
      %cst_13 = arith.constant dense<0.000000e+00> : vector<1xf32>
      %18 = vector.multi_reduction <add>, %17, %cst_13 [1, 2] : vector<1x64x512xf32> to vector<1xf32>
      %19 = vector.shape_cast %18 : vector<1xf32> to vector<1x1x1xf32>
      %20 = vector.extract %19[0, 0, 0] : f32 from vector<1x1x1xf32>
      %cst_14 = arith.constant 9.99999974E-6 : f32
      %21 = arith.addf %20, %cst_14 : f32
      %22 = math.sqrt %21 : f32
      %c0_15 = arith.constant 0 : index
      %c0_16 = arith.constant 0 : index
      %23 = vector.load %arg4[%c0_15, %c0_16] : memref<1x512xf32, #tpu.memory_space<vmem>>, vector<1x512xf32>
      %24 = vector.broadcast %22 : f32 to vector<1x512xf32>
      %25 = arith.mulf %24, %23 : vector<1x512xf32>
      %c0_17 = arith.constant 0 : index
      %c0_18 = arith.constant 0 : index
      %26 = vector.load %arg5[%c0_17, %c0_18] : memref<1x512xf32, #tpu.memory_space<vmem>>, vector<1x512xf32>
      %27 = arith.mulf %25, %25 : vector<1x512xf32>
      %28 = vector.shape_cast %27 : vector<1x512xf32> to vector<1x1x512xf32>
      %cst_19 = arith.constant dense<0.000000e+00> : vector<1xf32>
      %29 = vector.multi_reduction <add>, %28, %cst_19 [1, 2] : vector<1x1x512xf32> to vector<1xf32>
      %30 = vector.shape_cast %29 : vector<1xf32> to vector<1x1x1xf32>
      %31 = vector.extract %30[0, 0, 0] : f32 from vector<1x1x1xf32>
      %cst_20 = arith.constant 5.120000e+02 : f32
      %32 = arith.divf %31, %cst_20 : f32
      %cst_21 = arith.constant 9.99999974E-6 : f32
      %33 = arith.addf %32, %cst_21 : f32
      %34 = math.rsqrt %33 : f32
      %35 = vector.broadcast %34 : f32 to vector<1x512xf32>
      %36 = arith.mulf %26, %35 : vector<1x512xf32>
      %37 = arith.mulf %25, %36 : vector<1x512xf32>
      %c0_22 = arith.constant 0 : index
      %c0_23 = arith.constant 0 : index
      %38 = vector.load %arg6[%c0_22, %c0_23] : memref<1x512xf32, #tpu.memory_space<vmem>>, vector<1x512xf32>
      %39 = arith.addf %37, %38 : vector<1x512xf32>
      %40 = math.tanh %39 : vector<1x512xf32>
      %cst_24 = arith.constant 1.000000e+00 : f32
      %41 = vector.broadcast %cst_24 : f32 to vector<1x512xf32>
      %42 = arith.addf %41, %40 : vector<1x512xf32>
      %43 = vector.broadcast %42 : vector<1x512xf32> to vector<64x512xf32>
      %44 = arith.mulf %15, %43 : vector<64x512xf32>
      %cst_25 = arith.constant 0.000000e+00 : f32
      %45 = vector.broadcast %cst_25 : f32 to vector<64x512xf32>
      %46 = arith.maximumf %44, %45 : vector<64x512xf32>
      %47 = arith.truncf %46 : vector<64x512xf32> to vector<64x512xbf16>
      %c0_26 = arith.constant 0 : index
      %c0_27 = arith.constant 0 : index
      %48 = vector.load %arg7[%c0_26, %c0_27] : memref<512x512xbf16, #tpu.memory_space<vmem>>, vector<512x512xbf16>
      %cst_28 = arith.constant dense<0.000000e+00> : vector<64x512xf32>
      %49 = tpu.matmul %47, %48, %cst_28 {dimension_numbers = #tpu.dot_dimension_numbers<[1], [0], [0], [1], [0, 0, 1, 1], [], []>} : vector<64x512xbf16>, vector<512x512xbf16>, vector<64x512xf32> -> vector<64x512xf32>
      %c0_29 = arith.constant 0 : index
      %c0_30 = arith.constant 0 : index
      %50 = vector.load %arg8[%c0_29, %c0_30] : memref<1x512xf32, #tpu.memory_space<vmem>>, vector<1x512xf32>
      %51 = vector.broadcast %50 : vector<1x512xf32> to vector<64x512xf32>
      %52 = arith.addf %49, %51 : vector<64x512xf32>
      %53 = vector.extract_strided_slice %52 {offsets = [0, 0], sizes = [64, 256], strides = [1, 1]} : vector<64x512xf32> to vector<64x256xf32>
      %54 = math.tanh %53 : vector<64x256xf32>
      %55 = vector.extract_strided_slice %52 {offsets = [0, 256], sizes = [64, 256], strides = [1, 1]} : vector<64x512xf32> to vector<64x256xf32>
      %56 = arith.negf %55 : vector<64x256xf32>
      %57 = math.exp %56 : vector<64x256xf32>
      %cst_31 = arith.constant 1.000000e+00 : f32
      %58 = vector.broadcast %cst_31 : f32 to vector<64x256xf32>
      %59 = arith.addf %58, %57 : vector<64x256xf32>
      %60 = arith.divf %58, %59 : vector<64x256xf32>
      %61 = arith.mulf %54, %60 : vector<64x256xf32>
      %62 = arith.truncf %61 : vector<64x256xf32> to vector<64x256xbf16>
      %c0_32 = arith.constant 0 : index
      %c0_33 = arith.constant 0 : index
      %63 = vector.load %arg9[%c0_32, %c0_33] : memref<256x21xbf16, #tpu.memory_space<vmem>>, vector<256x21xbf16>
      %cst_34 = arith.constant dense<0.000000e+00> : vector<64x21xf32>
      %64 = tpu.matmul %62, %63, %cst_34 {dimension_numbers = #tpu.dot_dimension_numbers<[1], [0], [0], [1], [0, 0, 1, 1], [], []>} : vector<64x256xbf16>, vector<256x21xbf16>, vector<64x21xf32> -> vector<64x21xf32>
      %c0_35 = arith.constant 0 : index
      %c0_36 = arith.constant 0 : index
      %65 = vector.load %arg10[%c0_35, %c0_36] : memref<1x21xf32, #tpu.memory_space<vmem>>, vector<1x21xf32>
      %66 = vector.broadcast %65 : vector<1x21xf32> to vector<64x21xf32>
      %67 = arith.addf %64, %66 : vector<64x21xf32>
      %cst_37 = arith.constant dense<0xFF800000> : vector<21xf32>
      %68 = vector.multi_reduction <maximumf>, %67, %cst_37 [0] : vector<64x21xf32> to vector<21xf32>
      %69 = vector.shape_cast %68 : vector<21xf32> to vector<1x21xf32>
      %70 = vector.broadcast %69 : vector<1x21xf32> to vector<64x21xf32>
      %71 = arith.subf %67, %70 : vector<64x21xf32>
      %72 = math.exp %71 : vector<64x21xf32>
      %c0_38 = arith.constant 0 : index
      %c0_39 = arith.constant 0 : index
      %73 = vector.load %arg11[%c0_38, %c0_39] : memref<512x21xbf16, #tpu.memory_space<vmem>>, vector<512x21xbf16>
      %cst_40 = arith.constant dense<0.000000e+00> : vector<64x21xf32>
      %74 = tpu.matmul %47, %73, %cst_40 {dimension_numbers = #tpu.dot_dimension_numbers<[1], [0], [0], [1], [0, 0, 1, 1], [], []>} : vector<64x512xbf16>, vector<512x21xbf16>, vector<64x21xf32> -> vector<64x21xf32>
      %75 = arith.mulf %72, %74 : vector<64x21xf32>
      %cst_41 = arith.constant dense<0.000000e+00> : vector<21xf32>
      %76 = vector.multi_reduction <add>, %75, %cst_41 [0] : vector<64x21xf32> to vector<21xf32>
      %77 = vector.shape_cast %76 : vector<21xf32> to vector<1x21xf32>
      %cst_42 = arith.constant dense<0.000000e+00> : vector<21xf32>
      %78 = vector.multi_reduction <add>, %72, %cst_42 [0] : vector<64x21xf32> to vector<21xf32>
      %79 = vector.shape_cast %78 : vector<21xf32> to vector<1x21xf32>
      %80 = tpu.reciprocal %79 {approx = true} : vector<1x21xf32> -> vector<1x21xf32>
      %81 = arith.mulf %77, %80 : vector<1x21xf32>
      %c0_43 = arith.constant 0 : index
      %c0_44 = arith.constant 0 : index
      %82 = vector.load %arg12[%c0_43, %c0_44] : memref<1x21xf32, #tpu.memory_space<vmem>>, vector<1x21xf32>
      %83 = arith.addf %81, %82 : vector<1x21xf32>
      %c0_45 = arith.constant 0 : index
      %c0_46 = arith.constant 0 : index
      %84 = vector.load %arg13[%c0_45, %c0_46] : memref<1x21xf32, #tpu.memory_space<vmem>>, vector<1x21xf32>
      tpu.vector_store %arg13[%c0_45, %c0_46], %83 {strides = array<i32>} : memref<1x21xf32, #tpu.memory_space<vmem>>, vector<1x21xf32>,
    } else {
    }
    return
  }
  func.func @transform_0(%arg0: i32) -> (i32, i32) {
    %c0_i32 = arith.constant 0 : i32
    %c0_i32_0 = arith.constant 0 : i32
    return %c0_i32, %arg0 : i32, i32
  }
  func.func @transform_1(%arg0: i32) -> (i32, i32) {
    %c0_i32 = arith.constant 0 : i32
    %c0_i32_0 = arith.constant 0 : i32
    return %arg0, %c0_i32 : i32, i32
  }
  func.func @transform_2(%arg0: i32) -> (i32, i32) {
    %c0_i32 = arith.constant 0 : i32
    %c0_i32_0 = arith.constant 0 : i32
    %c0_i32_1 = arith.constant 0 : i32
    return %c0_i32, %c0_i32_0 : i32, i32
  }
  func.func @transform_3(%arg0: i32) -> (i32, i32) {
    %c0_i32 = arith.constant 0 : i32
    %c0_i32_0 = arith.constant 0 : i32
    %c0_i32_1 = arith.constant 0 : i32
    return %c0_i32, %c0_i32_0 : i32, i32
  }
  func.func @transform_4(%arg0: i32) -> (i32, i32) {
    %c0_i32 = arith.constant 0 : i32
    %c0_i32_0 = arith.constant 0 : i32
    %c0_i32_1 = arith.constant 0 : i32
    return %c0_i32, %c0_i32_0 : i32, i32
  }
  func.func @transform_5(%arg0: i32) -> (i32, i32) {
    %c0_i32 = arith.constant 0 : i32
    %c0_i32_0 = arith.constant 0 : i32
    %c0_i32_1 = arith.constant 0 : i32
    return %c0_i32, %c0_i32_0 : i32, i32
  }
  func.func @transform_6(%arg0: i32) -> (i32, i32) {
    %c0_i32 = arith.constant 0 : i32
    %c0_i32_0 = arith.constant 0 : i32
    %c0_i32_1 = arith.constant 0 : i32
    return %c0_i32, %c0_i32_0 : i32, i32
  }
  func.func @transform_7(%arg0: i32) -> (i32, i32) {
    %c0_i32 = arith.constant 0 : i32
    %c0_i32_0 = arith.constant 0 : i32
    %c0_i32_1 = arith.constant 0 : i32
    return %c0_i32, %c0_i32_0 : i32, i32
  }
  func.func @transform_8(%arg0: i32) -> (i32, i32) {
    %c0_i32 = arith.constant 0 : i32
    %c0_i32_0 = arith.constant 0 : i32
    %c0_i32_1 = arith.constant 0 : i32
    return %c0_i32, %c0_i32_0 : i32, i32
  }
  func.func @transform_9(%arg0: i32) -> (i32, i32) {
    %c0_i32 = arith.constant 0 : i32
    %c0_i32_0 = arith.constant 0 : i32
    %c0_i32_1 = arith.constant 0 : i32
    return %c0_i32, %c0_i32_0 : i32, i32
  }
  func.func @transform_10(%arg0: i32) -> (i32, i32) {
    %c0_i32 = arith.constant 0 : i32
    %c0_i32_0 = arith.constant 0 : i32
    %c0_i32_1 = arith.constant 0 : i32
    return %c0_i32, %c0_i32_0 : i32, i32
  }
  func.func @transform_11(%arg0: i32) -> (i32, i32) {
    %c0_i32 = arith.constant 0 : i32
    %c0_i32_0 = arith.constant 0 : i32
    %c0_i32_1 = arith.constant 0 : i32
    return %c0_i32, %c0_i32_0 : i32, i32
  }
  func.func @transform_12(%arg0: i32) -> (i32, i32) {
    %c0_i32 = arith.constant 0 : i32
    %c0_i32_0 = arith.constant 0 : i32
    %c0_i32_1 = arith.constant 0 : i32
    return %c0_i32, %c0_i32_0 : i32, i32
  }
}

</mosaic_0001>

<llo_original>
// kernel: tpu_custom_call.1
$region0: #{tpu_custom_call.1}
  #allocation0 [shape = 'u32[]', space=smem, size = 0x4, offset = 0x4, fixed_abs, tag = 'smem constant byte address 0x4 - core index']
  #allocation1 [shape = 'u32[72,128]{1,0:T(1,128)}', space=vmem, size = 0x9000, scoped, tag = 'internal scratch']
  #allocation2 [shape = 'f32[64,512]{1,0:T(8,128)}', space=vmem, size = 0x20000, scoped, tag = 'scratch operand']
  %s0 = inlined_call_operand.vmem [shape: bf16[64,1024], index: 0, kind: input, shape index: {}]
  %s1 = inlined_call_operand.hbm [shape: bf16[1024,512], index: 1, kind: input, shape index: {}]
  %s2 = inlined_call_operand.vmem [shape: f32[1,512], index: 2, kind: input, shape index: {}]
  %s3 = inlined_call_operand.vmem [shape: f32[1,512], index: 3, kind: input, shape index: {}]
  %s4 = inlined_call_operand.vmem [shape: f32[1,512], index: 4, kind: input, shape index: {}]
  %s5 = inlined_call_operand.vmem [shape: f32[1,512], index: 5, kind: input, shape index: {}]
  %s6 = inlined_call_operand.hbm [shape: bf16[512,512], index: 6, kind: input, shape index: {}]
  %s7 = inlined_call_operand.vmem [shape: f32[1,512], index: 7, kind: input, shape index: {}]
  %s8 = inlined_call_operand.vmem [shape: bf16[256,21], index: 8, kind: input, shape index: {}]
  %s9 = inlined_call_operand.vmem [shape: f32[1,21], index: 9, kind: input, shape index: {}]
  %s10 = inlined_call_operand.vmem [shape: bf16[512,21], index: 10, kind: input, shape index: {}]
  %s11 = inlined_call_operand.vmem [shape: f32[1,21], index: 11, kind: input, shape index: {}]
  %s12 = inlined_call_operand.hbm [shape: f32[1,21], index: 12, kind: output, shape index: {}]
  %s13 = sld [smem:[#allocation0]]
  $region135: #{tpu_custom_call.1} parent=0
    _
  %s15 = ssub.s32 1, %s13
  %s16 = scalar_select 0, %s15, %s13
  $region1: #{tpu_custom_call.1} parent=0
    #allocation3 [shape = 'u8[65536]{0}', space=vmem, size = 0x10000, scoped, tag = 'input window, operand 0']
    #allocation4 [shape = 'u8[524288]{0}', space=vmem, size = 0x80000, scoped, tag = 'input window, operand 1']
    #allocation5 [shape = 's32[2]{0}', space=sflag, size = 0x8, scoped, tag = 'scoped memory for tpu_custom_call.1']
    #allocation6 [shape = 's32[2]{0}', space=sflag, size = 0x8, scoped, tag = 'scoped memory for tpu_custom_call.1']
    #allocation7 [shape = 'u8[524288]{0}', space=vmem, size = 0x80000, scoped, tag = 'input window, operand 6, single buffered']
    #allocation8 [shape = 's32[1]{0}', space=sflag, size = 0x4, scoped, tag = 'scoped memory for tpu_custom_call.1']
    #allocation9 [shape = 'u8[512]{0}', space=vmem, size = 0x400, scoped, tag = 'output window, operand 0, single buffered']
    %17 = vsyncpa [#allocation5], 0
    %s18 = scalar_lea.sflag [#allocation5], 1
    %19 = vsyncpa %s18, 0
    %20 = vsyncpa [#allocation8], 0
    %21 = vsyncpa [#allocation6], 0
    loop: start=0, step=1, limit=6
    $region2: #{tpu_custom_call.1} parent=1 // loop_pre_header
      _
    $region3: #{tpu_custom_call.1} parent=1 // loop_header
      %s23 = sphi 0, %s27
      %p24 = scmp.ge.s32.totalorder %s23, 6
      %s33 = sphi 0, %s35
      %s36 = sphi 0, %s33
      %s37 = sphi 0, %s36
      %s53 = sphi 0, %s37
      %s59 = sphi 0, %s61
      %s62 = sphi 0, %s59
      %s63 = sphi 0, %s62
      %s79 = sphi 0, %s63
      %s83 = sphi 0, %s83
      %s85 = sphi 0, %s83
      %s86 = sphi 0, %s85
      %s100 = sphi 0, %s86
      %s104 = sphi 0, %s104
      %s106 = sphi 0, %s104
      %s107 = sphi 0, %s106
      %s121 = sphi 0, %s107
      %s125 = sphi 0, %s125
      %s127 = sphi 0, %s125
      %s128 = sphi 0, %s127
      %s142 = sphi 0, %s128
      %s146 = sphi 0, %s146
      %s148 = sphi 0, %s146
      %s149 = sphi 0, %s148
      %s163 = sphi 0, %s149
      %s167 = sphi 0, %s167
      %s169 = sphi 0, %s167
      %s170 = sphi 0, %s169
      %s184 = sphi 0, %s170
      %s188 = sphi 0, %s188
      %s190 = sphi 0, %s188
      %s191 = sphi 0, %s190
      %s205 = sphi 0, %s191
      %s209 = sphi 0, %s209
      %s211 = sphi 0, %s209
      %s212 = sphi 0, %s211
      %s226 = sphi 0, %s212
      %s230 = sphi 0, %s230
      %s232 = sphi 0, %s230
      %s233 = sphi 0, %s232
      %s247 = sphi 0, %s233
      %s251 = sphi 0, %s251
      %s253 = sphi 0, %s251
      %s254 = sphi 0, %s253
      %s268 = sphi 0, %s254
      %s272 = sphi 0, %s272
      %s274 = sphi 0, %s272
      %s275 = sphi 0, %s274
      %s289 = sphi 0, %s275
      %s293 = sphi 0, %s293
      %s295 = sphi 0, %s293
      %s296 = sphi 0, %s295
      %s310 = sphi 0, %s296
    $region4: #{tpu_custom_call.1} parent=1 // loop_header_branch
      %26 = sbr.rel (%p24) target = $region8
    $region5: #{tpu_custom_call.1} parent=1 // loop_body
      %s28 = ssub.s32 %s23, 1
      %s29 = ssub.s32 %s23, 2
      %s30 = sadd.s32 %s23, 1
      %s31 = ssub.s32 %s23, %s30
      %p32 = scmp.eq.s32.totalorder %s31, 0
      %s34 = sadd.s32 %s33, 1
      %s35 = scalar_select %p32, %s33, %s34
      %p38 = pneg %p32
      %p39 = scmp.eq.s32.totalorder %s23, 3
      %p40 = por %p38, %p39
      %p41 = scmp.ne.s32.totalorder %s33, %s36
      %p42 = scmp.eq.s32.totalorder %s23, 0
      %p43 = por %p41, %p42
      %p44 = scmp.ne.s32.totalorder %s33, %s36
      %p45 = scmp.eq.s32.totalorder %s28, 3
      %p46 = por %p44, %p45
      %p47 = scmp.ne.s32.totalorder %s36, %s37
      %p48 = scmp.eq.s32.totalorder %s28, 0
      %p49 = por %p47, %p48
      %p50 = scmp.ne.s32.totalorder %s36, %s37
      %p51 = scmp.eq.s32.totalorder %s29, 3
      %p52 = por %p50, %p51
      %p54 = scmp.ne.s32.totalorder %s37, %s53
      %p55 = scmp.eq.s32.totalorder %s29, 0
      %p56 = por %p54, %p55
      %s57 = ssub.s32 %s23, %s30
      %p58 = scmp.eq.s32.totalorder %s57, 0
      %s60 = sadd.s32 %s59, 1
      %s61 = scalar_select %p58, %s59, %s60
      %p64 = pneg %p58
      %p65 = scmp.eq.s32.totalorder %s23, 3
      %p66 = por %p64, %p65
      %p67 = scmp.ne.s32.totalorder %s59, %s62
      %p68 = scmp.eq.s32.totalorder %s23, 0
      %p69 = por %p67, %p68
      %p70 = scmp.ne.s32.totalorder %s59, %s62
      %p71 = scmp.eq.s32.totalorder %s28, 3
      %p72 = por %p70, %p71
      %p73 = scmp.ne.s32.totalorder %s62, %s63
      %p74 = scmp.eq.s32.totalorder %s28, 0
      %p75 = por %p73, %p74
      %p76 = scmp.ne.s32.totalorder %s62, %s63
      %p77 = scmp.eq.s32.totalorder %s29, 3
      %p78 = por %p76, %p77
      %p80 = scmp.ne.s32.totalorder %s63, %s79
      %p81 = scmp.eq.s32.totalorder %s29, 0
      %p82 = por %p80, %p81
      %s84 = sadd.s32 %s83, 1
      %p87 = scmp.eq.s32.totalorder %s23, 3
      %p88 = scmp.ne.s32.totalorder %s83, %s85
      %p89 = scmp.eq.s32.totalorder %s23, 0
      %p90 = por %p88, %p89
      %p91 = scmp.ne.s32.totalorder %s83, %s85
      %p92 = scmp.eq.s32.totalorder %s28, 3
      %p93 = por %p91, %p92
      %p94 = scmp.ne.s32.totalorder %s85, %s86
      %p95 = scmp.eq.s32.totalorder %s28, 0
      %p96 = por %p94, %p95
      %p97 = scmp.ne.s32.totalorder %s85, %s86
      %p98 = scmp.eq.s32.totalorder %s29, 3
      %p99 = por %p97, %p98
      %p101 = scmp.ne.s32.totalorder %s86, %s100
      %p102 = scmp.eq.s32.totalorder %s29, 0
      %p103 = por %p101, %p102
      %s105 = sadd.s32 %s104, 1
      %p108 = scmp.eq.s32.totalorder %s23, 3
      %p109 = scmp.ne.s32.totalorder %s104, %s106
      %p110 = scmp.eq.s32.totalorder %s23, 0
      %p111 = por %p109, %p110
      %p112 = scmp.ne.s32.totalorder %s104, %s106
      %p113 = scmp.eq.s32.totalorder %s28, 3
      %p114 = por %p112, %p113
      %p115 = scmp.ne.s32.totalorder %s106, %s107
      %p116 = scmp.eq.s32.totalorder %s28, 0
      %p117 = por %p115, %p116
      %p118 = scmp.ne.s32.totalorder %s106, %s107
      %p119 = scmp.eq.s32.totalorder %s29, 3
      %p120 = por %p118, %p119
      %p122 = scmp.ne.s32.totalorder %s107, %s121
      %p123 = scmp.eq.s32.totalorder %s29, 0
      %p124 = por %p122, %p123
      %s126 = sadd.s32 %s125, 1
      %p129 = scmp.eq.s32.totalorder %s23, 3
      %p130 = scmp.ne.s32.totalorder %s125, %s127
      %p131 = scmp.eq.s32.totalorder %s23, 0
      %p132 = por %p130, %p131
      %p133 = scmp.ne.s32.totalorder %s125, %s127
      %p134 = scmp.eq.s32.totalorder %s28, 3
      %p135 = por %p133, %p134
      %p136 = scmp.ne.s32.totalorder %s127, %s128
      %p137 = scmp.eq.s32.totalorder %s28, 0
      %p138 = por %p136, %p137
      %p139 = scmp.ne.s32.totalorder %s127, %s128
      %p140 = scmp.eq.s32.totalorder %s29, 3
      %p141 = por %p139, %p140
      %p143 = scmp.ne.s32.totalorder %s128, %s142
      %p144 = scmp.eq.s32.totalorder %s29, 0
      %p145 = por %p143, %p144
      %s147 = sadd.s32 %s146, 1
      %p150 = scmp.eq.s32.totalorder %s23, 3
      %p151 = scmp.ne.s32.totalorder %s146, %s148
      %p152 = scmp.eq.s32.totalorder %s23, 0
      %p153 = por %p151, %p152
      %p154 = scmp.ne.s32.totalorder %s146, %s148
      %p155 = scmp.eq.s32.totalorder %s28, 3
      %p156 = por %p154, %p155
      %p157 = scmp.ne.s32.totalorder %s148, %s149
      %p158 = scmp.eq.s32.totalorder %s28, 0
      %p159 = por %p157, %p158
      %p160 = scmp.ne.s32.totalorder %s148, %s149
      %p161 = scmp.eq.s32.totalorder %s29, 3
      %p162 = por %p160, %p161
      %p164 = scmp.ne.s32.totalorder %s149, %s163
      %p165 = scmp.eq.s32.totalorder %s29, 0
      %p166 = por %p164, %p165
      %s168 = sadd.s32 %s167, 1
      %p171 = scmp.eq.s32.totalorder %s23, 3
      %p172 = scmp.ne.s32.totalorder %s167, %s169
      %p173 = scmp.eq.s32.totalorder %s23, 0
      %p174 = por %p172, %p173
      %p175 = scmp.ne.s32.totalorder %s167, %s169
      %p176 = scmp.eq.s32.totalorder %s28, 3
      %p177 = por %p175, %p176
      %p178 = scmp.ne.s32.totalorder %s169, %s170
      %p179 = scmp.eq.s32.totalorder %s28, 0
      %p180 = por %p178, %p179
      %p181 = scmp.ne.s32.totalorder %s169, %s170
      %p182 = scmp.eq.s32.totalorder %s29, 3
      %p183 = por %p181, %p182
      %p185 = scmp.ne.s32.totalorder %s170, %s184
      %p186 = scmp.eq.s32.totalorder %s29, 0
      %p187 = por %p185, %p186
      %s189 = sadd.s32 %s188, 1
      %p192 = scmp.eq.s32.totalorder %s23, 3
      %p193 = scmp.ne.s32.totalorder %s188, %s190
      %p194 = scmp.eq.s32.totalorder %s23, 0
      %p195 = por %p193, %p194
      %p196 = scmp.ne.s32.totalorder %s188, %s190
      %p197 = scmp.eq.s32.totalorder %s28, 3
      %p198 = por %p196, %p197
      %p199 = scmp.ne.s32.totalorder %s190, %s191
      %p200 = scmp.eq.s32.totalorder %s28, 0
      %p201 = por %p199, %p200
      %p202 = scmp.ne.s32.totalorder %s190, %s191
      %p203 = scmp.eq.s32.totalorder %s29, 3
      %p204 = por %p202, %p203
      %p206 = scmp.ne.s32.totalorder %s191, %s205
      %p207 = scmp.eq.s32.totalorder %s29, 0
      %p208 = por %p206, %p207
      %s210 = sadd.s32 %s209, 1
      %p213 = scmp.eq.s32.totalorder %s23, 3
      %p214 = scmp.ne.s32.totalorder %s209, %s211
      %p215 = scmp.eq.s32.totalorder %s23, 0
      %p216 = por %p214, %p215
      %p217 = scmp.ne.s32.totalorder %s209, %s211
      %p218 = scmp.eq.s32.totalorder %s28, 3
      %p219 = por %p217, %p218
      %p220 = scmp.ne.s32.totalorder %s211, %s212
      %p221 = scmp.eq.s32.totalorder %s28, 0
      %p222 = por %p220, %p221
      %p223 = scmp.ne.s32.totalorder %s211, %s212
      %p224 = scmp.eq.s32.totalorder %s29, 3
      %p225 = por %p223, %p224
      %p227 = scmp.ne.s32.totalorder %s212, %s226
      %p228 = scmp.eq.s32.totalorder %s29, 0
      %p229 = por %p227, %p228
      %s231 = sadd.s32 %s230, 1
      %p234 = scmp.eq.s32.totalorder %s23, 3
      %p235 = scmp.ne.s32.totalorder %s230, %s232
      %p236 = scmp.eq.s32.totalorder %s23, 0
      %p237 = por %p235, %p236
      %p238 = scmp.ne.s32.totalorder %s230, %s232
      %p239 = scmp.eq.s32.totalorder %s28, 3
      %p240 = por %p238, %p239
      %p241 = scmp.ne.s32.totalorder %s232, %s233
      %p242 = scmp.eq.s32.totalorder %s28, 0
      %p243 = por %p241, %p242
      %p244 = scmp.ne.s32.totalorder %s232, %s233
      %p245 = scmp.eq.s32.totalorder %s29, 3
      %p246 = por %p244, %p245
      %p248 = scmp.ne.s32.totalorder %s233, %s247
      %p249 = scmp.eq.s32.totalorder %s29, 0
      %p250 = por %p248, %p249
      %s252 = sadd.s32 %s251, 1
      %p255 = scmp.eq.s32.totalorder %s23, 3
      %p256 = scmp.ne.s32.totalorder %s251, %s253
      %p257 = scmp.eq.s32.totalorder %s23, 0
      %p258 = por %p256, %p257
      %p259 = scmp.ne.s32.totalorder %s251, %s253
      %p260 = scmp.eq.s32.totalorder %s28, 3
      %p261 = por %p259, %p260
      %p262 = scmp.ne.s32.totalorder %s253, %s254
      %p263 = scmp.eq.s32.totalorder %s28, 0
      %p264 = por %p262, %p263
      %p265 = scmp.ne.s32.totalorder %s253, %s254
      %p266 = scmp.eq.s32.totalorder %s29, 3
      %p267 = por %p265, %p266
      %p269 = scmp.ne.s32.totalorder %s254, %s268
      %p270 = scmp.eq.s32.totalorder %s29, 0
      %p271 = por %p269, %p270
      %s273 = sadd.s32 %s272, 1
      %p276 = scmp.eq.s32.totalorder %s23, 3
      %p277 = scmp.ne.s32.totalorder %s272, %s274
      %p278 = scmp.eq.s32.totalorder %s23, 0
      %p279 = por %p277, %p278
      %p280 = scmp.ne.s32.totalorder %s272, %s274
      %p281 = scmp.eq.s32.totalorder %s28, 3
      %p282 = por %p280, %p281
      %p283 = scmp.ne.s32.totalorder %s274, %s275
      %p284 = scmp.eq.s32.totalorder %s28, 0
      %p285 = por %p283, %p284
      %p286 = scmp.ne.s32.totalorder %s274, %s275
      %p287 = scmp.eq.s32.totalorder %s29, 3
      %p288 = por %p286, %p287
      %p290 = scmp.ne.s32.totalorder %s275, %s289
      %p291 = scmp.eq.s32.totalorder %s29, 0
      %p292 = por %p290, %p291
      %s294 = sadd.s32 %s293, 1
      %p297 = scmp.eq.s32.totalorder %s23, 3
      %p298 = scmp.ne.s32.totalorder %s293, %s295
      %p299 = scmp.eq.s32.totalorder %s23, 0
      %p300 = por %p298, %p299
      %p301 = scmp.ne.s32.totalorder %s293, %s295
      %p302 = scmp.eq.s32.totalorder %s28, 3
      %p303 = por %p301, %p302
      %p304 = scmp.ne.s32.totalorder %s295, %s296
      %p305 = scmp.eq.s32.totalorder %s28, 0
      %p306 = por %p304, %p305
      %p307 = scmp.ne.s32.totalorder %s295, %s296
      %p308 = scmp.eq.s32.totalorder %s29, 3
      %p309 = por %p307, %p308
      %p311 = scmp.ne.s32.totalorder %s296, %s310
      %p312 = scmp.eq.s32.totalorder %s29, 0
      %p313 = por %p311, %p312
      %p314 = scmp.le.s32.totalorder 1, %s23
      %p315 = scmp.lt.s32.totalorder %s23, 5
      %p316 = pnand %p314, %p315
      %p317 = pneg %p316
      // Predicated region
      $region9: #{tpu_custom_call.1} parent=5 // pred_check
        _
      $region10: #{tpu_custom_call.1} parent=5 // pred_check_branch
        %319 = sbr.rel (%p316) target = $region12
      $region11: #{tpu_custom_call.1} parent=5 // pred_region
        %s320 = ssub.s32 %s23, 1
        // Predicated region
        $region13: #{tpu_custom_call.1} parent=11 // pred_check
          %p321 = pneg %p96
        $region14: #{tpu_custom_call.1} parent=11 // pred_check_branch
          %323 = sbr.rel (%p321) target = $region16
        $region15: #{tpu_custom_call.1} parent=11 // pred_region
          _
        $region16: #{tpu_custom_call.1} parent=11 // pred_fallthru
          _
        // Predicated region
        $region17: #{tpu_custom_call.1} parent=11 // pred_check
          %p324 = pneg %p117
        $region18: #{tpu_custom_call.1} parent=11 // pred_check_branch
          %326 = sbr.rel (%p324) target = $region20
        $region19: #{tpu_custom_call.1} parent=11 // pred_region
          _
        $region20: #{tpu_custom_call.1} parent=11 // pred_fallthru
          _
        // Predicated region
        $region21: #{tpu_custom_call.1} parent=11 // pred_check
          %p327 = pneg %p138
        $region22: #{tpu_custom_call.1} parent=11 // pred_check_branch
          %329 = sbr.rel (%p327) target = $region24
        $region23: #{tpu_custom_call.1} parent=11 // pred_region
          _
        $region24: #{tpu_custom_call.1} parent=11 // pred_fallthru
          _
        // Predicated region
        $region25: #{tpu_custom_call.1} parent=11 // pred_check
          %p330 = pneg %p159
        $region26: #{tpu_custom_call.1} parent=11 // pred_check_branch
          %332 = sbr.rel (%p330) target = $region28
        $region27: #{tpu_custom_call.1} parent=11 // pred_region
          _
        $region28: #{tpu_custom_call.1} parent=11 // pred_fallthru
          _
        // Predicated region
        $region29: #{tpu_custom_call.1} parent=11 // pred_check
          %p333 = pneg %p180
        $region30: #{tpu_custom_call.1} parent=11 // pred_check_branch
          %335 = sbr.rel (%p333) target = $region32
        $region31: #{tpu_custom_call.1} parent=11 // pred_region
          %337 = vsyncadd [#allocation8], 0
          %s338 = sshll.u32 %s6, 4
          %s339 = int_to_ptr.hbm [resolvable:$true] %s338
          %s340 = sshll.u32 [#allocation7], 4
          %s341 = int_to_ptr.vmem [resolvable:$true] %s340
          %346 = dma.hbm_to_vmem [thread:$0]  %s339, 16384, %s341, [#allocation8], 256, 256, 16
        $region32: #{tpu_custom_call.1} parent=11 // pred_fallthru
          _
        // Predicated region
        $region33: #{tpu_custom_call.1} parent=11 // pred_check
          %p347 = pneg %p201
        $region34: #{tpu_custom_call.1} parent=11 // pred_check_branch
          %349 = sbr.rel (%p347) target = $region36
        $region35: #{tpu_custom_call.1} parent=11 // pred_region
          _
        $region36: #{tpu_custom_call.1} parent=11 // pred_fallthru
          _
        // Predicated region
        $region37: #{tpu_custom_call.1} parent=11 // pred_check
          %p350 = pneg %p222
        $region38: #{tpu_custom_call.1} parent=11 // pred_check_branch
          %352 = sbr.rel (%p350) target = $region40
        $region39: #{tpu_custom_call.1} parent=11 // pred_region
          _
        $region40: #{tpu_custom_call.1} parent=11 // pred_fallthru
          _
        // Predicated region
        $region41: #{tpu_custom_call.1} parent=11 // pred_check
          %p353 = pneg %p243
        $region42: #{tpu_custom_call.1} parent=11 // pred_check_branch
          %355 = sbr.rel (%p353) target = $region44
        $region43: #{tpu_custom_call.1} parent=11 // pred_region
          _
        $region44: #{tpu_custom_call.1} parent=11 // pred_fallthru
          _
        // Predicated region
        $region45: #{tpu_custom_call.1} parent=11 // pred_check
          %p356 = pneg %p264
        $region46: #{tpu_custom_call.1} parent=11 // pred_check_branch
          %358 = sbr.rel (%p356) target = $region48
        $region47: #{tpu_custom_call.1} parent=11 // pred_region
          _
        $region48: #{tpu_custom_call.1} parent=11 // pred_fallthru
          _
        // Predicated region
        $region49: #{tpu_custom_call.1} parent=11 // pred_check
          %p359 = pneg %p285
        $region50: #{tpu_custom_call.1} parent=11 // pred_check_branch
          %361 = sbr.rel (%p359) target = $region52
        $region51: #{tpu_custom_call.1} parent=11 // pred_region
          _
        $region52: #{tpu_custom_call.1} parent=11 // pred_fallthru
          _
      $region12: #{tpu_custom_call.1} parent=5 // pred_fallthru
        _
      %p362 = scmp.lt.s32.totalorder %s23, 4
      // Predicated region
      $region53: #{tpu_custom_call.1} parent=5 // pred_check
        %p363 = pneg %p362
      $region54: #{tpu_custom_call.1} parent=5 // pred_check_branch
        %365 = sbr.rel (%p363) target = $region56
      $region55: #{tpu_custom_call.1} parent=5 // pred_region
        // Predicated region
        $region57: #{tpu_custom_call.1} parent=55 // pred_check
          %p366 = pneg %p43
        $region58: #{tpu_custom_call.1} parent=55 // pred_check_branch
          %368 = sbr.rel (%p366) target = $region60
        $region59: #{tpu_custom_call.1} parent=55 // pred_region
          %s369 = sand.u32 %s33, 1
          %s370 = sand.u32 %s33, 1
          %s371 = smul.addr %s370, 64
          %s372 = scalar_lea.vmem [#allocation3], %s371
          %s373 = smul.u32 2, %s23
          %s374 = smul.addr %s373, 4
          %s375 = scalar_lea.vmem %s0, %s374
          // Predicated region
          $region61: #{tpu_custom_call.1} parent=59 // pred_check
            _
          $region62: #{tpu_custom_call.1} parent=59 // pred_check_branch
            %377 = sbr.rel (0) target = $region64
          $region63: #{tpu_custom_call.1} parent=59 // pred_region
            // Predicated region
            $region65: #{tpu_custom_call.1} parent=63 // pred_check
              _
            $region66: #{tpu_custom_call.1} parent=63 // pred_check_branch
              %379 = sbr.rel (0) target = $region68
            $region67: #{tpu_custom_call.1} parent=63 // pred_region
              // Predicated region
              $region80: #{tpu_custom_call.1} parent=67 // pred_check
                _
              $region81: #{tpu_custom_call.1} parent=67 // pred_check_branch
                %409 = sbr.rel (0) target = $region83
              $region82: #{tpu_custom_call.1} parent=67 // pred_region
                loop: start=0, step=1, limit=1
                $region84: #{tpu_custom_call.1} parent=82 // loop_pre_header
                  _
                $region85: #{tpu_custom_call.1} parent=82 // loop_header
                  %s411 = sphi 0, %s415
                  %p412 = scmp.ge.s32.totalorder %s411, 1
                  %s416 = sphi %s375, %s375
                  %s417 = sphi %s372, %s372
                $region86: #{tpu_custom_call.1} parent=82 // loop_header_branch
                  %414 = sbr.rel (%p412) target = $region90
                $region87: #{tpu_custom_call.1} parent=82 // loop_body
                  %v418 = vld [vmem:[%s416] sm:$0xff]
                  %419 = vst [vmem:[%s417] sm:$0xff] %v418
                  %v420 = vld [vmem:[%s416 + $0x20] sm:$0xff]
                  %421 = vst [vmem:[%s417 + $0x8] sm:$0xff] %v420
                  %v422 = vld [vmem:[%s416 + $0x40] sm:$0xff]
                  %423 = vst [vmem:[%s417 + $0x10] sm:$0xff] %v422
                  %v424 = vld [vmem:[%s416 + $0x60] sm:$0xff]
                  %425 = vst [vmem:[%s417 + $0x18] sm:$0xff] %v424
                  %v426 = vld [vmem:[%s416 + $0x80] sm:$0xff]
                  %427 = vst [vmem:[%s417 + $0x20] sm:$0xff] %v426
                  %v428 = vld [vmem:[%s416 + $0xa0] sm:$0xff]
                  %429 = vst [vmem:[%s417 + $0x28] sm:$0xff] %v428
                  %v430 = vld [vmem:[%s416 + $0xc0] sm:$0xff]
                  %431 = vst [vmem:[%s417 + $0x30] sm:$0xff] %v430
                  %v432 = vld [vmem:[%s416 + $0xe0] sm:$0xff]
                  %433 = vst [vmem:[%s417 + $0x38] sm:$0xff] %v432
                $region88: #{tpu_custom_call.1} parent=82 // loop_footer
                  %s415 = sadd.s32 1, %s411
                $region89: #{tpu_custom_call.1} parent=82 // loop_footer_branch
                  %410 = sbr.rel target = $region85
                $region90: #{tpu_custom_call.1} parent=82 // loop_exit
                  _
              $region83: #{tpu_custom_call.1} parent=67 // pred_fallthru
                _
              // Predicated region
              $region91: #{tpu_custom_call.1} parent=67 // pred_check
                _
              $region92: #{tpu_custom_call.1} parent=67 // pred_check_branch
                %435 = sbr.rel target = $region94
              $region93: #{tpu_custom_call.1} parent=67 // pred_region
                _
              $region94: #{tpu_custom_call.1} parent=67 // pred_fallthru
                _
            $region68: #{tpu_custom_call.1} parent=63 // pred_fallthru
              _
            // Predicated region
            $region69: #{tpu_custom_call.1} parent=63 // pred_check
              _
            $region70: #{tpu_custom_call.1} parent=63 // pred_check_branch
              %381 = sbr.rel target = $region72
            $region71: #{tpu_custom_call.1} parent=63 // pred_region
              %s383 = ssub.s32 256, 1
              loop: start=0, step=1, limit=1
              $region73: #{tpu_custom_call.1} parent=71 // loop_pre_header
                _
              $region74: #{tpu_custom_call.1} parent=71 // loop_header
                %s385 = sphi 0, %s389
                %p386 = scmp.ge.s32.totalorder %s385, 1
                %s390 = sphi %s375, %s375
                %s391 = sphi %s372, %s372
              $region75: #{tpu_custom_call.1} parent=71 // loop_header_branch
                %388 = sbr.rel (%p386) target = $region79
              $region76: #{tpu_custom_call.1} parent=71 // loop_body
                %v392 = vld [vmem:[%s390] sm:%s383]
                %393 = vst [vmem:[%s391] sm:%s383] %v392
                %v394 = vld [vmem:[%s390 + $0x20] sm:%s383]
                %395 = vst [vmem:[%s391 + $0x8] sm:%s383] %v394
                %v396 = vld [vmem:[%s390 + $0x40] sm:%s383]
                %397 = vst [vmem:[%s391 + $0x10] sm:%s383] %v396
                %v398 = vld [vmem:[%s390 + $0x60] sm:%s383]
                %399 = vst [vmem:[%s391 + $0x18] sm:%s383] %v398
                %v400 = vld [vmem:[%s390 + $0x80] sm:%s383]
                %401 = vst [vmem:[%s391 + $0x20] sm:%s383] %v400
                %v402 = vld [vmem:[%s390 + $0xa0] sm:%s383]
                %403 = vst [vmem:[%s391 + $0x28] sm:%s383] %v402
                %v404 = vld [vmem:[%s390 + $0xc0] sm:%s383]
                %405 = vst [vmem:[%s391 + $0x30] sm:%s383] %v404
                %v406 = vld [vmem:[%s390 + $0xe0] sm:%s383]
                %407 = vst [vmem:[%s391 + $0x38] sm:%s383] %v406
              $region77: #{tpu_custom_call.1} parent=71 // loop_footer
                %s389 = sadd.s32 1, %s385
              $region78: #{tpu_custom_call.1} parent=71 // loop_footer_branch
                %384 = sbr.rel target = $region74
              $region79: #{tpu_custom_call.1} parent=71 // loop_exit
                _
            $region72: #{tpu_custom_call.1} parent=63 // pred_fallthru
              _
          $region64: #{tpu_custom_call.1} parent=59 // pred_fallthru
            _
          %436 = vnop
        $region60: #{tpu_custom_call.1} parent=55 // pred_fallthru
          _
        // Predicated region
        $region95: #{tpu_custom_call.1} parent=55 // pred_check
          %p437 = pneg %p69
        $region96: #{tpu_custom_call.1} parent=55 // pred_check_branch
          %439 = sbr.rel (%p437) target = $region98
        $region97: #{tpu_custom_call.1} parent=55 // pred_region
          %s440 = sand.u32 %s59, 1
          %s441 = scalar_lea.sflag [#allocation5], %s440
          %s442 = sand.u32 %s59, 1
          %s443 = smul.addr %s442, 512
          %s444 = scalar_lea.vmem [#allocation4], %s443
          %s445 = smul.u32 32, %s23
          %447 = vsyncadd %s441, 0
          %s448 = smul.addr %s445, 4
          %s449 = smul.addr %s448, 4
          %s450 = scalar_lea.hbm %s1, %s449
          %s451 = sshll.u32 %s450, 4
          %s452 = int_to_ptr.hbm [resolvable:$true] %s451
          %s453 = sshll.u32 %s444, 4
          %s454 = int_to_ptr.vmem [resolvable:$true] %s453
          %459 = dma.hbm_to_vmem [thread:$0]  %s452, 8192, %s454, %s441, 256, 256, 16
        $region98: #{tpu_custom_call.1} parent=55 // pred_fallthru
          _
      $region56: #{tpu_custom_call.1} parent=5 // pred_fallthru
        _
      %p460 = scmp.le.s32.totalorder 1, %s23
      %p461 = scmp.lt.s32.totalorder %s23, 5
      %p462 = pnand %p460, %p461
      %p463 = pneg %p462
      // Predicated region
      $region99: #{tpu_custom_call.1} parent=5 // pred_check
        _
      $region100: #{tpu_custom_call.1} parent=5 // pred_check_branch
        %465 = sbr.rel (%p462) target = $region102
      $region101: #{tpu_custom_call.1} parent=5 // pred_region
        %s466 = ssub.s32 %s23, 1
        %s467 = sand.u32 %s36, 1
        %s468 = sand.u32 %s36, 1
        %s469 = smul.addr %s468, 64
        %s470 = scalar_lea.vmem [#allocation3], %s469
        // Predicated region
        $region103: #{tpu_custom_call.1} parent=101 // pred_check
          %p471 = pneg %p49
        $region104: #{tpu_custom_call.1} parent=101 // pred_check_branch
          %473 = sbr.rel (%p471) target = $region106
        $region105: #{tpu_custom_call.1} parent=101 // pred_region
          _
        $region106: #{tpu_custom_call.1} parent=101 // pred_fallthru
          _
        %s474 = sand.u32 %s62, 1
        %s475 = scalar_lea.sflag [#allocation5], %s474
        %s476 = sand.u32 %s62, 1
        %s477 = smul.addr %s476, 512
        %s478 = scalar_lea.vmem [#allocation4], %s477
        // Predicated region
        $region107: #{tpu_custom_call.1} parent=101 // pred_check
          %p479 = pneg %p75
        $region108: #{tpu_custom_call.1} parent=101 // pred_check_branch
          %481 = sbr.rel (%p479) target = $region110
        $region109: #{tpu_custom_call.1} parent=101 // pred_region
          %483 = dma.done %s475, 8192
        $region110: #{tpu_custom_call.1} parent=101 // pred_fallthru
          _
        // Predicated region
        $region111: #{tpu_custom_call.1} parent=101 // pred_check
          %p484 = pneg %p180
        $region112: #{tpu_custom_call.1} parent=101 // pred_check_branch
          %486 = sbr.rel (%p484) target = $region114
        $region113: #{tpu_custom_call.1} parent=101 // pred_region
          %488 = dma.done [#allocation8], 16384
        $region114: #{tpu_custom_call.1} parent=101 // pred_fallthru
          _
        %s489 = sand.u32 %s36, 1
        %s490 = sand.u32 %s36, 1
        %s491 = smul.addr %s490, 64
        %s492 = scalar_lea.vmem [#allocation3], %s491
        %p493 = pneg %p49
        %p494 = pneg %p46
        %s495 = sand.u32 %s62, 1
        %s496 = scalar_lea.sflag [#allocation5], %s495
        %s497 = sand.u32 %s62, 1
        %s498 = smul.addr %s497, 512
        %s499 = scalar_lea.vmem [#allocation4], %s498
        %p500 = pneg %p75
        %p501 = pneg %p72
        %p502 = pneg %p96
        %p503 = pneg %p93
        %p504 = pneg %p117
        %p505 = pneg %p114
        %p506 = pneg %p138
        %p507 = pneg %p135
        %p508 = pneg %p159
        %p509 = pneg %p156
        %p510 = pneg %p180
        %p511 = pneg %p177
        %p512 = pneg %p201
        %p513 = pneg %p198
        %p514 = pneg %p222
        %p515 = pneg %p219
        %p516 = pneg %p243
        %p517 = pneg %p240
        %p518 = pneg %p264
        %p519 = pneg %p261
        %p520 = pneg %p285
        %p521 = pneg %p282
        %p522 = pneg %p306
        %p523 = pneg %p303
        %s524 = smul.u32 2, %s28
        %s525 = smul.u32 32, %s28
        %p526 = scmp.eq.s32.totalorder %s28, 0
        // Predicated region
        $region115: #{tpu_custom_call.1} parent=101 // pred_check
          %p527 = pneg %p526
        $region116: #{tpu_custom_call.1} parent=101 // pred_check_branch
          %529 = sbr.rel (%p527) target = $region118
        $region117: #{tpu_custom_call.1} parent=101 // pred_region
          %530 = vst [vmem:[#allocation2] sm:$0xff] 0.0
          %531 = vst [vmem:[#allocation2 + $0x8] sm:$0xff] 0.0
          %532 = vst [vmem:[#allocation2 + $0x10] sm:$0xff] 0.0
          %533 = vst [vmem:[#allocation2 + $0x18] sm:$0xff] 0.0
          %534 = vst [vmem:[#allocation2 + $0x20] sm:$0xff] 0.0
          %535 = vst [vmem:[#allocation2 + $0x28] sm:$0xff] 0.0
          %536 = vst [vmem:[#allocation2 + $0x30] sm:$0xff] 0.0
          %537 = vst [vmem:[#allocation2 + $0x38] sm:$0xff] 0.0
          %538 = vst [vmem:[#allocation2 + $0x40] sm:$0xff] 0.0
          %539 = vst [vmem:[#allocation2 + $0x48] sm:$0xff] 0.0
          %540 = vst [vmem:[#allocation2 + $0x50] sm:$0xff] 0.0
          %541 = vst [vmem:[#allocation2 + $0x58] sm:$0xff] 0.0
          %542 = vst [vmem:[#allocation2 + $0x60] sm:$0xff] 0.0
          %543 = vst [vmem:[#allocation2 + $0x68] sm:$0xff] 0.0
          %544 = vst [vmem:[#allocation2 + $0x70] sm:$0xff] 0.0
          %545 = vst [vmem:[#allocation2 + $0x78] sm:$0xff] 0.0
          %546 = vst [vmem:[#allocation2 + $0x80] sm:$0xff] 0.0
          %547 = vst [vmem:[#allocation2 + $0x88] sm:$0xff] 0.0
          %548 = vst [vmem:[#allocation2 + $0x90] sm:$0xff] 0.0
          %549 = vst [vmem:[#allocation2 + $0x98] sm:$0xff] 0.0
          %550 = vst [vmem:[#allocation2 + $0xa0] sm:$0xff] 0.0
          %551 = vst [vmem:[#allocation2 + $0xa8] sm:$0xff] 0.0
          %552 = vst [vmem:[#allocation2 + $0xb0] sm:$0xff] 0.0
          %553 = vst [vmem:[#allocation2 + $0xb8] sm:$0xff] 0.0
          %554 = vst [vmem:[#allocation2 + $0xc0] sm:$0xff] 0.0
          %555 = vst [vmem:[#allocation2 + $0xc8] sm:$0xff] 0.0
          %556 = vst [vmem:[#allocation2 + $0xd0] sm:$0xff] 0.0
          %557 = vst [vmem:[#allocation2 + $0xd8] sm:$0xff] 0.0
          %558 = vst [vmem:[#allocation2 + $0xe0] sm:$0xff] 0.0
          %559 = vst [vmem:[#allocation2 + $0xe8] sm:$0xff] 0.0
          %560 = vst [vmem:[#allocation2 + $0xf0] sm:$0xff] 0.0
          %561 = vst [vmem:[#allocation2 + $0xf8] sm:$0xff] 0.0
        $region118: #{tpu_custom_call.1} parent=101 // pred_fallthru
          _
        %v562 = vld [vmem:[#allocation2] sm:$0xff]
        %v563 = vld [vmem:[#allocation2 + $0x8] sm:$0xff]
        %v564 = vld [vmem:[#allocation2 + $0x10] sm:$0xff]
        %v565 = vld [vmem:[#allocation2 + $0x18] sm:$0xff]
        %v566 = vld [vmem:[#allocation2 + $0x20] sm:$0xff]
        %v567 = vld [vmem:[#allocation2 + $0x28] sm:$0xff]
        %v568 = vld [vmem:[#allocation2 + $0x30] sm:$0xff]
        %v569 = vld [vmem:[#allocation2 + $0x38] sm:$0xff]
        %v570 = vld [vmem:[#allocation2 + $0x40] sm:$0xff]
        %v571 = vld [vmem:[#allocation2 + $0x48] sm:$0xff]
        %v572 = vld [vmem:[#allocation2 + $0x50] sm:$0xff]
        %v573 = vld [vmem:[#allocation2 + $0x58] sm:$0xff]
        %v574 = vld [vmem:[#allocation2 + $0x60] sm:$0xff]
        %v575 = vld [vmem:[#allocation2 + $0x68] sm:$0xff]
        %v576 = vld [vmem:[#allocation2 + $0x70] sm:$0xff]
        %v577 = vld [vmem:[#allocation2 + $0x78] sm:$0xff]
        %v578 = vld [vmem:[#allocation2 + $0x80] sm:$0xff]
        %v579 = vld [vmem:[#allocation2 + $0x88] sm:$0xff]
        %v580 = vld [vmem:[#allocation2 + $0x90] sm:$0xff]
        %v581 = vld [vmem:[#allocation2 + $0x98] sm:$0xff]
        %v582 = vld [vmem:[#allocation2 + $0xa0] sm:$0xff]
        %v583 = vld [vmem:[#allocation2 + $0xa8] sm:$0xff]
        %v584 = vld [vmem:[#allocation2 + $0xb0] sm:$0xff]
        %v585 = vld [vmem:[#allocation2 + $0xb8] sm:$0xff]
        %v586 = vld [vmem:[#allocation2 + $0xc0] sm:$0xff]
        %v587 = vld [vmem:[#allocation2 + $0xc8] sm:$0xff]
        %v588 = vld [vmem:[#allocation2 + $0xd0] sm:$0xff]
        %v589 = vld [vmem:[#allocation2 + $0xd8] sm:$0xff]
        %v590 = vld [vmem:[#allocation2 + $0xe0] sm:$0xff]
        %v591 = vld [vmem:[#allocation2 + $0xe8] sm:$0xff]
        %v592 = vld [vmem:[#allocation2 + $0xf0] sm:$0xff]
        %v593 = vld [vmem:[#allocation2 + $0xf8] sm:$0xff]
        %v594 = vld [vmem:[%s470] sm:$0xff]
        %v595 = vld [vmem:[%s470 + $0x8] sm:$0xff]
        %v596 = vld [vmem:[%s470 + $0x10] sm:$0xff]
        %v597 = vld [vmem:[%s470 + $0x18] sm:$0xff]
        %v598 = vld [vmem:[%s470 + $0x20] sm:$0xff]
        %v599 = vld [vmem:[%s470 + $0x28] sm:$0xff]
        %v600 = vld [vmem:[%s470 + $0x30] sm:$0xff]
        %v601 = vld [vmem:[%s470 + $0x38] sm:$0xff]
        %v602 = vld [vmem:[%s478] sm:$0xff]
        %v603 = vld [vmem:[%s478 + $0x8] sm:$0xff]
        %v604 = vld [vmem:[%s478 + $0x10] sm:$0xff]
        %v605 = vld [vmem:[%s478 + $0x18] sm:$0xff]
        %v606 = vld [vmem:[%s478 + $0x20] sm:$0xff]
        %v607 = vld [vmem:[%s478 + $0x28] sm:$0xff]
        %v608 = vld [vmem:[%s478 + $0x30] sm:$0xff]
        %v609 = vld [vmem:[%s478 + $0x38] sm:$0xff]
        %v610 = vld [vmem:[%s478 + $0x40] sm:$0xff]
        %v611 = vld [vmem:[%s478 + $0x48] sm:$0xff]
        %v612 = vld [vmem:[%s478 + $0x50] sm:$0xff]
        %v613 = vld [vmem:[%s478 + $0x58] sm:$0xff]
        %v614 = vld [vmem:[%s478 + $0x60] sm:$0xff]
        %v615 = vld [vmem:[%s478 + $0x68] sm:$0xff]
        %v616 = vld [vmem:[%s478 + $0x70] sm:$0xff]
        %v617 = vld [vmem:[%s478 + $0x78] sm:$0xff]
        %v618 = vld [vmem:[%s478 + $0x80] sm:$0xff]
        %v619 = vld [vmem:[%s478 + $0x88] sm:$0xff]
        %v620 = vld [vmem:[%s478 + $0x90] sm:$0xff]
        %v621 = vld [vmem:[%s478 + $0x98] sm:$0xff]
        %v622 = vld [vmem:[%s478 + $0xa0] sm:$0xff]
        %v623 = vld [vmem:[%s478 + $0xa8] sm:$0xff]
        %v624 = vld [vmem:[%s478 + $0xb0] sm:$0xff]
        %v625 = vld [vmem:[%s478 + $0xb8] sm:$0xff]
        %v626 = vld [vmem:[%s478 + $0xc0] sm:$0xff]
        %v627 = vld [vmem:[%s478 + $0xc8] sm:$0xff]
        %v628 = vld [vmem:[%s478 + $0xd0] sm:$0xff]
        %v629 = vld [vmem:[%s478 + $0xd8] sm:$0xff]
        %v630 = vld [vmem:[%s478 + $0xe0] sm:$0xff]
        %v631 = vld [vmem:[%s478 + $0xe8] sm:$0xff]
        %v632 = vld [vmem:[%s478 + $0xf0] sm:$0xff]
        %v633 = vld [vmem:[%s478 + $0xf8] sm:$0xff]
        %v634 = vld [vmem:[%s478 + $0x100] sm:$0xff]
        %v635 = vld [vmem:[%s478 + $0x108] sm:$0xff]
        %v636 = vld [vmem:[%s478 + $0x110] sm:$0xff]
        %v637 = vld [vmem:[%s478 + $0x118] sm:$0xff]
        %v638 = vld [vmem:[%s478 + $0x120] sm:$0xff]
        %v639 = vld [vmem:[%s478 + $0x128] sm:$0xff]
        %v640 = vld [vmem:[%s478 + $0x130] sm:$0xff]
        %v641 = vld [vmem:[%s478 + $0x138] sm:$0xff]
        %v642 = vld [vmem:[%s478 + $0x140] sm:$0xff]
        %v643 = vld [vmem:[%s478 + $0x148] sm:$0xff]
        %v644 = vld [vmem:[%s478 + $0x150] sm:$0xff]
        %v645 = vld [vmem:[%s478 + $0x158] sm:$0xff]
        %v646 = vld [vmem:[%s478 + $0x160] sm:$0xff]
        %v647 = vld [vmem:[%s478 + $0x168] sm:$0xff]
        %v648 = vld [vmem:[%s478 + $0x170] sm:$0xff]
        %v649 = vld [vmem:[%s478 + $0x178] sm:$0xff]
        %v650 = vld [vmem:[%s478 + $0x180] sm:$0xff]
        %v651 = vld [vmem:[%s478 + $0x188] sm:$0xff]
        %v652 = vld [vmem:[%s478 + $0x190] sm:$0xff]
        %v653 = vld [vmem:[%s478 + $0x198] sm:$0xff]
        %v654 = vld [vmem:[%s478 + $0x1a0] sm:$0xff]
        %v655 = vld [vmem:[%s478 + $0x1a8] sm:$0xff]
        %v656 = vld [vmem:[%s478 + $0x1b0] sm:$0xff]
        %v657 = vld [vmem:[%s478 + $0x1b8] sm:$0xff]
        %v658 = vld [vmem:[%s478 + $0x1c0] sm:$0xff]
        %v659 = vld [vmem:[%s478 + $0x1c8] sm:$0xff]
        %v660 = vld [vmem:[%s478 + $0x1d0] sm:$0xff]
        %v661 = vld [vmem:[%s478 + $0x1d8] sm:$0xff]
        %v662 = vld [vmem:[%s478 + $0x1e0] sm:$0xff]
        %v663 = vld [vmem:[%s478 + $0x1e8] sm:$0xff]
        %v664 = vld [vmem:[%s478 + $0x1f0] sm:$0xff]
        %v665 = vld [vmem:[%s478 + $0x1f8] sm:$0xff]
        %v674 = vunpack.c.l.b16 %v594
        %v675 = vunpack.c.h.b16 %v594
        %v676 = vunpack.c.l.b16 %v595
        %v677 = vunpack.c.h.b16 %v595
        %v678 = vunpack.c.l.b16 %v596
        %v679 = vunpack.c.h.b16 %v596
        %v680 = vunpack.c.l.b16 %v597
        %v681 = vunpack.c.h.b16 %v597
        %v682 = vunpack.c.l.b16 %v598
        %v683 = vunpack.c.h.b16 %v598
        %v684 = vunpack.c.l.b16 %v599
        %v685 = vunpack.c.h.b16 %v599
        %v686 = vunpack.c.l.b16 %v600
        %v687 = vunpack.c.h.b16 %v600
        %v688 = vunpack.c.l.b16 %v601
        %v689 = vunpack.c.h.b16 %v601
        %v690 = vpack.c.b16 %v676, %v674
        %v691 = vpack.c.b16 %v677, %v675
        %v692 = vpack.c.b16 %v680, %v678
        %v693 = vpack.c.b16 %v681, %v679
        %v694 = vpack.c.b16 %v684, %v682
        %v695 = vpack.c.b16 %v685, %v683
        %v696 = vpack.c.b16 %v688, %v686
        %v697 = vpack.c.b16 %v689, %v687
        %v770 = vunpack.c.l.b16 %v602
        %v771 = vunpack.c.h.b16 %v602
        %v772 = vunpack.c.l.b16 %v603
        %v773 = vunpack.c.h.b16 %v603
        %v774 = vunpack.c.l.b16 %v604
        %v775 = vunpack.c.h.b16 %v604
        %v776 = vunpack.c.l.b16 %v605
        %v777 = vunpack.c.h.b16 %v605
        %v778 = vunpack.c.l.b16 %v606
        %v779 = vunpack.c.h.b16 %v606
        %v780 = vunpack.c.l.b16 %v607
        %v781 = vunpack.c.h.b16 %v607
        %v782 = vunpack.c.l.b16 %v608
        %v783 = vunpack.c.h.b16 %v608
        %v784 = vunpack.c.l.b16 %v609
        %v785 = vunpack.c.h.b16 %v609
        %v786 = vunpack.c.l.b16 %v610
        %v787 = vunpack.c.h.b16 %v610
        %v788 = vunpack.c.l.b16 %v611
        %v789 = vunpack.c.h.b16 %v611
        %v790 = vunpack.c.l.b16 %v612
        %v791 = vunpack.c.h.b16 %v612
        %v792 = vunpack.c.l.b16 %v613
        %v793 = vunpack.c.h.b16 %v613
        %v794 = vunpack.c.l.b16 %v614
        %v795 = vunpack.c.h.b16 %v614
        %v796 = vunpack.c.l.b16 %v615
        %v797 = vunpack.c.h.b16 %v615
        %v798 = vunpack.c.l.b16 %v616
        %v799 = vunpack.c.h.b16 %v616
        %v800 = vunpack.c.l.b16 %v617
        %v801 = vunpack.c.h.b16 %v617
        %v802 = vunpack.c.l.b16 %v618
        %v803 = vunpack.c.h.b16 %v618
        %v804 = vunpack.c.l.b16 %v619
        %v805 = vunpack.c.h.b16 %v619
        %v806 = vunpack.c.l.b16 %v620
        %v807 = vunpack.c.h.b16 %v620
        %v808 = vunpack.c.l.b16 %v621
        %v809 = vunpack.c.h.b16 %v621
        %v810 = vunpack.c.l.b16 %v622
        %v811 = vunpack.c.h.b16 %v622
        %v812 = vunpack.c.l.b16 %v623
        %v813 = vunpack.c.h.b16 %v623
        %v814 = vunpack.c.l.b16 %v624
        %v815 = vunpack.c.h.b16 %v624
        %v816 = vunpack.c.l.b16 %v625
        %v817 = vunpack.c.h.b16 %v625
        %v818 = vunpack.c.l.b16 %v626
        %v819 = vunpack.c.h.b16 %v626
        %v820 = vunpack.c.l.b16 %v627
        %v821 = vunpack.c.h.b16 %v627
        %v822 = vunpack.c.l.b16 %v628
        %v823 = vunpack.c.h.b16 %v628
        %v824 = vunpack.c.l.b16 %v629
        %v825 = vunpack.c.h.b16 %v629
        %v826 = vunpack.c.l.b16 %v630
        %v827 = vunpack.c.h.b16 %v630
        %v828 = vunpack.c.l.b16 %v631
        %v829 = vunpack.c.h.b16 %v631
        %v830 = vunpack.c.l.b16 %v632
        %v831 = vunpack.c.h.b16 %v632
        %v832 = vunpack.c.l.b16 %v633
        %v833 = vunpack.c.h.b16 %v633
        %v834 = vunpack.c.l.b16 %v634
        %v835 = vunpack.c.h.b16 %v634
        %v836 = vunpack.c.l.b16 %v635
        %v837 = vunpack.c.h.b16 %v635
        %v838 = vunpack.c.l.b16 %v636
        %v839 = vunpack.c.h.b16 %v636
        %v840 = vunpack.c.l.b16 %v637
        %v841 = vunpack.c.h.b16 %v637
        %v842 = vunpack.c.l.b16 %v638
        %v843 = vunpack.c.h.b16 %v638
        %v844 = vunpack.c.l.b16 %v639
        %v845 = vunpack.c.h.b16 %v639
        %v846 = vunpack.c.l.b16 %v640
        %v847 = vunpack.c.h.b16 %v640
        %v848 = vunpack.c.l.b16 %v641
        %v849 = vunpack.c.h.b16 %v641
        %v850 = vunpack.c.l.b16 %v642
        %v851 = vunpack.c.h.b16 %v642
        %v852 = vunpack.c.l.b16 %v643
        %v853 = vunpack.c.h.b16 %v643
        %v854 = vunpack.c.l.b16 %v644
        %v855 = vunpack.c.h.b16 %v644
        %v856 = vunpack.c.l.b16 %v645
        %v857 = vunpack.c.h.b16 %v645
        %v858 = vunpack.c.l.b16 %v646
        %v859 = vunpack.c.h.b16 %v646
        %v860 = vunpack.c.l.b16 %v647
        %v861 = vunpack.c.h.b16 %v647
        %v862 = vunpack.c.l.b16 %v648
        %v863 = vunpack.c.h.b16 %v648
        %v864 = vunpack.c.l.b16 %v649
        %v865 = vunpack.c.h.b16 %v649
        %v866 = vunpack.c.l.b16 %v650
        %v867 = vunpack.c.h.b16 %v650
        %v868 = vunpack.c.l.b16 %v651
        %v869 = vunpack.c.h.b16 %v651
        %v870 = vunpack.c.l.b16 %v652
        %v871 = vunpack.c.h.b16 %v652
        %v872 = vunpack.c.l.b16 %v653
        %v873 = vunpack.c.h.b16 %v653
        %v874 = vunpack.c.l.b16 %v654
        %v875 = vunpack.c.h.b16 %v654
        %v876 = vunpack.c.l.b16 %v655
        %v877 = vunpack.c.h.b16 %v655
        %v878 = vunpack.c.l.b16 %v656
        %v879 = vunpack.c.h.b16 %v656
        %v880 = vunpack.c.l.b16 %v657
        %v881 = vunpack.c.h.b16 %v657
        %v882 = vunpack.c.l.b16 %v658
        %v883 = vunpack.c.h.b16 %v658
        %v884 = vunpack.c.l.b16 %v659
        %v885 = vunpack.c.h.b16 %v659
        %v886 = vunpack.c.l.b16 %v660
        %v887 = vunpack.c.h.b16 %v660
        %v888 = vunpack.c.l.b16 %v661
        %v889 = vunpack.c.h.b16 %v661
        %v890 = vunpack.c.l.b16 %v662
        %v891 = vunpack.c.h.b16 %v662
        %v892 = vunpack.c.l.b16 %v663
        %v893 = vunpack.c.h.b16 %v663
        %v894 = vunpack.c.l.b16 %v664
        %v895 = vunpack.c.h.b16 %v664
        %v896 = vunpack.c.l.b16 %v665
        %v897 = vunpack.c.h.b16 %v665
        %v898 = vpack.c.b16 %v774, %v770
        %v899 = vpack.c.b16 %v775, %v771
        %v900 = vpack.c.b16 %v776, %v772
        %v901 = vpack.c.b16 %v777, %v773
        %v902 = vpack.c.b16 %v782, %v778
        %v903 = vpack.c.b16 %v783, %v779
        %v904 = vpack.c.b16 %v784, %v780
        %v905 = vpack.c.b16 %v785, %v781
        %v906 = vpack.c.b16 %v790, %v786
        %v907 = vpack.c.b16 %v791, %v787
        %v908 = vpack.c.b16 %v792, %v788
        %v909 = vpack.c.b16 %v793, %v789
        %v910 = vpack.c.b16 %v798, %v794
        %v911 = vpack.c.b16 %v799, %v795
        %v912 = vpack.c.b16 %v800, %v796
        %v913 = vpack.c.b16 %v801, %v797
        %v914 = vpack.c.b16 %v806, %v802
        %v915 = vpack.c.b16 %v807, %v803
        %v916 = vpack.c.b16 %v808, %v804
        %v917 = vpack.c.b16 %v809, %v805
        %v918 = vpack.c.b16 %v814, %v810
        %v919 = vpack.c.b16 %v815, %v811
        %v920 = vpack.c.b16 %v816, %v812
        %v921 = vpack.c.b16 %v817, %v813
        %v922 = vpack.c.b16 %v822, %v818
        %v923 = vpack.c.b16 %v823, %v819
        %v924 = vpack.c.b16 %v824, %v820
        %v925 = vpack.c.b16 %v825, %v821
        %v926 = vpack.c.b16 %v830, %v826
        %v927 = vpack.c.b16 %v831, %v827
        %v928 = vpack.c.b16 %v832, %v828
        %v929 = vpack.c.b16 %v833, %v829
        %v930 = vpack.c.b16 %v838, %v834
        %v931 = vpack.c.b16 %v839, %v835
        %v932 = vpack.c.b16 %v840, %v836
        %v933 = vpack.c.b16 %v841, %v837
        %v934 = vpack.c.b16 %v846, %v842
        %v935 = vpack.c.b16 %v847, %v843
        %v936 = vpack.c.b16 %v848, %v844
        %v937 = vpack.c.b16 %v849, %v845
        %v938 = vpack.c.b16 %v854, %v850
        %v939 = vpack.c.b16 %v855, %v851
        %v940 = vpack.c.b16 %v856, %v852
        %v941 = vpack.c.b16 %v857, %v853
        %v942 = vpack.c.b16 %v862, %v858
        %v943 = vpack.c.b16 %v863, %v859
        %v944 = vpack.c.b16 %v864, %v860
        %v945 = vpack.c.b16 %v865, %v861
        %v946 = vpack.c.b16 %v870, %v866
        %v947 = vpack.c.b16 %v871, %v867
        %v948 = vpack.c.b16 %v872, %v868
        %v949 = vpack.c.b16 %v873, %v869
        %v950 = vpack.c.b16 %v878, %v874
        %v951 = vpack.c.b16 %v879, %v875
        %v952 = vpack.c.b16 %v880, %v876
        %v953 = vpack.c.b16 %v881, %v877
        %v954 = vpack.c.b16 %v886, %v882
        %v955 = vpack.c.b16 %v887, %v883
        %v956 = vpack.c.b16 %v888, %v884
        %v957 = vpack.c.b16 %v889, %v885
        %v958 = vpack.c.b16 %v894, %v890
        %v959 = vpack.c.b16 %v895, %v891
        %v960 = vpack.c.b16 %v896, %v892
        %v961 = vpack.c.b16 %v897, %v893
        %1026 = vmatpush.bf16.msra.mxu0 %v926
        %1027 = vmatpush.bf16.msra.mxu0 %v922
        %1028 = vmatpush.bf16.msra.mxu0 %v918
        %1029 = vmatpush.bf16.msra.mxu0 %v914
        %1030 = vmatpush.bf16.msra.mxu0 %v910
        %1031 = vmatpush.bf16.msra.mxu0 %v906
        %1032 = vmatpush.bf16.msra.mxu0 %v902
        %1033 = vmatpush.bf16.msra.mxu0 %v898
        %1034 = vmatmul.bf16.gmra.mxu0 %v690
        %v1035 = vpop.f32.mrf.mxu0
        %v1036 = vadd.f32 0.0, %v1035
        %v1037 = vpop.f32.mrf.mxu0
        %v1038 = vadd.f32 0.0, %v1037
        %1039 = vmatmul.bf16.gmra.mxu0 %v692
        %v1040 = vpop.f32.mrf.mxu0
        %v1041 = vadd.f32 0.0, %v1040
        %v1042 = vpop.f32.mrf.mxu0
        %v1043 = vadd.f32 0.0, %v1042
        %1044 = vmatmul.bf16.gmra.mxu0 %v694
        %v1045 = vpop.f32.mrf.mxu0
        %v1046 = vadd.f32 0.0, %v1045
        %v1047 = vpop.f32.mrf.mxu0
        %v1048 = vadd.f32 0.0, %v1047
        %1049 = vmatmul.bf16.gmra.mxu0 %v696
        %v1050 = vpop.f32.mrf.mxu0
        %v1051 = vadd.f32 0.0, %v1050
        %v1052 = vpop.f32.mrf.mxu0
        %v1053 = vadd.f32 0.0, %v1052
        %1054 = vdwg.mxu0
        %1055 = vmatpush.bf16.msra.mxu0 %v958
        %1056 = vmatpush.bf16.msra.mxu0 %v954
        %1057 = vmatpush.bf16.msra.mxu0 %v950
        %1058 = vmatpush.bf16.msra.mxu0 %v946
        %1059 = vmatpush.bf16.msra.mxu0 %v942
        %1060 = vmatpush.bf16.msra.mxu0 %v938
        %1061 = vmatpush.bf16.msra.mxu0 %v934
        %1062 = vmatpush.bf16.msra.mxu0 %v930
        %1063 = vmatmul.bf16.gmra.mxu0 %v691
        %v1064 = vpop.f32.mrf.mxu0
        %v1065 = vadd.f32 %v1036, %v1064
        %v1066 = vpop.f32.mrf.mxu0
        %v1067 = vadd.f32 %v1038, %v1066
        %1068 = vmatmul.bf16.gmra.mxu0 %v693
        %v1069 = vpop.f32.mrf.mxu0
        %v1070 = vadd.f32 %v1041, %v1069
        %v1071 = vpop.f32.mrf.mxu0
        %v1072 = vadd.f32 %v1043, %v1071
        %1073 = vmatmul.bf16.gmra.mxu0 %v695
        %v1074 = vpop.f32.mrf.mxu0
        %v1075 = vadd.f32 %v1046, %v1074
        %v1076 = vpop.f32.mrf.mxu0
        %v1077 = vadd.f32 %v1048, %v1076
        %1078 = vmatmul.bf16.gmra.mxu0 %v697
        %v1079 = vpop.f32.mrf.mxu0
        %v1080 = vadd.f32 %v1051, %v1079
        %v1081 = vpop.f32.mrf.mxu0
        %v1082 = vadd.f32 %v1053, %v1081
        %1083 = vdwg.mxu0
        %1084 = vmatpush.bf16.msra.mxu0 %v927
        %1085 = vmatpush.bf16.msra.mxu0 %v923
        %1086 = vmatpush.bf16.msra.mxu0 %v919
        %1087 = vmatpush.bf16.msra.mxu0 %v915
        %1088 = vmatpush.bf16.msra.mxu0 %v911
        %1089 = vmatpush.bf16.msra.mxu0 %v907
        %1090 = vmatpush.bf16.msra.mxu0 %v903
        %1091 = vmatpush.bf16.msra.mxu0 %v899
        %1092 = vmatmul.bf16.gmra.mxu0 %v690
        %v1093 = vpop.f32.mrf.mxu0
        %v1094 = vadd.f32 0.0, %v1093
        %v1095 = vpop.f32.mrf.mxu0
        %v1096 = vadd.f32 0.0, %v1095
        %1097 = vmatmul.bf16.gmra.mxu0 %v692
        %v1098 = vpop.f32.mrf.mxu0
        %v1099 = vadd.f32 0.0, %v1098
        %v1100 = vpop.f32.mrf.mxu0
        %v1101 = vadd.f32 0.0, %v1100
        %1102 = vmatmul.bf16.gmra.mxu0 %v694
        %v1103 = vpop.f32.mrf.mxu0
        %v1104 = vadd.f32 0.0, %v1103
        %v1105 = vpop.f32.mrf.mxu0
        %v1106 = vadd.f32 0.0, %v1105
        %1107 = vmatmul.bf16.gmra.mxu0 %v696
        %v1108 = vpop.f32.mrf.mxu0
        %v1109 = vadd.f32 0.0, %v1108
        %v1110 = vpop.f32.mrf.mxu0
        %v1111 = vadd.f32 0.0, %v1110
        %1112 = vdwg.mxu0
        %1113 = vmatpush.bf16.msra.mxu0 %v959
        %1114 = vmatpush.bf16.msra.mxu0 %v955
        %1115 = vmatpush.bf16.msra.mxu0 %v951
        %1116 = vmatpush.bf16.msra.mxu0 %v947
        %1117 = vmatpush.bf16.msra.mxu0 %v943
        %1118 = vmatpush.bf16.msra.mxu0 %v939
        %1119 = vmatpush.bf16.msra.mxu0 %v935
        %1120 = vmatpush.bf16.msra.mxu0 %v931
        %1121 = vmatmul.bf16.gmra.mxu0 %v691
        %v1122 = vpop.f32.mrf.mxu0
        %v1123 = vadd.f32 %v1094, %v1122
        %v1124 = vpop.f32.mrf.mxu0
        %v1125 = vadd.f32 %v1096, %v1124
        %1126 = vmatmul.bf16.gmra.mxu0 %v693
        %v1127 = vpop.f32.mrf.mxu0
        %v1128 = vadd.f32 %v1099, %v1127
        %v1129 = vpop.f32.mrf.mxu0
        %v1130 = vadd.f32 %v1101, %v1129
        %1131 = vmatmul.bf16.gmra.mxu0 %v695
        %v1132 = vpop.f32.mrf.mxu0
        %v1133 = vadd.f32 %v1104, %v1132
        %v1134 = vpop.f32.mrf.mxu0
        %v1135 = vadd.f32 %v1106, %v1134
        %1136 = vmatmul.bf16.gmra.mxu0 %v697
        %v1137 = vpop.f32.mrf.mxu0
        %v1138 = vadd.f32 %v1109, %v1137
        %v1139 = vpop.f32.mrf.mxu0
        %v1140 = vadd.f32 %v1111, %v1139
        %1141 = vdwg.mxu0
        %1142 = vmatpush.bf16.msra.mxu0 %v928
        %1143 = vmatpush.bf16.msra.mxu0 %v924
        %1144 = vmatpush.bf16.msra.mxu0 %v920
        %1145 = vmatpush.bf16.msra.mxu0 %v916
        %1146 = vmatpush.bf16.msra.mxu0 %v912
        %1147 = vmatpush.bf16.msra.mxu0 %v908
        %1148 = vmatpush.bf16.msra.mxu0 %v904
        %1149 = vmatpush.bf16.msra.mxu0 %v900
        %1150 = vmatmul.bf16.gmra.mxu0 %v690
        %v1151 = vpop.f32.mrf.mxu0
        %v1152 = vadd.f32 0.0, %v1151
        %v1153 = vpop.f32.mrf.mxu0
        %v1154 = vadd.f32 0.0, %v1153
        %1155 = vmatmul.bf16.gmra.mxu0 %v692
        %v1156 = vpop.f32.mrf.mxu0
        %v1157 = vadd.f32 0.0, %v1156
        %v1158 = vpop.f32.mrf.mxu0
        %v1159 = vadd.f32 0.0, %v1158
        %1160 = vmatmul.bf16.gmra.mxu0 %v694
        %v1161 = vpop.f32.mrf.mxu0
        %v1162 = vadd.f32 0.0, %v1161
        %v1163 = vpop.f32.mrf.mxu0
        %v1164 = vadd.f32 0.0, %v1163
        %1165 = vmatmul.bf16.gmra.mxu0 %v696
        %v1166 = vpop.f32.mrf.mxu0
        %v1167 = vadd.f32 0.0, %v1166
        %v1168 = vpop.f32.mrf.mxu0
        %v1169 = vadd.f32 0.0, %v1168
        %1170 = vdwg.mxu0
        %1171 = vmatpush.bf16.msra.mxu0 %v960
        %1172 = vmatpush.bf16.msra.mxu0 %v956
        %1173 = vmatpush.bf16.msra.mxu0 %v952
        %1174 = vmatpush.bf16.msra.mxu0 %v948
        %1175 = vmatpush.bf16.msra.mxu0 %v944
        %1176 = vmatpush.bf16.msra.mxu0 %v940
        %1177 = vmatpush.bf16.msra.mxu0 %v936
        %1178 = vmatpush.bf16.msra.mxu0 %v932
        %1179 = vmatmul.bf16.gmra.mxu0 %v691
        %v1180 = vpop.f32.mrf.mxu0
        %v1181 = vadd.f32 %v1152, %v1180
        %v1182 = vpop.f32.mrf.mxu0
        %v1183 = vadd.f32 %v1154, %v1182
        %1184 = vmatmul.bf16.gmra.mxu0 %v693
        %v1185 = vpop.f32.mrf.mxu0
        %v1186 = vadd.f32 %v1157, %v1185
        %v1187 = vpop.f32.mrf.mxu0
        %v1188 = vadd.f32 %v1159, %v1187
        %1189 = vmatmul.bf16.gmra.mxu0 %v695
        %v1190 = vpop.f32.mrf.mxu0
        %v1191 = vadd.f32 %v1162, %v1190
        %v1192 = vpop.f32.mrf.mxu0
        %v1193 = vadd.f32 %v1164, %v1192
        %1194 = vmatmul.bf16.gmra.mxu0 %v697
        %v1195 = vpop.f32.mrf.mxu0
        %v1196 = vadd.f32 %v1167, %v1195
        %v1197 = vpop.f32.mrf.mxu0
        %v1198 = vadd.f32 %v1169, %v1197
        %1199 = vdwg.mxu0
        %1200 = vmatpush.bf16.msra.mxu0 %v929
        %1201 = vmatpush.bf16.msra.mxu0 %v925
        %1202 = vmatpush.bf16.msra.mxu0 %v921
        %1203 = vmatpush.bf16.msra.mxu0 %v917
        %1204 = vmatpush.bf16.msra.mxu0 %v913
        %1205 = vmatpush.bf16.msra.mxu0 %v909
        %1206 = vmatpush.bf16.msra.mxu0 %v905
        %1207 = vmatpush.bf16.msra.mxu0 %v901
        %1208 = vmatmul.bf16.gmra.mxu0 %v690
        %v1209 = vpop.f32.mrf.mxu0
        %v1210 = vadd.f32 0.0, %v1209
        %v1211 = vpop.f32.mrf.mxu0
        %v1212 = vadd.f32 0.0, %v1211
        %1213 = vmatmul.bf16.gmra.mxu0 %v692
        %v1214 = vpop.f32.mrf.mxu0
        %v1215 = vadd.f32 0.0, %v1214
        %v1216 = vpop.f32.mrf.mxu0
        %v1217 = vadd.f32 0.0, %v1216
        %1218 = vmatmul.bf16.gmra.mxu0 %v694
        %v1219 = vpop.f32.mrf.mxu0
        %v1220 = vadd.f32 0.0, %v1219
        %v1221 = vpop.f32.mrf.mxu0
        %v1222 = vadd.f32 0.0, %v1221
        %1223 = vmatmul.bf16.gmra.mxu0 %v696
        %v1224 = vpop.f32.mrf.mxu0
        %v1225 = vadd.f32 0.0, %v1224
        %v1226 = vpop.f32.mrf.mxu0
        %v1227 = vadd.f32 0.0, %v1226
        %1228 = vdwg.mxu0
        %1229 = vmatpush.bf16.msra.mxu0 %v961
        %1230 = vmatpush.bf16.msra.mxu0 %v957
        %1231 = vmatpush.bf16.msra.mxu0 %v953
        %1232 = vmatpush.bf16.msra.mxu0 %v949
        %1233 = vmatpush.bf16.msra.mxu0 %v945
        %1234 = vmatpush.bf16.msra.mxu0 %v941
        %1235 = vmatpush.bf16.msra.mxu0 %v937
        %1236 = vmatpush.bf16.msra.mxu0 %v933
        %1237 = vmatmul.bf16.gmra.mxu0 %v691
        %v1238 = vpop.f32.mrf.mxu0
        %v1239 = vadd.f32 %v1210, %v1238
        %v1240 = vpop.f32.mrf.mxu0
        %v1241 = vadd.f32 %v1212, %v1240
        %1242 = vmatmul.bf16.gmra.mxu0 %v693
        %v1243 = vpop.f32.mrf.mxu0
        %v1244 = vadd.f32 %v1215, %v1243
        %v1245 = vpop.f32.mrf.mxu0
        %v1246 = vadd.f32 %v1217, %v1245
        %1247 = vmatmul.bf16.gmra.mxu0 %v695
        %v1248 = vpop.f32.mrf.mxu0
        %v1249 = vadd.f32 %v1220, %v1248
        %v1250 = vpop.f32.mrf.mxu0
        %v1251 = vadd.f32 %v1222, %v1250
        %1252 = vmatmul.bf16.gmra.mxu0 %v697
        %v1253 = vpop.f32.mrf.mxu0
        %v1254 = vadd.f32 %v1225, %v1253
        %v1255 = vpop.f32.mrf.mxu0
        %v1256 = vadd.f32 %v1227, %v1255
        %1257 = vdwg.mxu0
        %v1258 = vadd.f32 %v562, %v1065
        %v1259 = vadd.f32 %v563, %v1123
        %v1260 = vadd.f32 %v564, %v1181
        %v1261 = vadd.f32 %v565, %v1239
        %v1262 = vadd.f32 %v566, %v1067
        %v1263 = vadd.f32 %v567, %v1125
        %v1264 = vadd.f32 %v568, %v1183
        %v1265 = vadd.f32 %v569, %v1241
        %v1266 = vadd.f32 %v570, %v1070
        %v1267 = vadd.f32 %v571, %v1128
        %v1268 = vadd.f32 %v572, %v1186
        %v1269 = vadd.f32 %v573, %v1244
        %v1270 = vadd.f32 %v574, %v1072
        %v1271 = vadd.f32 %v575, %v1130
        %v1272 = vadd.f32 %v576, %v1188
        %v1273 = vadd.f32 %v577, %v1246
        %v1274 = vadd.f32 %v578, %v1075
        %v1275 = vadd.f32 %v579, %v1133
        %v1276 = vadd.f32 %v580, %v1191
        %v1277 = vadd.f32 %v581, %v1249
        %v1278 = vadd.f32 %v582, %v1077
        %v1279 = vadd.f32 %v583, %v1135
        %v1280 = vadd.f32 %v584, %v1193
        %v1281 = vadd.f32 %v585, %v1251
        %v1282 = vadd.f32 %v586, %v1080
        %v1283 = vadd.f32 %v587, %v1138
        %v1284 = vadd.f32 %v588, %v1196
        %v1285 = vadd.f32 %v589, %v1254
        %v1286 = vadd.f32 %v590, %v1082
        %v1287 = vadd.f32 %v591, %v1140
        %v1288 = vadd.f32 %v592, %v1198
        %v1289 = vadd.f32 %v593, %v1256
        %1290 = vst [vmem:[#allocation2] sm:$0xff] %v1258
        %1291 = vst [vmem:[#allocation2 + $0x8] sm:$0xff] %v1259
        %1292 = vst [vmem:[#allocation2 + $0x10] sm:$0xff] %v1260
        %1293 = vst [vmem:[#allocation2 + $0x18] sm:$0xff] %v1261
        %1294 = vst [vmem:[#allocation2 + $0x20] sm:$0xff] %v1262
        %1295 = vst [vmem:[#allocation2 + $0x28] sm:$0xff] %v1263
        %1296 = vst [vmem:[#allocation2 + $0x30] sm:$0xff] %v1264
        %1297 = vst [vmem:[#allocation2 + $0x38] sm:$0xff] %v1265
        %1298 = vst [vmem:[#allocation2 + $0x40] sm:$0xff] %v1266
        %1299 = vst [vmem:[#allocation2 + $0x48] sm:$0xff] %v1267
        %1300 = vst [vmem:[#allocation2 + $0x50] sm:$0xff] %v1268
        %1301 = vst [vmem:[#allocation2 + $0x58] sm:$0xff] %v1269
        %1302 = vst [vmem:[#allocation2 + $0x60] sm:$0xff] %v1270
        %1303 = vst [vmem:[#allocation2 + $0x68] sm:$0xff] %v1271
        %1304 = vst [vmem:[#allocation2 + $0x70] sm:$0xff] %v1272
        %1305 = vst [vmem:[#allocation2 + $0x78] sm:$0xff] %v1273
        %1306 = vst [vmem:[#allocation2 + $0x80] sm:$0xff] %v1274
        %1307 = vst [vmem:[#allocation2 + $0x88] sm:$0xff] %v1275
        %1308 = vst [vmem:[#allocation2 + $0x90] sm:$0xff] %v1276
        %1309 = vst [vmem:[#allocation2 + $0x98] sm:$0xff] %v1277
        %1310 = vst [vmem:[#allocation2 + $0xa0] sm:$0xff] %v1278
        %1311 = vst [vmem:[#allocation2 + $0xa8] sm:$0xff] %v1279
        %1312 = vst [vmem:[#allocation2 + $0xb0] sm:$0xff] %v1280
        %1313 = vst [vmem:[#allocation2 + $0xb8] sm:$0xff] %v1281
        %1314 = vst [vmem:[#allocation2 + $0xc0] sm:$0xff] %v1282
        %1315 = vst [vmem:[#allocation2 + $0xc8] sm:$0xff] %v1283
        %1316 = vst [vmem:[#allocation2 + $0xd0] sm:$0xff] %v1284
        %1317 = vst [vmem:[#allocation2 + $0xd8] sm:$0xff] %v1285
        %1318 = vst [vmem:[#allocation2 + $0xe0] sm:$0xff] %v1286
        %1319 = vst [vmem:[#allocation2 + $0xe8] sm:$0xff] %v1287
        %1320 = vst [vmem:[#allocation2 + $0xf0] sm:$0xff] %v1288
        %1321 = vst [vmem:[#allocation2 + $0xf8] sm:$0xff] %v1289
        %p1322 = scmp.eq.s32.totalorder %s28, 3
        // Predicated region
        $region119: #{tpu_custom_call.1} parent=101 // pred_check
          %p1323 = pneg %p1322
        $region120: #{tpu_custom_call.1} parent=101 // pred_check_branch
          %1325 = sbr.rel (%p1323) target = $region122
        $region121: #{tpu_custom_call.1} parent=101 // pred_region
          %v1326 = vld [vmem:[#allocation2] sm:$0xff]
          %v1327 = vld [vmem:[#allocation2 + $0x8] sm:$0xff]
          %v1328 = vld [vmem:[#allocation2 + $0x10] sm:$0xff]
          %v1329 = vld [vmem:[#allocation2 + $0x18] sm:$0xff]
          %v1330 = vld [vmem:[#allocation2 + $0x20] sm:$0xff]
          %v1331 = vld [vmem:[#allocation2 + $0x28] sm:$0xff]
          %v1332 = vld [vmem:[#allocation2 + $0x30] sm:$0xff]
          %v1333 = vld [vmem:[#allocation2 + $0x38] sm:$0xff]
          %v1334 = vld [vmem:[#allocation2 + $0x40] sm:$0xff]
          %v1335 = vld [vmem:[#allocation2 + $0x48] sm:$0xff]
          %v1336 = vld [vmem:[#allocation2 + $0x50] sm:$0xff]
          %v1337 = vld [vmem:[#allocation2 + $0x58] sm:$0xff]
          %v1338 = vld [vmem:[#allocation2 + $0x60] sm:$0xff]
          %v1339 = vld [vmem:[#allocation2 + $0x68] sm:$0xff]
          %v1340 = vld [vmem:[#allocation2 + $0x70] sm:$0xff]
          %v1341 = vld [vmem:[#allocation2 + $0x78] sm:$0xff]
          %v1342 = vld [vmem:[#allocation2 + $0x80] sm:$0xff]
          %v1343 = vld [vmem:[#allocation2 + $0x88] sm:$0xff]
          %v1344 = vld [vmem:[#allocation2 + $0x90] sm:$0xff]
          %v1345 = vld [vmem:[#allocation2 + $0x98] sm:$0xff]
          %v1346 = vld [vmem:[#allocation2 + $0xa0] sm:$0xff]
          %v1347 = vld [vmem:[#allocation2 + $0xa8] sm:$0xff]
          %v1348 = vld [vmem:[#allocation2 + $0xb0] sm:$0xff]
          %v1349 = vld [vmem:[#allocation2 + $0xb8] sm:$0xff]
          %v1350 = vld [vmem:[#allocation2 + $0xc0] sm:$0xff]
          %v1351 = vld [vmem:[#allocation2 + $0xc8] sm:$0xff]
          %v1352 = vld [vmem:[#allocation2 + $0xd0] sm:$0xff]
          %v1353 = vld [vmem:[#allocation2 + $0xd8] sm:$0xff]
          %v1354 = vld [vmem:[#allocation2 + $0xe0] sm:$0xff]
          %v1355 = vld [vmem:[#allocation2 + $0xe8] sm:$0xff]
          %v1356 = vld [vmem:[#allocation2 + $0xf0] sm:$0xff]
          %v1357 = vld [vmem:[#allocation2 + $0xf8] sm:$0xff]
          %v1358 = vld [vmem:[%s2] sm:$0xf]
          %v1360 = vperm.slane %v1358, 0
          %v1361 = vperm.slane %v1358, 1
          %v1362 = vperm.slane %v1358, 2
          %v1363 = vperm.slane %v1358, 3
          %v1368 = vadd.f32 %v1326, %v1360
          %v1369 = vadd.f32 %v1327, %v1361
          %v1370 = vadd.f32 %v1328, %v1362
          %v1371 = vadd.f32 %v1329, %v1363
          %v1372 = vadd.f32 %v1330, %v1360
          %v1373 = vadd.f32 %v1331, %v1361
          %v1374 = vadd.f32 %v1332, %v1362
          %v1375 = vadd.f32 %v1333, %v1363
          %v1376 = vadd.f32 %v1334, %v1360
          %v1377 = vadd.f32 %v1335, %v1361
          %v1378 = vadd.f32 %v1336, %v1362
          %v1379 = vadd.f32 %v1337, %v1363
          %v1380 = vadd.f32 %v1338, %v1360
          %v1381 = vadd.f32 %v1339, %v1361
          %v1382 = vadd.f32 %v1340, %v1362
          %v1383 = vadd.f32 %v1341, %v1363
          %v1384 = vadd.f32 %v1342, %v1360
          %v1385 = vadd.f32 %v1343, %v1361
          %v1386 = vadd.f32 %v1344, %v1362
          %v1387 = vadd.f32 %v1345, %v1363
          %v1388 = vadd.f32 %v1346, %v1360
          %v1389 = vadd.f32 %v1347, %v1361
          %v1390 = vadd.f32 %v1348, %v1362
          %v1391 = vadd.f32 %v1349, %v1363
          %v1392 = vadd.f32 %v1350, %v1360
          %v1393 = vadd.f32 %v1351, %v1361
          %v1394 = vadd.f32 %v1352, %v1362
          %v1395 = vadd.f32 %v1353, %v1363
          %v1396 = vadd.f32 %v1354, %v1360
          %v1397 = vadd.f32 %v1355, %v1361
          %v1398 = vadd.f32 %v1356, %v1362
          %v1399 = vadd.f32 %v1357, %v1363
          %v1400 = vmul.f32 %v1368, %v1368
          %v1401 = vmul.f32 %v1369, %v1369
          %v1402 = vmul.f32 %v1370, %v1370
          %v1403 = vmul.f32 %v1371, %v1371
          %v1404 = vmul.f32 %v1372, %v1372
          %v1405 = vmul.f32 %v1373, %v1373
          %v1406 = vmul.f32 %v1374, %v1374
          %v1407 = vmul.f32 %v1375, %v1375
          %v1408 = vmul.f32 %v1376, %v1376
          %v1409 = vmul.f32 %v1377, %v1377
          %v1410 = vmul.f32 %v1378, %v1378
          %v1411 = vmul.f32 %v1379, %v1379
          %v1412 = vmul.f32 %v1380, %v1380
          %v1413 = vmul.f32 %v1381, %v1381
          %v1414 = vmul.f32 %v1382, %v1382
          %v1415 = vmul.f32 %v1383, %v1383
          %v1416 = vmul.f32 %v1384, %v1384
          %v1417 = vmul.f32 %v1385, %v1385
          %v1418 = vmul.f32 %v1386, %v1386
          %v1419 = vmul.f32 %v1387, %v1387
          %v1420 = vmul.f32 %v1388, %v1388
          %v1421 = vmul.f32 %v1389, %v1389
          %v1422 = vmul.f32 %v1390, %v1390
          %v1423 = vmul.f32 %v1391, %v1391
          %v1424 = vmul.f32 %v1392, %v1392
          %v1425 = vmul.f32 %v1393, %v1393
          %v1426 = vmul.f32 %v1394, %v1394
          %v1427 = vmul.f32 %v1395, %v1395
          %v1428 = vmul.f32 %v1396, %v1396
          %v1429 = vmul.f32 %v1397, %v1397
          %v1430 = vmul.f32 %v1398, %v1398
          %v1431 = vmul.f32 %v1399, %v1399
          %v1432 = vadd.f32 %v1400, %v1401
          %v1433 = vadd.f32 %v1432, %v1402
          %v1434 = vadd.f32 %v1433, %v1403
          %v1435 = vadd.f32 %v1434, %v1404
          %v1436 = vadd.f32 %v1435, %v1405
          %v1437 = vadd.f32 %v1436, %v1406
          %v1438 = vadd.f32 %v1437, %v1407
          %v1439 = vadd.f32 %v1438, %v1408
          %v1440 = vadd.f32 %v1439, %v1409
          %v1441 = vadd.f32 %v1440, %v1410
          %v1442 = vadd.f32 %v1441, %v1411
          %v1443 = vadd.f32 %v1442, %v1412
          %v1444 = vadd.f32 %v1443, %v1413
          %v1445 = vadd.f32 %v1444, %v1414
          %v1446 = vadd.f32 %v1445, %v1415
          %v1447 = vadd.f32 %v1446, %v1416
          %v1448 = vadd.f32 %v1447, %v1417
          %v1449 = vadd.f32 %v1448, %v1418
          %v1450 = vadd.f32 %v1449, %v1419
          %v1451 = vadd.f32 %v1450, %v1420
          %v1452 = vadd.f32 %v1451, %v1421
          %v1453 = vadd.f32 %v1452, %v1422
          %v1454 = vadd.f32 %v1453, %v1423
          %v1455 = vadd.f32 %v1454, %v1424
          %v1456 = vadd.f32 %v1455, %v1425
          %v1457 = vadd.f32 %v1456, %v1426
          %v1458 = vadd.f32 %v1457, %v1427
          %v1459 = vadd.f32 %v1458, %v1428
          %v1460 = vadd.f32 %v1459, %v1429
          %v1461 = vadd.f32 %v1460, %v1430
          %v1462 = vadd.f32 %v1461, %v1431
          %1463 = vadd.xlane.f32.xlu0 %v1462
          %v1464 = vpop.xlane.xlu0 %1463
          %v1465 = vrot.slane %v1464, 4
          %v1466 = vadd.f32 %v1464, %v1465
          %v1467 = vrot.slane %v1466, 2
          %v1468 = vadd.f32 %v1466, %v1467
          %v1469 = vrot.slane %v1468, 1
          %v1470 = vadd.f32 %v1468, %v1469
          %s1471 = vtos %v1470
          %s1472 = sadd.f32 %s1471, 1e-05
          %v1473 = vstv %s1472
          %v1474 = vrsqrt.pop %v1473
          %v1475 = vmul.f32 %v1474, %v1473
          %v1476 = vmul.f32 %v1475, %v1474
          %v1477 = vmul.f32 0.5, %v1476
          %v1478 = vsub.f32 1.5, %v1477
          %v1479 = vmul.f32 %v1474, %v1478
          %v1480 = vmul.f32 %v1473, %v1479
          %vm1481 = vcmp.eq.f32.partialorder %v1473, inf
          %v1482 = vsel %vm1481, %v1473, %v1480
          %vm1483 = vcmp.eq.f32.partialorder %v1473, 0.0
          %v1484 = vand.u32 %v1473, 2147483648
          %v1485 = vsel %vm1483, %v1484, %v1482
          %s1486 = vtos %v1485
          %v1487 = vld [vmem:[%s3] sm:$0xf]
          %v1488 = vstv %s1486
          %v1489 = vmul.f32 %v1488, %v1487
          %v1490 = vld [vmem:[%s4] sm:$0xf]
          %v1491 = vmul.f32 %v1489, %v1489
          %v1493 = vperm.slane %v1491, 0
          %v1494 = vperm.slane %v1491, 1
          %v1495 = vperm.slane %v1491, 2
          %v1496 = vperm.slane %v1491, 3
          %vm1501 = vcmask 1040384
          %v1502 = vsel %vm1501, %v1493, 0.0
          %v1503 = vsel %vm1501, %v1494, 0.0
          %v1504 = vadd.f32 %v1502, %v1503
          %v1505 = vsel %vm1501, %v1495, 0.0
          %v1506 = vadd.f32 %v1504, %v1505
          %v1507 = vsel %vm1501, %v1496, 0.0
          %v1508 = vadd.f32 %v1506, %v1507
          %1509 = vadd.xlane.f32.xlu0 %v1508
          %v1510 = vpop.xlane.xlu0 %1509
          %v1511 = vrot.slane %v1510, 4
          %v1512 = vadd.f32 %v1510, %v1511
          %v1513 = vrot.slane %v1512, 2
          %v1514 = vadd.f32 %v1512, %v1513
          %v1515 = vrot.slane %v1514, 1
          %v1516 = vadd.f32 %v1514, %v1515
          %s1517 = vtos %v1516
          %v1518 = vrcp.pop 512.0
          %v1519 = vmul.f32 512.0, %v1518
          %v1520 = vsub.f32 1.0, %v1519
          %v1521 = vmul.f32 %v1518, %v1520
          %v1522 = vadd.f32 %v1518, %v1521
          %vm1523 = vweird.f32 %v1518
          %v1524 = vsel %vm1523, %v1518, %v1522
          %s1525 = vtos %v1524
          %s1526 = smul.f32 %s1517, %s1525
          %s1527 = sadd.f32 %s1526, 1e-05
          %v1528 = vstv %s1527
          %v1529 = vrsqrt.pop %v1528
          %v1530 = vmul.f32 %v1529, %v1528
          %v1531 = vmul.f32 %v1530, %v1529
          %v1532 = vmul.f32 0.5, %v1531
          %v1533 = vsub.f32 1.5, %v1532
          %v1534 = vmul.f32 %v1529, %v1533
          %vm1535 = vweird.f32 %v1528
          %vm1536 = vweird.f32 %v1529
          %vm1537 = vmor %vm1535, %vm1536
          %v1538 = vsel %vm1537, %v1529, %v1534
          %s1539 = vtos %v1538
          %v1540 = vstv %s1539
          %v1541 = vmul.f32 %v1490, %v1540
          %v1542 = vmul.f32 %v1489, %v1541
          %v1543 = vld [vmem:[%s5] sm:$0xf]
          %v1544 = vadd.f32 %v1542, %v1543
          %v1545 = vtanh.pop %v1544
          %v1546 = vadd.f32 %v1545, 1.0
          %v1548 = vperm.slane %v1546, 0
          %v1549 = vperm.slane %v1546, 1
          %v1550 = vperm.slane %v1546, 2
          %v1551 = vperm.slane %v1546, 3
          %v1556 = vmul.f32 %v1368, %v1548
          %v1557 = vmul.f32 %v1369, %v1549
          %v1558 = vmul.f32 %v1370, %v1550
          %v1559 = vmul.f32 %v1371, %v1551
          %v1560 = vmul.f32 %v1372, %v1548
          %v1561 = vmul.f32 %v1373, %v1549
          %v1562 = vmul.f32 %v1374, %v1550
          %v1563 = vmul.f32 %v1375, %v1551
          %v1564 = vmul.f32 %v1376, %v1548
          %v1565 = vmul.f32 %v1377, %v1549
          %v1566 = vmul.f32 %v1378, %v1550
          %v1567 = vmul.f32 %v1379, %v1551
          %v1568 = vmul.f32 %v1380, %v1548
          %v1569 = vmul.f32 %v1381, %v1549
          %v1570 = vmul.f32 %v1382, %v1550
          %v1571 = vmul.f32 %v1383, %v1551
          %v1572 = vmul.f32 %v1384, %v1548
          %v1573 = vmul.f32 %v1385, %v1549
          %v1574 = vmul.f32 %v1386, %v1550
          %v1575 = vmul.f32 %v1387, %v1551
          %v1576 = vmul.f32 %v1388, %v1548
          %v1577 = vmul.f32 %v1389, %v1549
          %v1578 = vmul.f32 %v1390, %v1550
          %v1579 = vmul.f32 %v1391, %v1551
          %v1580 = vmul.f32 %v1392, %v1548
          %v1581 = vmul.f32 %v1393, %v1549
          %v1582 = vmul.f32 %v1394, %v1550
          %v1583 = vmul.f32 %v1395, %v1551
          %v1584 = vmul.f32 %v1396, %v1548
          %v1585 = vmul.f32 %v1397, %v1549
          %v1586 = vmul.f32 %v1398, %v1550
          %v1587 = vmul.f32 %v1399, %v1551
          %v1588 = vmax.f32 %v1556, 0.0
          %v1589 = vmax.f32 %v1557, 0.0
          %v1590 = vmax.f32 %v1558, 0.0
          %v1591 = vmax.f32 %v1559, 0.0
          %v1592 = vmax.f32 %v1560, 0.0
          %v1593 = vmax.f32 %v1561, 0.0
          %v1594 = vmax.f32 %v1562, 0.0
          %v1595 = vmax.f32 %v1563, 0.0
          %v1596 = vmax.f32 %v1564, 0.0
          %v1597 = vmax.f32 %v1565, 0.0
          %v1598 = vmax.f32 %v1566, 0.0
          %v1599 = vmax.f32 %v1567, 0.0
          %v1600 = vmax.f32 %v1568, 0.0
          %v1601 = vmax.f32 %v1569, 0.0
          %v1602 = vmax.f32 %v1570, 0.0
          %v1603 = vmax.f32 %v1571, 0.0
          %v1604 = vmax.f32 %v1572, 0.0
          %v1605 = vmax.f32 %v1573, 0.0
          %v1606 = vmax.f32 %v1574, 0.0
          %v1607 = vmax.f32 %v1575, 0.0
          %v1608 = vmax.f32 %v1576, 0.0
          %v1609 = vmax.f32 %v1577, 0.0
          %v1610 = vmax.f32 %v1578, 0.0
          %v1611 = vmax.f32 %v1579, 0.0
          %v1612 = vmax.f32 %v1580, 0.0
          %v1613 = vmax.f32 %v1581, 0.0
          %v1614 = vmax.f32 %v1582, 0.0
          %v1615 = vmax.f32 %v1583, 0.0
          %v1616 = vmax.f32 %v1584, 0.0
          %v1617 = vmax.f32 %v1585, 0.0
          %v1618 = vmax.f32 %v1586, 0.0
          %v1619 = vmax.f32 %v1587, 0.0
          %v1620 = vpack.c.bf16 %v1592, %v1588
          %v1621 = vpack.c.bf16 %v1593, %v1589
          %v1622 = vpack.c.bf16 %v1594, %v1590
          %v1623 = vpack.c.bf16 %v1595, %v1591
          %v1624 = vpack.c.bf16 %v1600, %v1596
          %v1625 = vpack.c.bf16 %v1601, %v1597
          %v1626 = vpack.c.bf16 %v1602, %v1598
          %v1627 = vpack.c.bf16 %v1603, %v1599
          %v1628 = vpack.c.bf16 %v1608, %v1604
          %v1629 = vpack.c.bf16 %v1609, %v1605
          %v1630 = vpack.c.bf16 %v1610, %v1606
          %v1631 = vpack.c.bf16 %v1611, %v1607
          %v1632 = vpack.c.bf16 %v1616, %v1612
          %v1633 = vpack.c.bf16 %v1617, %v1613
          %v1634 = vpack.c.bf16 %v1618, %v1614
          %v1635 = vpack.c.bf16 %v1619, %v1615
          %v1636 = vld [vmem:[#allocation7] sm:$0xff]
          %v1637 = vld [vmem:[#allocation7 + $0x8] sm:$0xff]
          %v1638 = vld [vmem:[#allocation7 + $0x10] sm:$0xff]
          %v1639 = vld [vmem:[#allocation7 + $0x18] sm:$0xff]
          %v1640 = vld [vmem:[#allocation7 + $0x20] sm:$0xff]
          %v1641 = vld [vmem:[#allocation7 + $0x28] sm:$0xff]
          %v1642 = vld [vmem:[#allocation7 + $0x30] sm:$0xff]
          %v1643 = vld [vmem:[#allocation7 + $0x38] sm:$0xff]
          %v1644 = vld [vmem:[#allocation7 + $0x40] sm:$0xff]
          %v1645 = vld [vmem:[#allocation7 + $0x48] sm:$0xff]
          %v1646 = vld [vmem:[#allocation7 + $0x50] sm:$0xff]
          %v1647 = vld [vmem:[#allocation7 + $0x58] sm:$0xff]
          %v1648 = vld [vmem:[#allocation7 + $0x60] sm:$0xff]
          %v1649 = vld [vmem:[#allocation7 + $0x68] sm:$0xff]
          %v1650 = vld [vmem:[#allocation7 + $0x70] sm:$0xff]
          %v1651 = vld [vmem:[#allocation7 + $0x78] sm:$0xff]
          %v1652 = vld [vmem:[#allocation7 + $0x80] sm:$0xff]
          %v1653 = vld [vmem:[#allocation7 + $0x88] sm:$0xff]
          %v1654 = vld [vmem:[#allocation7 + $0x90] sm:$0xff]
          %v1655 = vld [vmem:[#allocation7 + $0x98] sm:$0xff]
          %v1656 = vld [vmem:[#allocation7 + $0xa0] sm:$0xff]
          %v1657 = vld [vmem:[#allocation7 + $0xa8] sm:$0xff]
          %v1658 = vld [vmem:[#allocation7 + $0xb0] sm:$0xff]
          %v1659 = vld [vmem:[#allocation7 + $0xb8] sm:$0xff]
          %v1660 = vld [vmem:[#allocation7 + $0xc0] sm:$0xff]
          %v1661 = vld [vmem:[#allocation7 + $0xc8] sm:$0xff]
          %v1662 = vld [vmem:[#allocation7 + $0xd0] sm:$0xff]
          %v1663 = vld [vmem:[#allocation7 + $0xd8] sm:$0xff]
          %v1664 = vld [vmem:[#allocation7 + $0xe0] sm:$0xff]
          %v1665 = vld [vmem:[#allocation7 + $0xe8] sm:$0xff]
          %v1666 = vld [vmem:[#allocation7 + $0xf0] sm:$0xff]
          %v1667 = vld [vmem:[#allocation7 + $0xf8] sm:$0xff]
          %v1668 = vld [vmem:[#allocation7 + $0x100] sm:$0xff]
          %v1669 = vld [vmem:[#allocation7 + $0x108] sm:$0xff]
          %v1670 = vld [vmem:[#allocation7 + $0x110] sm:$0xff]
          %v1671 = vld [vmem:[#allocation7 + $0x118] sm:$0xff]
          %v1672 = vld [vmem:[#allocation7 + $0x120] sm:$0xff]
          %v1673 = vld [vmem:[#allocation7 + $0x128] sm:$0xff]
          %v1674 = vld [vmem:[#allocation7 + $0x130] sm:$0xff]
          %v1675 = vld [vmem:[#allocation7 + $0x138] sm:$0xff]
          %v1676 = vld [vmem:[#allocation7 + $0x140] sm:$0xff]
          %v1677 = vld [vmem:[#allocation7 + $0x148] sm:$0xff]
          %v1678 = vld [vmem:[#allocation7 + $0x150] sm:$0xff]
          %v1679 = vld [vmem:[#allocation7 + $0x158] sm:$0xff]
          %v1680 = vld [vmem:[#allocation7 + $0x160] sm:$0xff]
          %v1681 = vld [vmem:[#allocation7 + $0x168] sm:$0xff]
          %v1682 = vld [vmem:[#allocation7 + $0x170] sm:$0xff]
          %v1683 = vld [vmem:[#allocation7 + $0x178] sm:$0xff]
          %v1684 = vld [vmem:[#allocation7 + $0x180] sm:$0xff]
          %v1685 = vld [vmem:[#allocation7 + $0x188] sm:$0xff]
          %v1686 = vld [vmem:[#allocation7 + $0x190] sm:$0xff]
          %v1687 = vld [vmem:[#allocation7 + $0x198] sm:$0xff]
          %v1688 = vld [vmem:[#allocation7 + $0x1a0] sm:$0xff]
          %v1689 = vld [vmem:[#allocation7 + $0x1a8] sm:$0xff]
          %v1690 = vld [vmem:[#allocation7 + $0x1b0] sm:$0xff]
          %v1691 = vld [vmem:[#allocation7 + $0x1b8] sm:$0xff]
          %v1692 = vld [vmem:[#allocation7 + $0x1c0] sm:$0xff]
          %v1693 = vld [vmem:[#allocation7 + $0x1c8] sm:$0xff]
          %v1694 = vld [vmem:[#allocation7 + $0x1d0] sm:$0xff]
          %v1695 = vld [vmem:[#allocation7 + $0x1d8] sm:$0xff]
          %v1696 = vld [vmem:[#allocation7 + $0x1e0] sm:$0xff]
          %v1697 = vld [vmem:[#allocation7 + $0x1e8] sm:$0xff]
          %v1698 = vld [vmem:[#allocation7 + $0x1f0] sm:$0xff]
          %v1699 = vld [vmem:[#allocation7 + $0x1f8] sm:$0xff]
          %v1700 = vld [vmem:[#allocation7 + $0x200] sm:$0xff]
          %v1701 = vld [vmem:[#allocation7 + $0x208] sm:$0xff]
          %v1702 = vld [vmem:[#allocation7 + $0x210] sm:$0xff]
          %v1703 = vld [vmem:[#allocation7 + $0x218] sm:$0xff]
          %v1704 = vld [vmem:[#allocation7 + $0x220] sm:$0xff]
          %v1705 = vld [vmem:[#allocation7 + $0x228] sm:$0xff]
          %v1706 = vld [vmem:[#allocation7 + $0x230] sm:$0xff]
          %v1707 = vld [vmem:[#allocation7 + $0x238] sm:$0xff]
          %v1708 = vld [vmem:[#allocation7 + $0x240] sm:$0xff]
          %v1709 = vld [vmem:[#allocation7 + $0x248] sm:$0xff]
          %v1710 = vld [vmem:[#allocation7 + $0x250] sm:$0xff]
          %v1711 = vld [vmem:[#allocation7 + $0x258] sm:$0xff]
          %v1712 = vld [vmem:[#allocation7 + $0x260] sm:$0xff]
          %v1713 = vld [vmem:[#allocation7 + $0x268] sm:$0xff]
          %v1714 = vld [vmem:[#allocation7 + $0x270] sm:$0xff]
          %v1715 = vld [vmem:[#allocation7 + $0x278] sm:$0xff]
          %v1716 = vld [vmem:[#allocation7 + $0x280] sm:$0xff]
          %v1717 = vld [vmem:[#allocation7 + $0x288] sm:$0xff]
          %v1718 = vld [vmem:[#allocation7 + $0x290] sm:$0xff]
          %v1719 = vld [vmem:[#allocation7 + $0x298] sm:$0xff]
          %v1720 = vld [vmem:[#allocation7 + $0x2a0] sm:$0xff]
          %v1721 = vld [vmem:[#allocation7 + $0x2a8] sm:$0xff]
          %v1722 = vld [vmem:[#allocation7 + $0x2b0] sm:$0xff]
          %v1723 = vld [vmem:[#allocation7 + $0x2b8] sm:$0xff]
          %v1724 = vld [vmem:[#allocation7 + $0x2c0] sm:$0xff]
          %v1725 = vld [vmem:[#allocation7 + $0x2c8] sm:$0xff]
          %v1726 = vld [vmem:[#allocation7 + $0x2d0] sm:$0xff]
          %v1727 = vld [vmem:[#allocation7 + $0x2d8] sm:$0xff]
          %v1728 = vld [vmem:[#allocation7 + $0x2e0] sm:$0xff]
          %v1729 = vld [vmem:[#allocation7 + $0x2e8] sm:$0xff]
          %v1730 = vld [vmem:[#allocation7 + $0x2f0] sm:$0xff]
          %v1731 = vld [vmem:[#allocation7 + $0x2f8] sm:$0xff]
          %v1732 = vld [vmem:[#allocation7 + $0x300] sm:$0xff]
          %v1733 = vld [vmem:[#allocation7 + $0x308] sm:$0xff]
          %v1734 = vld [vmem:[#allocation7 + $0x310] sm:$0xff]
          %v1735 = vld [vmem:[#allocation7 + $0x318] sm:$0xff]
          %v1736 = vld [vmem:[#allocation7 + $0x320] sm:$0xff]
          %v1737 = vld [vmem:[#allocation7 + $0x328] sm:$0xff]
          %v1738 = vld [vmem:[#allocation7 + $0x330] sm:$0xff]
          %v1739 = vld [vmem:[#allocation7 + $0x338] sm:$0xff]
          %v1740 = vld [vmem:[#allocation7 + $0x340] sm:$0xff]
          %v1741 = vld [vmem:[#allocation7 + $0x348] sm:$0xff]
          %v1742 = vld [vmem:[#allocation7 + $0x350] sm:$0xff]
          %v1743 = vld [vmem:[#allocation7 + $0x358] sm:$0xff]
          %v1744 = vld [vmem:[#allocation7 + $0x360] sm:$0xff]
          %v1745 = vld [vmem:[#allocation7 + $0x368] sm:$0xff]
          %v1746 = vld [vmem:[#allocation7 + $0x370] sm:$0xff]
          %v1747 = vld [vmem:[#allocation7 + $0x378] sm:$0xff]
          %v1748 = vld [vmem:[#allocation7 + $0x380] sm:$0xff]
          %v1749 = vld [vmem:[#allocation7 + $0x388] sm:$0xff]
          %v1750 = vld [vmem:[#allocation7 + $0x390] sm:$0xff]
          %v1751 = vld [vmem:[#allocation7 + $0x398] sm:$0xff]
          %v1752 = vld [vmem:[#allocation7 + $0x3a0] sm:$0xff]
          %v1753 = vld [vmem:[#allocation7 + $0x3a8] sm:$0xff]
          %v1754 = vld [vmem:[#allocation7 + $0x3b0] sm:$0xff]
          %v1755 = vld [vmem:[#allocation7 + $0x3b8] sm:$0xff]
          %v1756 = vld [vmem:[#allocation7 + $0x3c0] sm:$0xff]
          %v1757 = vld [vmem:[#allocation7 + $0x3c8] sm:$0xff]
          %v1758 = vld [vmem:[#allocation7 + $0x3d0] sm:$0xff]
          %v1759 = vld [vmem:[#allocation7 + $0x3d8] sm:$0xff]
          %v1760 = vld [vmem:[#allocation7 + $0x3e0] sm:$0xff]
          %v1761 = vld [vmem:[#allocation7 + $0x3e8] sm:$0xff]
          %v1762 = vld [vmem:[#allocation7 + $0x3f0] sm:$0xff]
          %v1763 = vld [vmem:[#allocation7 + $0x3f8] sm:$0xff]
          %v1764 = vld [vmem:[%s7] sm:$0xf]
          %v1766 = vperm.slane %v1764, 0
          %v1767 = vperm.slane %v1764, 1
          %v1768 = vperm.slane %v1764, 2
          %v1769 = vperm.slane %v1764, 3
          %v1902 = vunpack.c.l.b16 %v1636
          %v1903 = vunpack.c.h.b16 %v1636
          %v1904 = vunpack.c.l.b16 %v1637
          %v1905 = vunpack.c.h.b16 %v1637
          %v1906 = vunpack.c.l.b16 %v1638
          %v1907 = vunpack.c.h.b16 %v1638
          %v1908 = vunpack.c.l.b16 %v1639
          %v1909 = vunpack.c.h.b16 %v1639
          %v1910 = vunpack.c.l.b16 %v1640
          %v1911 = vunpack.c.h.b16 %v1640
          %v1912 = vunpack.c.l.b16 %v1641
          %v1913 = vunpack.c.h.b16 %v1641
          %v1914 = vunpack.c.l.b16 %v1642
          %v1915 = vunpack.c.h.b16 %v1642
          %v1916 = vunpack.c.l.b16 %v1643
          %v1917 = vunpack.c.h.b16 %v1643
          %v1918 = vunpack.c.l.b16 %v1644
          %v1919 = vunpack.c.h.b16 %v1644
          %v1920 = vunpack.c.l.b16 %v1645
          %v1921 = vunpack.c.h.b16 %v1645
          %v1922 = vunpack.c.l.b16 %v1646
          %v1923 = vunpack.c.h.b16 %v1646
          %v1924 = vunpack.c.l.b16 %v1647
          %v1925 = vunpack.c.h.b16 %v1647
          %v1926 = vunpack.c.l.b16 %v1648
          %v1927 = vunpack.c.h.b16 %v1648
          %v1928 = vunpack.c.l.b16 %v1649
          %v1929 = vunpack.c.h.b16 %v1649
          %v1930 = vunpack.c.l.b16 %v1650
          %v1931 = vunpack.c.h.b16 %v1650
          %v1932 = vunpack.c.l.b16 %v1651
          %v1933 = vunpack.c.h.b16 %v1651
          %v1934 = vunpack.c.l.b16 %v1652
          %v1935 = vunpack.c.h.b16 %v1652
          %v1936 = vunpack.c.l.b16 %v1653
          %v1937 = vunpack.c.h.b16 %v1653
          %v1938 = vunpack.c.l.b16 %v1654
          %v1939 = vunpack.c.h.b16 %v1654
          %v1940 = vunpack.c.l.b16 %v1655
          %v1941 = vunpack.c.h.b16 %v1655
          %v1942 = vunpack.c.l.b16 %v1656
          %v1943 = vunpack.c.h.b16 %v1656
          %v1944 = vunpack.c.l.b16 %v1657
          %v1945 = vunpack.c.h.b16 %v1657
          %v1946 = vunpack.c.l.b16 %v1658
          %v1947 = vunpack.c.h.b16 %v1658
          %v1948 = vunpack.c.l.b16 %v1659
          %v1949 = vunpack.c.h.b16 %v1659
          %v1950 = vunpack.c.l.b16 %v1660
          %v1951 = vunpack.c.h.b16 %v1660
          %v1952 = vunpack.c.l.b16 %v1661
          %v1953 = vunpack.c.h.b16 %v1661
          %v1954 = vunpack.c.l.b16 %v1662
          %v1955 = vunpack.c.h.b16 %v1662
          %v1956 = vunpack.c.l.b16 %v1663
          %v1957 = vunpack.c.h.b16 %v1663
          %v1958 = vunpack.c.l.b16 %v1664
          %v1959 = vunpack.c.h.b16 %v1664
          %v1960 = vunpack.c.l.b16 %v1665
          %v1961 = vunpack.c.h.b16 %v1665
          %v1962 = vunpack.c.l.b16 %v1666
          %v1963 = vunpack.c.h.b16 %v1666
          %v1964 = vunpack.c.l.b16 %v1667
          %v1965 = vunpack.c.h.b16 %v1667
          %v1966 = vunpack.c.l.b16 %v1668
          %v1967 = vunpack.c.h.b16 %v1668
          %v1968 = vunpack.c.l.b16 %v1669
          %v1969 = vunpack.c.h.b16 %v1669
          %v1970 = vunpack.c.l.b16 %v1670
          %v1971 = vunpack.c.h.b16 %v1670
          %v1972 = vunpack.c.l.b16 %v1671
          %v1973 = vunpack.c.h.b16 %v1671
          %v1974 = vunpack.c.l.b16 %v1672
          %v1975 = vunpack.c.h.b16 %v1672
          %v1976 = vunpack.c.l.b16 %v1673
          %v1977 = vunpack.c.h.b16 %v1673
          %v1978 = vunpack.c.l.b16 %v1674
          %v1979 = vunpack.c.h.b16 %v1674
          %v1980 = vunpack.c.l.b16 %v1675
          %v1981 = vunpack.c.h.b16 %v1675
          %v1982 = vunpack.c.l.b16 %v1676
          %v1983 = vunpack.c.h.b16 %v1676
          %v1984 = vunpack.c.l.b16 %v1677
          %v1985 = vunpack.c.h.b16 %v1677
          %v1986 = vunpack.c.l.b16 %v1678
          %v1987 = vunpack.c.h.b16 %v1678
          %v1988 = vunpack.c.l.b16 %v1679
          %v1989 = vunpack.c.h.b16 %v1679
          %v1990 = vunpack.c.l.b16 %v1680
          %v1991 = vunpack.c.h.b16 %v1680
          %v1992 = vunpack.c.l.b16 %v1681
          %v1993 = vunpack.c.h.b16 %v1681
          %v1994 = vunpack.c.l.b16 %v1682
          %v1995 = vunpack.c.h.b16 %v1682
          %v1996 = vunpack.c.l.b16 %v1683
          %v1997 = vunpack.c.h.b16 %v1683
          %v1998 = vunpack.c.l.b16 %v1684
          %v1999 = vunpack.c.h.b16 %v1684
          %v2000 = vunpack.c.l.b16 %v1685
          %v2001 = vunpack.c.h.b16 %v1685
          %v2002 = vunpack.c.l.b16 %v1686
          %v2003 = vunpack.c.h.b16 %v1686
          %v2004 = vunpack.c.l.b16 %v1687
          %v2005 = vunpack.c.h.b16 %v1687
          %v2006 = vunpack.c.l.b16 %v1688
          %v2007 = vunpack.c.h.b16 %v1688
          %v2008 = vunpack.c.l.b16 %v1689
          %v2009 = vunpack.c.h.b16 %v1689
          %v2010 = vunpack.c.l.b16 %v1690
          %v2011 = vunpack.c.h.b16 %v1690
          %v2012 = vunpack.c.l.b16 %v1691
          %v2013 = vunpack.c.h.b16 %v1691
          %v2014 = vunpack.c.l.b16 %v1692
          %v2015 = vunpack.c.h.b16 %v1692
          %v2016 = vunpack.c.l.b16 %v1693
          %v2017 = vunpack.c.h.b16 %v1693
          %v2018 = vunpack.c.l.b16 %v1694
          %v2019 = vunpack.c.h.b16 %v1694
          %v2020 = vunpack.c.l.b16 %v1695
          %v2021 = vunpack.c.h.b16 %v1695
          %v2022 = vunpack.c.l.b16 %v1696
          %v2023 = vunpack.c.h.b16 %v1696
          %v2024 = vunpack.c.l.b16 %v1697
          %v2025 = vunpack.c.h.b16 %v1697
          %v2026 = vunpack.c.l.b16 %v1698
          %v2027 = vunpack.c.h.b16 %v1698
          %v2028 = vunpack.c.l.b16 %v1699
          %v2029 = vunpack.c.h.b16 %v1699
          %v2030 = vunpack.c.l.b16 %v1700
          %v2031 = vunpack.c.h.b16 %v1700
          %v2032 = vunpack.c.l.b16 %v1701
          %v2033 = vunpack.c.h.b16 %v1701
          %v2034 = vunpack.c.l.b16 %v1702
          %v2035 = vunpack.c.h.b16 %v1702
          %v2036 = vunpack.c.l.b16 %v1703
          %v2037 = vunpack.c.h.b16 %v1703
          %v2038 = vunpack.c.l.b16 %v1704
          %v2039 = vunpack.c.h.b16 %v1704
          %v2040 = vunpack.c.l.b16 %v1705
          %v2041 = vunpack.c.h.b16 %v1705
          %v2042 = vunpack.c.l.b16 %v1706
          %v2043 = vunpack.c.h.b16 %v1706
          %v2044 = vunpack.c.l.b16 %v1707
          %v2045 = vunpack.c.h.b16 %v1707
          %v2046 = vunpack.c.l.b16 %v1708
          %v2047 = vunpack.c.h.b16 %v1708
          %v2048 = vunpack.c.l.b16 %v1709
          %v2049 = vunpack.c.h.b16 %v1709
          %v2050 = vunpack.c.l.b16 %v1710
          %v2051 = vunpack.c.h.b16 %v1710
          %v2052 = vunpack.c.l.b16 %v1711
          %v2053 = vunpack.c.h.b16 %v1711
          %v2054 = vunpack.c.l.b16 %v1712
          %v2055 = vunpack.c.h.b16 %v1712
          %v2056 = vunpack.c.l.b16 %v1713
          %v2057 = vunpack.c.h.b16 %v1713
          %v2058 = vunpack.c.l.b16 %v1714
          %v2059 = vunpack.c.h.b16 %v1714
          %v2060 = vunpack.c.l.b16 %v1715
          %v2061 = vunpack.c.h.b16 %v1715
          %v2062 = vunpack.c.l.b16 %v1716
          %v2063 = vunpack.c.h.b16 %v1716
          %v2064 = vunpack.c.l.b16 %v1717
          %v2065 = vunpack.c.h.b16 %v1717
          %v2066 = vunpack.c.l.b16 %v1718
          %v2067 = vunpack.c.h.b16 %v1718
          %v2068 = vunpack.c.l.b16 %v1719
          %v2069 = vunpack.c.h.b16 %v1719
          %v2070 = vunpack.c.l.b16 %v1720
          %v2071 = vunpack.c.h.b16 %v1720
          %v2072 = vunpack.c.l.b16 %v1721
          %v2073 = vunpack.c.h.b16 %v1721
          %v2074 = vunpack.c.l.b16 %v1722
          %v2075 = vunpack.c.h.b16 %v1722
          %v2076 = vunpack.c.l.b16 %v1723
          %v2077 = vunpack.c.h.b16 %v1723
          %v2078 = vunpack.c.l.b16 %v1724
          %v2079 = vunpack.c.h.b16 %v1724
          %v2080 = vunpack.c.l.b16 %v1725
          %v2081 = vunpack.c.h.b16 %v1725
          %v2082 = vunpack.c.l.b16 %v1726
          %v2083 = vunpack.c.h.b16 %v1726
          %v2084 = vunpack.c.l.b16 %v1727
          %v2085 = vunpack.c.h.b16 %v1727
          %v2086 = vunpack.c.l.b16 %v1728
          %v2087 = vunpack.c.h.b16 %v1728
          %v2088 = vunpack.c.l.b16 %v1729
          %v2089 = vunpack.c.h.b16 %v1729
          %v2090 = vunpack.c.l.b16 %v1730
          %v2091 = vunpack.c.h.b16 %v1730
          %v2092 = vunpack.c.l.b16 %v1731
          %v2093 = vunpack.c.h.b16 %v1731
          %v2094 = vunpack.c.l.b16 %v1732
          %v2095 = vunpack.c.h.b16 %v1732
          %v2096 = vunpack.c.l.b16 %v1733
          %v2097 = vunpack.c.h.b16 %v1733
          %v2098 = vunpack.c.l.b16 %v1734
          %v2099 = vunpack.c.h.b16 %v1734
          %v2100 = vunpack.c.l.b16 %v1735
          %v2101 = vunpack.c.h.b16 %v1735
          %v2102 = vunpack.c.l.b16 %v1736
          %v2103 = vunpack.c.h.b16 %v1736
          %v2104 = vunpack.c.l.b16 %v1737
          %v2105 = vunpack.c.h.b16 %v1737
          %v2106 = vunpack.c.l.b16 %v1738
          %v2107 = vunpack.c.h.b16 %v1738
          %v2108 = vunpack.c.l.b16 %v1739
          %v2109 = vunpack.c.h.b16 %v1739
          %v2110 = vunpack.c.l.b16 %v1740
          %v2111 = vunpack.c.h.b16 %v1740
          %v2112 = vunpack.c.l.b16 %v1741
          %v2113 = vunpack.c.h.b16 %v1741
          %v2114 = vunpack.c.l.b16 %v1742
          %v2115 = vunpack.c.h.b16 %v1742
          %v2116 = vunpack.c.l.b16 %v1743
          %v2117 = vunpack.c.h.b16 %v1743
          %v2118 = vunpack.c.l.b16 %v1744
          %v2119 = vunpack.c.h.b16 %v1744
          %v2120 = vunpack.c.l.b16 %v1745
          %v2121 = vunpack.c.h.b16 %v1745
          %v2122 = vunpack.c.l.b16 %v1746
          %v2123 = vunpack.c.h.b16 %v1746
          %v2124 = vunpack.c.l.b16 %v1747
          %v2125 = vunpack.c.h.b16 %v1747
          %v2126 = vunpack.c.l.b16 %v1748
          %v2127 = vunpack.c.h.b16 %v1748
          %v2128 = vunpack.c.l.b16 %v1749
          %v2129 = vunpack.c.h.b16 %v1749
          %v2130 = vunpack.c.l.b16 %v1750
          %v2131 = vunpack.c.h.b16 %v1750
          %v2132 = vunpack.c.l.b16 %v1751
          %v2133 = vunpack.c.h.b16 %v1751
          %v2134 = vunpack.c.l.b16 %v1752
          %v2135 = vunpack.c.h.b16 %v1752
          %v2136 = vunpack.c.l.b16 %v1753
          %v2137 = vunpack.c.h.b16 %v1753
          %v2138 = vunpack.c.l.b16 %v1754
          %v2139 = vunpack.c.h.b16 %v1754
          %v2140 = vunpack.c.l.b16 %v1755
          %v2141 = vunpack.c.h.b16 %v1755
          %v2142 = vunpack.c.l.b16 %v1756
          %v2143 = vunpack.c.h.b16 %v1756
          %v2144 = vunpack.c.l.b16 %v1757
          %v2145 = vunpack.c.h.b16 %v1757
          %v2146 = vunpack.c.l.b16 %v1758
          %v2147 = vunpack.c.h.b16 %v1758
          %v2148 = vunpack.c.l.b16 %v1759
          %v2149 = vunpack.c.h.b16 %v1759
          %v2150 = vunpack.c.l.b16 %v1760
          %v2151 = vunpack.c.h.b16 %v1760
          %v2152 = vunpack.c.l.b16 %v1761
          %v2153 = vunpack.c.h.b16 %v1761
          %v2154 = vunpack.c.l.b16 %v1762
          %v2155 = vunpack.c.h.b16 %v1762
          %v2156 = vunpack.c.l.b16 %v1763
          %v2157 = vunpack.c.h.b16 %v1763
          %v2158 = vpack.c.b16 %v1906, %v1902
          %v2159 = vpack.c.b16 %v1907, %v1903
          %v2160 = vpack.c.b16 %v1908, %v1904
          %v2161 = vpack.c.b16 %v1909, %v1905
          %v2162 = vpack.c.b16 %v1914, %v1910
          %v2163 = vpack.c.b16 %v1915, %v1911
          %v2164 = vpack.c.b16 %v1916, %v1912
          %v2165 = vpack.c.b16 %v1917, %v1913
          %v2166 = vpack.c.b16 %v1922, %v1918
          %v2167 = vpack.c.b16 %v1923, %v1919
          %v2168 = vpack.c.b16 %v1924, %v1920
          %v2169 = vpack.c.b16 %v1925, %v1921
          %v2170 = vpack.c.b16 %v1930, %v1926
          %v2171 = vpack.c.b16 %v1931, %v1927
          %v2172 = vpack.c.b16 %v1932, %v1928
          %v2173 = vpack.c.b16 %v1933, %v1929
          %v2174 = vpack.c.b16 %v1938, %v1934
          %v2175 = vpack.c.b16 %v1939, %v1935
          %v2176 = vpack.c.b16 %v1940, %v1936
          %v2177 = vpack.c.b16 %v1941, %v1937
          %v2178 = vpack.c.b16 %v1946, %v1942
          %v2179 = vpack.c.b16 %v1947, %v1943
          %v2180 = vpack.c.b16 %v1948, %v1944
          %v2181 = vpack.c.b16 %v1949, %v1945
          %v2182 = vpack.c.b16 %v1954, %v1950
          %v2183 = vpack.c.b16 %v1955, %v1951
          %v2184 = vpack.c.b16 %v1956, %v1952
          %v2185 = vpack.c.b16 %v1957, %v1953
          %v2186 = vpack.c.b16 %v1962, %v1958
          %v2187 = vpack.c.b16 %v1963, %v1959
          %v2188 = vpack.c.b16 %v1964, %v1960
          %v2189 = vpack.c.b16 %v1965, %v1961
          %v2190 = vpack.c.b16 %v1970, %v1966
          %v2191 = vpack.c.b16 %v1971, %v1967
          %v2192 = vpack.c.b16 %v1972, %v1968
          %v2193 = vpack.c.b16 %v1973, %v1969
          %v2194 = vpack.c.b16 %v1978, %v1974
          %v2195 = vpack.c.b16 %v1979, %v1975
          %v2196 = vpack.c.b16 %v1980, %v1976
          %v2197 = vpack.c.b16 %v1981, %v1977
          %v2198 = vpack.c.b16 %v1986, %v1982
          %v2199 = vpack.c.b16 %v1987, %v1983
          %v2200 = vpack.c.b16 %v1988, %v1984
          %v2201 = vpack.c.b16 %v1989, %v1985
          %v2202 = vpack.c.b16 %v1994, %v1990
          %v2203 = vpack.c.b16 %v1995, %v1991
          %v2204 = vpack.c.b16 %v1996, %v1992
          %v2205 = vpack.c.b16 %v1997, %v1993
          %v2206 = vpack.c.b16 %v2002, %v1998
          %v2207 = vpack.c.b16 %v2003, %v1999
          %v2208 = vpack.c.b16 %v2004, %v2000
          %v2209 = vpack.c.b16 %v2005, %v2001
          %v2210 = vpack.c.b16 %v2010, %v2006
          %v2211 = vpack.c.b16 %v2011, %v2007
          %v2212 = vpack.c.b16 %v2012, %v2008
          %v2213 = vpack.c.b16 %v2013, %v2009
          %v2214 = vpack.c.b16 %v2018, %v2014
          %v2215 = vpack.c.b16 %v2019, %v2015
          %v2216 = vpack.c.b16 %v2020, %v2016
          %v2217 = vpack.c.b16 %v2021, %v2017
          %v2218 = vpack.c.b16 %v2026, %v2022
          %v2219 = vpack.c.b16 %v2027, %v2023
          %v2220 = vpack.c.b16 %v2028, %v2024
          %v2221 = vpack.c.b16 %v2029, %v2025
          %v2222 = vpack.c.b16 %v2034, %v2030
          %v2223 = vpack.c.b16 %v2035, %v2031
          %v2224 = vpack.c.b16 %v2036, %v2032
          %v2225 = vpack.c.b16 %v2037, %v2033
          %v2226 = vpack.c.b16 %v2042, %v2038
          %v2227 = vpack.c.b16 %v2043, %v2039
          %v2228 = vpack.c.b16 %v2044, %v2040
          %v2229 = vpack.c.b16 %v2045, %v2041
          %v2230 = vpack.c.b16 %v2050, %v2046
          %v2231 = vpack.c.b16 %v2051, %v2047
          %v2232 = vpack.c.b16 %v2052, %v2048
          %v2233 = vpack.c.b16 %v2053, %v2049
          %v2234 = vpack.c.b16 %v2058, %v2054
          %v2235 = vpack.c.b16 %v2059, %v2055
          %v2236 = vpack.c.b16 %v2060, %v2056
          %v2237 = vpack.c.b16 %v2061, %v2057
          %v2238 = vpack.c.b16 %v2066, %v2062
          %v2239 = vpack.c.b16 %v2067, %v2063
          %v2240 = vpack.c.b16 %v2068, %v2064
          %v2241 = vpack.c.b16 %v2069, %v2065
          %v2242 = vpack.c.b16 %v2074, %v2070
          %v2243 = vpack.c.b16 %v2075, %v2071
          %v2244 = vpack.c.b16 %v2076, %v2072
          %v2245 = vpack.c.b16 %v2077, %v2073
          %v2246 = vpack.c.b16 %v2082, %v2078
          %v2247 = vpack.c.b16 %v2083, %v2079
          %v2248 = vpack.c.b16 %v2084, %v2080
          %v2249 = vpack.c.b16 %v2085, %v2081
          %v2250 = vpack.c.b16 %v2090, %v2086
          %v2251 = vpack.c.b16 %v2091, %v2087
          %v2252 = vpack.c.b16 %v2092, %v2088
          %v2253 = vpack.c.b16 %v2093, %v2089
          %v2254 = vpack.c.b16 %v2098, %v2094
          %v2255 = vpack.c.b16 %v2099, %v2095
          %v2256 = vpack.c.b16 %v2100, %v2096
          %v2257 = vpack.c.b16 %v2101, %v2097
          %v2258 = vpack.c.b16 %v2106, %v2102
          %v2259 = vpack.c.b16 %v2107, %v2103
          %v2260 = vpack.c.b16 %v2108, %v2104
          %v2261 = vpack.c.b16 %v2109, %v2105
          %v2262 = vpack.c.b16 %v2114, %v2110
          %v2263 = vpack.c.b16 %v2115, %v2111
          %v2264 = vpack.c.b16 %v2116, %v2112
          %v2265 = vpack.c.b16 %v2117, %v2113
          %v2266 = vpack.c.b16 %v2122, %v2118
          %v2267 = vpack.c.b16 %v2123, %v2119
          %v2268 = vpack.c.b16 %v2124, %v2120
          %v2269 = vpack.c.b16 %v2125, %v2121
          %v2270 = vpack.c.b16 %v2130, %v2126
          %v2271 = vpack.c.b16 %v2131, %v2127
          %v2272 = vpack.c.b16 %v2132, %v2128
          %v2273 = vpack.c.b16 %v2133, %v2129
          %v2274 = vpack.c.b16 %v2138, %v2134
          %v2275 = vpack.c.b16 %v2139, %v2135
          %v2276 = vpack.c.b16 %v2140, %v2136
          %v2277 = vpack.c.b16 %v2141, %v2137
          %v2278 = vpack.c.b16 %v2146, %v2142
          %v2279 = vpack.c.b16 %v2147, %v2143
          %v2280 = vpack.c.b16 %v2148, %v2144
          %v2281 = vpack.c.b16 %v2149, %v2145
          %v2282 = vpack.c.b16 %v2154, %v2150
          %v2283 = vpack.c.b16 %v2155, %v2151
          %v2284 = vpack.c.b16 %v2156, %v2152
          %v2285 = vpack.c.b16 %v2157, %v2153
          %2414 = vmatpush.bf16.msra.mxu0 %v2186
          %2415 = vmatpush.bf16.msra.mxu0 %v2182
          %2416 = vmatpush.bf16.msra.mxu0 %v2178
          %2417 = vmatpush.bf16.msra.mxu0 %v2174
          %2418 = vmatpush.bf16.msra.mxu0 %v2170
          %2419 = vmatpush.bf16.msra.mxu0 %v2166
          %2420 = vmatpush.bf16.msra.mxu0 %v2162
          %2421 = vmatpush.bf16.msra.mxu0 %v2158
          %2422 = vmatmul.bf16.gmra.mxu0 %v1620
          %v2423 = vpop.f32.mrf.mxu0
          %v2424 = vadd.f32 %v1766, %v2423
          %v2425 = vpop.f32.mrf.mxu0
          %v2426 = vadd.f32 %v1766, %v2425
          %2427 = vmatmul.bf16.gmra.mxu0 %v1624
          %v2428 = vpop.f32.mrf.mxu0
          %v2429 = vadd.f32 %v1766, %v2428
          %v2430 = vpop.f32.mrf.mxu0
          %v2431 = vadd.f32 %v1766, %v2430
          %2432 = vmatmul.bf16.gmra.mxu0 %v1628
          %v2433 = vpop.f32.mrf.mxu0
          %v2434 = vadd.f32 %v1766, %v2433
          %v2435 = vpop.f32.mrf.mxu0
          %v2436 = vadd.f32 %v1766, %v2435
          %2437 = vmatmul.bf16.gmra.mxu0 %v1632
          %v2438 = vpop.f32.mrf.mxu0
          %v2439 = vadd.f32 %v1766, %v2438
          %v2440 = vpop.f32.mrf.mxu0
          %v2441 = vadd.f32 %v1766, %v2440
          %2442 = vdwg.mxu0
          %2443 = vmatpush.bf16.msra.mxu0 %v2218
          %2444 = vmatpush.bf16.msra.mxu0 %v2214
          %2445 = vmatpush.bf16.msra.mxu0 %v2210
          %2446 = vmatpush.bf16.msra.mxu0 %v2206
          %2447 = vmatpush.bf16.msra.mxu0 %v2202
          %2448 = vmatpush.bf16.msra.mxu0 %v2198
          %2449 = vmatpush.bf16.msra.mxu0 %v2194
          %2450 = vmatpush.bf16.msra.mxu0 %v2190
          %2451 = vmatmul.bf16.gmra.mxu0 %v1621
          %v2452 = vpop.f32.mrf.mxu0
          %v2453 = vadd.f32 %v2424, %v2452
          %v2454 = vpop.f32.mrf.mxu0
          %v2455 = vadd.f32 %v2426, %v2454
          %2456 = vmatmul.bf16.gmra.mxu0 %v1625
          %v2457 = vpop.f32.mrf.mxu0
          %v2458 = vadd.f32 %v2429, %v2457
          %v2459 = vpop.f32.mrf.mxu0
          %v2460 = vadd.f32 %v2431, %v2459
          %2461 = vmatmul.bf16.gmra.mxu0 %v1629
          %v2462 = vpop.f32.mrf.mxu0
          %v2463 = vadd.f32 %v2434, %v2462
          %v2464 = vpop.f32.mrf.mxu0
          %v2465 = vadd.f32 %v2436, %v2464
          %2466 = vmatmul.bf16.gmra.mxu0 %v1633
          %v2467 = vpop.f32.mrf.mxu0
          %v2468 = vadd.f32 %v2439, %v2467
          %v2469 = vpop.f32.mrf.mxu0
          %v2470 = vadd.f32 %v2441, %v2469
          %2471 = vdwg.mxu0
          %2472 = vmatpush.bf16.msra.mxu0 %v2250
          %2473 = vmatpush.bf16.msra.mxu0 %v2246
          %2474 = vmatpush.bf16.msra.mxu0 %v2242
          %2475 = vmatpush.bf16.msra.mxu0 %v2238
          %2476 = vmatpush.bf16.msra.mxu0 %v2234
          %2477 = vmatpush.bf16.msra.mxu0 %v2230
          %2478 = vmatpush.bf16.msra.mxu0 %v2226
          %2479 = vmatpush.bf16.msra.mxu0 %v2222
          %2480 = vmatmul.bf16.gmra.mxu0 %v1622
          %v2481 = vpop.f32.mrf.mxu0
          %v2482 = vadd.f32 %v2453, %v2481
          %v2483 = vpop.f32.mrf.mxu0
          %v2484 = vadd.f32 %v2455, %v2483
          %2485 = vmatmul.bf16.gmra.mxu0 %v1626
          %v2486 = vpop.f32.mrf.mxu0
          %v2487 = vadd.f32 %v2458, %v2486
          %v2488 = vpop.f32.mrf.mxu0
          %v2489 = vadd.f32 %v2460, %v2488
          %2490 = vmatmul.bf16.gmra.mxu0 %v1630
          %v2491 = vpop.f32.mrf.mxu0
          %v2492 = vadd.f32 %v2463, %v2491
          %v2493 = vpop.f32.mrf.mxu0
          %v2494 = vadd.f32 %v2465, %v2493
          %2495 = vmatmul.bf16.gmra.mxu0 %v1634
          %v2496 = vpop.f32.mrf.mxu0
          %v2497 = vadd.f32 %v2468, %v2496
          %v2498 = vpop.f32.mrf.mxu0
          %v2499 = vadd.f32 %v2470, %v2498
          %2500 = vdwg.mxu0
          %2501 = vmatpush.bf16.msra.mxu0 %v2282
          %2502 = vmatpush.bf16.msra.mxu0 %v2278
          %2503 = vmatpush.bf16.msra.mxu0 %v2274
          %2504 = vmatpush.bf16.msra.mxu0 %v2270
          %2505 = vmatpush.bf16.msra.mxu0 %v2266
          %2506 = vmatpush.bf16.msra.mxu0 %v2262
          %2507 = vmatpush.bf16.msra.mxu0 %v2258
          %2508 = vmatpush.bf16.msra.mxu0 %v2254
          %2509 = vmatmul.bf16.gmra.mxu0 %v1623
          %v2510 = vpop.f32.mrf.mxu0
          %v2511 = vadd.f32 %v2482, %v2510
          %v2512 = vpop.f32.mrf.mxu0
          %v2513 = vadd.f32 %v2484, %v2512
          %2514 = vmatmul.bf16.gmra.mxu0 %v1627
          %v2515 = vpop.f32.mrf.mxu0
          %v2516 = vadd.f32 %v2487, %v2515
          %v2517 = vpop.f32.mrf.mxu0
          %v2518 = vadd.f32 %v2489, %v2517
          %2519 = vmatmul.bf16.gmra.mxu0 %v1631
          %v2520 = vpop.f32.mrf.mxu0
          %v2521 = vadd.f32 %v2492, %v2520
          %v2522 = vpop.f32.mrf.mxu0
          %v2523 = vadd.f32 %v2494, %v2522
          %2524 = vmatmul.bf16.gmra.mxu0 %v1635
          %v2525 = vpop.f32.mrf.mxu0
          %v2526 = vadd.f32 %v2497, %v2525
          %v2527 = vpop.f32.mrf.mxu0
          %v2528 = vadd.f32 %v2499, %v2527
          %2529 = vdwg.mxu0
          %2530 = vmatpush.bf16.msra.mxu0 %v2187
          %2531 = vmatpush.bf16.msra.mxu0 %v2183
          %2532 = vmatpush.bf16.msra.mxu0 %v2179
          %2533 = vmatpush.bf16.msra.mxu0 %v2175
          %2534 = vmatpush.bf16.msra.mxu0 %v2171
          %2535 = vmatpush.bf16.msra.mxu0 %v2167
          %2536 = vmatpush.bf16.msra.mxu0 %v2163
          %2537 = vmatpush.bf16.msra.mxu0 %v2159
          %2538 = vmatmul.bf16.gmra.mxu0 %v1620
          %v2539 = vpop.f32.mrf.mxu0
          %v2540 = vadd.f32 %v1767, %v2539
          %v2541 = vpop.f32.mrf.mxu0
          %v2542 = vadd.f32 %v1767, %v2541
          %2543 = vmatmul.bf16.gmra.mxu0 %v1624
          %v2544 = vpop.f32.mrf.mxu0
          %v2545 = vadd.f32 %v1767, %v2544
          %v2546 = vpop.f32.mrf.mxu0
          %v2547 = vadd.f32 %v1767, %v2546
          %2548 = vmatmul.bf16.gmra.mxu0 %v1628
          %v2549 = vpop.f32.mrf.mxu0
          %v2550 = vadd.f32 %v1767, %v2549
          %v2551 = vpop.f32.mrf.mxu0
          %v2552 = vadd.f32 %v1767, %v2551
          %2553 = vmatmul.bf16.gmra.mxu0 %v1632
          %v2554 = vpop.f32.mrf.mxu0
          %v2555 = vadd.f32 %v1767, %v2554
          %v2556 = vpop.f32.mrf.mxu0
          %v2557 = vadd.f32 %v1767, %v2556
          %2558 = vdwg.mxu0
          %2559 = vmatpush.bf16.msra.mxu0 %v2219
          %2560 = vmatpush.bf16.msra.mxu0 %v2215
          %2561 = vmatpush.bf16.msra.mxu0 %v2211
          %2562 = vmatpush.bf16.msra.mxu0 %v2207
          %2563 = vmatpush.bf16.msra.mxu0 %v2203
          %2564 = vmatpush.bf16.msra.mxu0 %v2199
          %2565 = vmatpush.bf16.msra.mxu0 %v2195
          %2566 = vmatpush.bf16.msra.mxu0 %v2191
          %2567 = vmatmul.bf16.gmra.mxu0 %v1621
          %v2568 = vpop.f32.mrf.mxu0
          %v2569 = vadd.f32 %v2540, %v2568
          %v2570 = vpop.f32.mrf.mxu0
          %v2571 = vadd.f32 %v2542, %v2570
          %2572 = vmatmul.bf16.gmra.mxu0 %v1625
          %v2573 = vpop.f32.mrf.mxu0
          %v2574 = vadd.f32 %v2545, %v2573
          %v2575 = vpop.f32.mrf.mxu0
          %v2576 = vadd.f32 %v2547, %v2575
          %2577 = vmatmul.bf16.gmra.mxu0 %v1629
          %v2578 = vpop.f32.mrf.mxu0
          %v2579 = vadd.f32 %v2550, %v2578
          %v2580 = vpop.f32.mrf.mxu0
          %v2581 = vadd.f32 %v2552, %v2580
          %2582 = vmatmul.bf16.gmra.mxu0 %v1633
          %v2583 = vpop.f32.mrf.mxu0
          %v2584 = vadd.f32 %v2555, %v2583
          %v2585 = vpop.f32.mrf.mxu0
          %v2586 = vadd.f32 %v2557, %v2585
          %2587 = vdwg.mxu0
          %2588 = vmatpush.bf16.msra.mxu0 %v2251
          %2589 = vmatpush.bf16.msra.mxu0 %v2247
          %2590 = vmatpush.bf16.msra.mxu0 %v2243
          %2591 = vmatpush.bf16.msra.mxu0 %v2239
          %2592 = vmatpush.bf16.msra.mxu0 %v2235
          %2593 = vmatpush.bf16.msra.mxu0 %v2231
          %2594 = vmatpush.bf16.msra.mxu0 %v2227
          %2595 = vmatpush.bf16.msra.mxu0 %v2223
          %2596 = vmatmul.bf16.gmra.mxu0 %v1622
          %v2597 = vpop.f32.mrf.mxu0
          %v2598 = vadd.f32 %v2569, %v2597
          %v2599 = vpop.f32.mrf.mxu0
          %v2600 = vadd.f32 %v2571, %v2599
          %2601 = vmatmul.bf16.gmra.mxu0 %v1626
          %v2602 = vpop.f32.mrf.mxu0
          %v2603 = vadd.f32 %v2574, %v2602
          %v2604 = vpop.f32.mrf.mxu0
          %v2605 = vadd.f32 %v2576, %v2604
          %2606 = vmatmul.bf16.gmra.mxu0 %v1630
          %v2607 = vpop.f32.mrf.mxu0
          %v2608 = vadd.f32 %v2579, %v2607
          %v2609 = vpop.f32.mrf.mxu0
          %v2610 = vadd.f32 %v2581, %v2609
          %2611 = vmatmul.bf16.gmra.mxu0 %v1634
          %v2612 = vpop.f32.mrf.mxu0
          %v2613 = vadd.f32 %v2584, %v2612
          %v2614 = vpop.f32.mrf.mxu0
          %v2615 = vadd.f32 %v2586, %v2614
          %2616 = vdwg.mxu0
          %2617 = vmatpush.bf16.msra.mxu0 %v2283
          %2618 = vmatpush.bf16.msra.mxu0 %v2279
          %2619 = vmatpush.bf16.msra.mxu0 %v2275
          %2620 = vmatpush.bf16.msra.mxu0 %v2271
          %2621 = vmatpush.bf16.msra.mxu0 %v2267
          %2622 = vmatpush.bf16.msra.mxu0 %v2263
          %2623 = vmatpush.bf16.msra.mxu0 %v2259
          %2624 = vmatpush.bf16.msra.mxu0 %v2255
          %2625 = vmatmul.bf16.gmra.mxu0 %v1623
          %v2626 = vpop.f32.mrf.mxu0
          %v2627 = vadd.f32 %v2598, %v2626
          %v2628 = vpop.f32.mrf.mxu0
          %v2629 = vadd.f32 %v2600, %v2628
          %2630 = vmatmul.bf16.gmra.mxu0 %v1627
          %v2631 = vpop.f32.mrf.mxu0
          %v2632 = vadd.f32 %v2603, %v2631
          %v2633 = vpop.f32.mrf.mxu0
          %v2634 = vadd.f32 %v2605, %v2633
          %2635 = vmatmul.bf16.gmra.mxu0 %v1631
          %v2636 = vpop.f32.mrf.mxu0
          %v2637 = vadd.f32 %v2608, %v2636
          %v2638 = vpop.f32.mrf.mxu0
          %v2639 = vadd.f32 %v2610, %v2638
          %2640 = vmatmul.bf16.gmra.mxu0 %v1635
          %v2641 = vpop.f32.mrf.mxu0
          %v2642 = vadd.f32 %v2613, %v2641
          %v2643 = vpop.f32.mrf.mxu0
          %v2644 = vadd.f32 %v2615, %v2643
          %2645 = vdwg.mxu0
          %2646 = vmatpush.bf16.msra.mxu0 %v2188
          %2647 = vmatpush.bf16.msra.mxu0 %v2184
          %2648 = vmatpush.bf16.msra.mxu0 %v2180
          %2649 = vmatpush.bf16.msra.mxu0 %v2176
          %2650 = vmatpush.bf16.msra.mxu0 %v2172
          %2651 = vmatpush.bf16.msra.mxu0 %v2168
          %2652 = vmatpush.bf16.msra.mxu0 %v2164
          %2653 = vmatpush.bf16.msra.mxu0 %v2160
          %2654 = vmatmul.bf16.gmra.mxu0 %v1620
          %v2655 = vpop.f32.mrf.mxu0
          %v2656 = vadd.f32 %v1768, %v2655
          %v2657 = vpop.f32.mrf.mxu0
          %v2658 = vadd.f32 %v1768, %v2657
          %2659 = vmatmul.bf16.gmra.mxu0 %v1624
          %v2660 = vpop.f32.mrf.mxu0
          %v2661 = vadd.f32 %v1768, %v2660
          %v2662 = vpop.f32.mrf.mxu0
          %v2663 = vadd.f32 %v1768, %v2662
          %2664 = vmatmul.bf16.gmra.mxu0 %v1628
          %v2665 = vpop.f32.mrf.mxu0
          %v2666 = vadd.f32 %v1768, %v2665
          %v2667 = vpop.f32.mrf.mxu0
          %v2668 = vadd.f32 %v1768, %v2667
          %2669 = vmatmul.bf16.gmra.mxu0 %v1632
          %v2670 = vpop.f32.mrf.mxu0
          %v2671 = vadd.f32 %v1768, %v2670
          %v2672 = vpop.f32.mrf.mxu0
          %v2673 = vadd.f32 %v1768, %v2672
          %2674 = vdwg.mxu0
          %2675 = vmatpush.bf16.msra.mxu0 %v2220
          %2676 = vmatpush.bf16.msra.mxu0 %v2216
          %2677 = vmatpush.bf16.msra.mxu0 %v2212
          %2678 = vmatpush.bf16.msra.mxu0 %v2208
          %2679 = vmatpush.bf16.msra.mxu0 %v2204
          %2680 = vmatpush.bf16.msra.mxu0 %v2200
          %2681 = vmatpush.bf16.msra.mxu0 %v2196
          %2682 = vmatpush.bf16.msra.mxu0 %v2192
          %2683 = vmatmul.bf16.gmra.mxu0 %v1621
          %v2684 = vpop.f32.mrf.mxu0
          %v2685 = vadd.f32 %v2656, %v2684
          %v2686 = vpop.f32.mrf.mxu0
          %v2687 = vadd.f32 %v2658, %v2686
          %2688 = vmatmul.bf16.gmra.mxu0 %v1625
          %v2689 = vpop.f32.mrf.mxu0
          %v2690 = vadd.f32 %v2661, %v2689
          %v2691 = vpop.f32.mrf.mxu0
          %v2692 = vadd.f32 %v2663, %v2691
          %2693 = vmatmul.bf16.gmra.mxu0 %v1629
          %v2694 = vpop.f32.mrf.mxu0
          %v2695 = vadd.f32 %v2666, %v2694
          %v2696 = vpop.f32.mrf.mxu0
          %v2697 = vadd.f32 %v2668, %v2696
          %2698 = vmatmul.bf16.gmra.mxu0 %v1633
          %v2699 = vpop.f32.mrf.mxu0
          %v2700 = vadd.f32 %v2671, %v2699
          %v2701 = vpop.f32.mrf.mxu0
          %v2702 = vadd.f32 %v2673, %v2701
          %2703 = vdwg.mxu0
          %2704 = vmatpush.bf16.msra.mxu0 %v2252
          %2705 = vmatpush.bf16.msra.mxu0 %v2248
          %2706 = vmatpush.bf16.msra.mxu0 %v2244
          %2707 = vmatpush.bf16.msra.mxu0 %v2240
          %2708 = vmatpush.bf16.msra.mxu0 %v2236
          %2709 = vmatpush.bf16.msra.mxu0 %v2232
          %2710 = vmatpush.bf16.msra.mxu0 %v2228
          %2711 = vmatpush.bf16.msra.mxu0 %v2224
          %2712 = vmatmul.bf16.gmra.mxu0 %v1622
          %v2713 = vpop.f32.mrf.mxu0
          %v2714 = vadd.f32 %v2685, %v2713
          %v2715 = vpop.f32.mrf.mxu0
          %v2716 = vadd.f32 %v2687, %v2715
          %2717 = vmatmul.bf16.gmra.mxu0 %v1626
          %v2718 = vpop.f32.mrf.mxu0
          %v2719 = vadd.f32 %v2690, %v2718
          %v2720 = vpop.f32.mrf.mxu0
          %v2721 = vadd.f32 %v2692, %v2720
          %2722 = vmatmul.bf16.gmra.mxu0 %v1630
          %v2723 = vpop.f32.mrf.mxu0
          %v2724 = vadd.f32 %v2695, %v2723
          %v2725 = vpop.f32.mrf.mxu0
          %v2726 = vadd.f32 %v2697, %v2725
          %2727 = vmatmul.bf16.gmra.mxu0 %v1634
          %v2728 = vpop.f32.mrf.mxu0
          %v2729 = vadd.f32 %v2700, %v2728
          %v2730 = vpop.f32.mrf.mxu0
          %v2731 = vadd.f32 %v2702, %v2730
          %2732 = vdwg.mxu0
          %2733 = vmatpush.bf16.msra.mxu0 %v2284
          %2734 = vmatpush.bf16.msra.mxu0 %v2280
          %2735 = vmatpush.bf16.msra.mxu0 %v2276
          %2736 = vmatpush.bf16.msra.mxu0 %v2272
          %2737 = vmatpush.bf16.msra.mxu0 %v2268
          %2738 = vmatpush.bf16.msra.mxu0 %v2264
          %2739 = vmatpush.bf16.msra.mxu0 %v2260
          %2740 = vmatpush.bf16.msra.mxu0 %v2256
          %2741 = vmatmul.bf16.gmra.mxu0 %v1623
          %v2742 = vpop.f32.mrf.mxu0
          %v2743 = vadd.f32 %v2714, %v2742
          %v2744 = vpop.f32.mrf.mxu0
          %v2745 = vadd.f32 %v2716, %v2744
          %2746 = vmatmul.bf16.gmra.mxu0 %v1627
          %v2747 = vpop.f32.mrf.mxu0
          %v2748 = vadd.f32 %v2719, %v2747
          %v2749 = vpop.f32.mrf.mxu0
          %v2750 = vadd.f32 %v2721, %v2749
          %2751 = vmatmul.bf16.gmra.mxu0 %v1631
          %v2752 = vpop.f32.mrf.mxu0
          %v2753 = vadd.f32 %v2724, %v2752
          %v2754 = vpop.f32.mrf.mxu0
          %v2755 = vadd.f32 %v2726, %v2754
          %2756 = vmatmul.bf16.gmra.mxu0 %v1635
          %v2757 = vpop.f32.mrf.mxu0
          %v2758 = vadd.f32 %v2729, %v2757
          %v2759 = vpop.f32.mrf.mxu0
          %v2760 = vadd.f32 %v2731, %v2759
          %2761 = vdwg.mxu0
          %2762 = vmatpush.bf16.msra.mxu0 %v2189
          %2763 = vmatpush.bf16.msra.mxu0 %v2185
          %2764 = vmatpush.bf16.msra.mxu0 %v2181
          %2765 = vmatpush.bf16.msra.mxu0 %v2177
          %2766 = vmatpush.bf16.msra.mxu0 %v2173
          %2767 = vmatpush.bf16.msra.mxu0 %v2169
          %2768 = vmatpush.bf16.msra.mxu0 %v2165
          %2769 = vmatpush.bf16.msra.mxu0 %v2161
          %2770 = vmatmul.bf16.gmra.mxu0 %v1620
          %v2771 = vpop.f32.mrf.mxu0
          %v2772 = vadd.f32 %v1769, %v2771
          %v2773 = vpop.f32.mrf.mxu0
          %v2774 = vadd.f32 %v1769, %v2773
          %2775 = vmatmul.bf16.gmra.mxu0 %v1624
          %v2776 = vpop.f32.mrf.mxu0
          %v2777 = vadd.f32 %v1769, %v2776
          %v2778 = vpop.f32.mrf.mxu0
          %v2779 = vadd.f32 %v1769, %v2778
          %2780 = vmatmul.bf16.gmra.mxu0 %v1628
          %v2781 = vpop.f32.mrf.mxu0
          %v2782 = vadd.f32 %v1769, %v2781
          %v2783 = vpop.f32.mrf.mxu0
          %v2784 = vadd.f32 %v1769, %v2783
          %2785 = vmatmul.bf16.gmra.mxu0 %v1632
          %v2786 = vpop.f32.mrf.mxu0
          %v2787 = vadd.f32 %v1769, %v2786
          %v2788 = vpop.f32.mrf.mxu0
          %v2789 = vadd.f32 %v1769, %v2788
          %2790 = vdwg.mxu0
          %2791 = vmatpush.bf16.msra.mxu0 %v2221
          %2792 = vmatpush.bf16.msra.mxu0 %v2217
          %2793 = vmatpush.bf16.msra.mxu0 %v2213
          %2794 = vmatpush.bf16.msra.mxu0 %v2209
          %2795 = vmatpush.bf16.msra.mxu0 %v2205
          %2796 = vmatpush.bf16.msra.mxu0 %v2201
          %2797 = vmatpush.bf16.msra.mxu0 %v2197
          %2798 = vmatpush.bf16.msra.mxu0 %v2193
          %2799 = vmatmul.bf16.gmra.mxu0 %v1621
          %v2800 = vpop.f32.mrf.mxu0
          %v2801 = vadd.f32 %v2772, %v2800
          %v2802 = vpop.f32.mrf.mxu0
          %v2803 = vadd.f32 %v2774, %v2802
          %2804 = vmatmul.bf16.gmra.mxu0 %v1625
          %v2805 = vpop.f32.mrf.mxu0
          %v2806 = vadd.f32 %v2777, %v2805
          %v2807 = vpop.f32.mrf.mxu0
          %v2808 = vadd.f32 %v2779, %v2807
          %2809 = vmatmul.bf16.gmra.mxu0 %v1629
          %v2810 = vpop.f32.mrf.mxu0
          %v2811 = vadd.f32 %v2782, %v2810
          %v2812 = vpop.f32.mrf.mxu0
          %v2813 = vadd.f32 %v2784, %v2812
          %2814 = vmatmul.bf16.gmra.mxu0 %v1633
          %v2815 = vpop.f32.mrf.mxu0
          %v2816 = vadd.f32 %v2787, %v2815
          %v2817 = vpop.f32.mrf.mxu0
          %v2818 = vadd.f32 %v2789, %v2817
          %2819 = vdwg.mxu0
          %2820 = vmatpush.bf16.msra.mxu0 %v2253
          %2821 = vmatpush.bf16.msra.mxu0 %v2249
          %2822 = vmatpush.bf16.msra.mxu0 %v2245
          %2823 = vmatpush.bf16.msra.mxu0 %v2241
          %2824 = vmatpush.bf16.msra.mxu0 %v2237
          %2825 = vmatpush.bf16.msra.mxu0 %v2233
          %2826 = vmatpush.bf16.msra.mxu0 %v2229
          %2827 = vmatpush.bf16.msra.mxu0 %v2225
          %2828 = vmatmul.bf16.gmra.mxu0 %v1622
          %v2829 = vpop.f32.mrf.mxu0
          %v2830 = vadd.f32 %v2801, %v2829
          %v2831 = vpop.f32.mrf.mxu0
          %v2832 = vadd.f32 %v2803, %v2831
          %2833 = vmatmul.bf16.gmra.mxu0 %v1626
          %v2834 = vpop.f32.mrf.mxu0
          %v2835 = vadd.f32 %v2806, %v2834
          %v2836 = vpop.f32.mrf.mxu0
          %v2837 = vadd.f32 %v2808, %v2836
          %2838 = vmatmul.bf16.gmra.mxu0 %v1630
          %v2839 = vpop.f32.mrf.mxu0
          %v2840 = vadd.f32 %v2811, %v2839
          %v2841 = vpop.f32.mrf.mxu0
          %v2842 = vadd.f32 %v2813, %v2841
          %2843 = vmatmul.bf16.gmra.mxu0 %v1634
          %v2844 = vpop.f32.mrf.mxu0
          %v2845 = vadd.f32 %v2816, %v2844
          %v2846 = vpop.f32.mrf.mxu0
          %v2847 = vadd.f32 %v2818, %v2846
          %2848 = vdwg.mxu0
          %2849 = vmatpush.bf16.msra.mxu0 %v2285
          %2850 = vmatpush.bf16.msra.mxu0 %v2281
          %2851 = vmatpush.bf16.msra.mxu0 %v2277
          %2852 = vmatpush.bf16.msra.mxu0 %v2273
          %2853 = vmatpush.bf16.msra.mxu0 %v2269
          %2854 = vmatpush.bf16.msra.mxu0 %v2265
          %2855 = vmatpush.bf16.msra.mxu0 %v2261
          %2856 = vmatpush.bf16.msra.mxu0 %v2257
          %2857 = vmatmul.bf16.gmra.mxu0 %v1623
          %v2858 = vpop.f32.mrf.mxu0
          %v2859 = vadd.f32 %v2830, %v2858
          %v2860 = vpop.f32.mrf.mxu0
          %v2861 = vadd.f32 %v2832, %v2860
          %2862 = vmatmul.bf16.gmra.mxu0 %v1627
          %v2863 = vpop.f32.mrf.mxu0
          %v2864 = vadd.f32 %v2835, %v2863
          %v2865 = vpop.f32.mrf.mxu0
          %v2866 = vadd.f32 %v2837, %v2865
          %2867 = vmatmul.bf16.gmra.mxu0 %v1631
          %v2868 = vpop.f32.mrf.mxu0
          %v2869 = vadd.f32 %v2840, %v2868
          %v2870 = vpop.f32.mrf.mxu0
          %v2871 = vadd.f32 %v2842, %v2870
          %2872 = vmatmul.bf16.gmra.mxu0 %v1635
          %v2873 = vpop.f32.mrf.mxu0
          %v2874 = vadd.f32 %v2845, %v2873
          %v2875 = vpop.f32.mrf.mxu0
          %v2876 = vadd.f32 %v2847, %v2875
          %2877 = vdwg.mxu0
          %v2878 = vtanh.pop %v2511
          %v2879 = vtanh.pop %v2627
          %v2880 = vtanh.pop %v2513
          %v2881 = vtanh.pop %v2629
          %v2882 = vtanh.pop %v2516
          %v2883 = vtanh.pop %v2632
          %v2884 = vtanh.pop %v2518
          %v2885 = vtanh.pop %v2634
          %v2886 = vtanh.pop %v2521
          %v2887 = vtanh.pop %v2637
          %v2888 = vtanh.pop %v2523
          %v2889 = vtanh.pop %v2639
          %v2890 = vtanh.pop %v2526
          %v2891 = vtanh.pop %v2642
          %v2892 = vtanh.pop %v2528
          %v2893 = vtanh.pop %v2644
          %v2894 = vxor.u32 %v2743, 2147483648
          %v2895 = vxor.u32 %v2859, 2147483648
          %v2896 = vxor.u32 %v2745, 2147483648
          %v2897 = vxor.u32 %v2861, 2147483648
          %v2898 = vxor.u32 %v2748, 2147483648
          %v2899 = vxor.u32 %v2864, 2147483648
          %v2900 = vxor.u32 %v2750, 2147483648
          %v2901 = vxor.u32 %v2866, 2147483648
          %v2902 = vxor.u32 %v2753, 2147483648
          %v2903 = vxor.u32 %v2869, 2147483648
          %v2904 = vxor.u32 %v2755, 2147483648
          %v2905 = vxor.u32 %v2871, 2147483648
          %v2906 = vxor.u32 %v2758, 2147483648
          %v2907 = vxor.u32 %v2874, 2147483648
          %v2908 = vxor.u32 %v2760, 2147483648
          %v2909 = vxor.u32 %v2876, 2147483648
          %v2910 = vmul.f32 %v2894, 1.442695
          %v2911 = vpow.pop %v2910
          %v2912 = vmul.f32 %v2895, 1.442695
          %v2913 = vpow.pop %v2912
          %v2914 = vmul.f32 %v2896, 1.442695
          %v2915 = vpow.pop %v2914
          %v2916 = vmul.f32 %v2897, 1.442695
          %v2917 = vpow.pop %v2916
          %v2918 = vmul.f32 %v2898, 1.442695
          %v2919 = vpow.pop %v2918
          %v2920 = vmul.f32 %v2899, 1.442695
          %v2921 = vpow.pop %v2920
          %v2922 = vmul.f32 %v2900, 1.442695
          %v2923 = vpow.pop %v2922
          %v2924 = vmul.f32 %v2901, 1.442695
          %v2925 = vpow.pop %v2924
          %v2926 = vmul.f32 %v2902, 1.442695
          %v2927 = vpow.pop %v2926
          %v2928 = vmul.f32 %v2903, 1.442695
          %v2929 = vpow.pop %v2928
          %v2930 = vmul.f32 %v2904, 1.442695
          %v2931 = vpow.pop %v2930
          %v2932 = vmul.f32 %v2905, 1.442695
          %v2933 = vpow.pop %v2932
          %v2934 = vmul.f32 %v2906, 1.442695
          %v2935 = vpow.pop %v2934
          %v2936 = vmul.f32 %v2907, 1.442695
          %v2937 = vpow.pop %v2936
          %v2938 = vmul.f32 %v2908, 1.442695
          %v2939 = vpow.pop %v2938
          %v2940 = vmul.f32 %v2909, 1.442695
          %v2941 = vpow.pop %v2940
          %v2942 = vadd.f32 %v2911, 1.0
          %v2943 = vadd.f32 %v2913, 1.0
          %v2944 = vadd.f32 %v2915, 1.0
          %v2945 = vadd.f32 %v2917, 1.0
          %v2946 = vadd.f32 %v2919, 1.0
          %v2947 = vadd.f32 %v2921, 1.0
          %v2948 = vadd.f32 %v2923, 1.0
          %v2949 = vadd.f32 %v2925, 1.0
          %v2950 = vadd.f32 %v2927, 1.0
          %v2951 = vadd.f32 %v2929, 1.0
          %v2952 = vadd.f32 %v2931, 1.0
          %v2953 = vadd.f32 %v2933, 1.0
          %v2954 = vadd.f32 %v2935, 1.0
          %v2955 = vadd.f32 %v2937, 1.0
          %v2956 = vadd.f32 %v2939, 1.0
          %v2957 = vadd.f32 %v2941, 1.0
          %v2958 = vrcp.pop %v2942
          %v2959 = vmul.f32 %v2942, %v2958
          %v2960 = vsub.f32 1.0, %v2959
          %v2961 = vmul.f32 %v2958, %v2960
          %v2962 = vadd.f32 %v2958, %v2961
          %vm2963 = vweird.f32 %v2942
          %vm2964 = vweird.f32 %v2958
          %vm2965 = vmor %vm2963, %vm2964
          %v2966 = vsel %vm2965, %v2958, %v2962
          %v2967 = vand.u32 2147483647, %v2942
          %vm2968 = vcmp.eq.f32.partialorder %v2967, 8.507059e+37
          %v2969 = vand.u32 %v2942, 2147483648
          %v2970 = vor.u32 1.1754944e-38, %v2969
          %v2971 = vsel %vm2968, %v2970, %v2966
          %v2972 = vmul.f32 1.0, %v2971
          %v2973 = vrcp.pop %v2943
          %v2974 = vmul.f32 %v2943, %v2973
          %v2975 = vsub.f32 1.0, %v2974
          %v2976 = vmul.f32 %v2973, %v2975
          %v2977 = vadd.f32 %v2973, %v2976
          %vm2978 = vweird.f32 %v2943
          %vm2979 = vweird.f32 %v2973
          %vm2980 = vmor %vm2978, %vm2979
          %v2981 = vsel %vm2980, %v2973, %v2977
          %v2982 = vand.u32 2147483647, %v2943
          %vm2983 = vcmp.eq.f32.partialorder %v2982, 8.507059e+37
          %v2984 = vand.u32 %v2943, 2147483648
          %v2985 = vor.u32 1.1754944e-38, %v2984
          %v2986 = vsel %vm2983, %v2985, %v2981
          %v2987 = vmul.f32 1.0, %v2986
          %v2988 = vrcp.pop %v2944
          %v2989 = vmul.f32 %v2944, %v2988
          %v2990 = vsub.f32 1.0, %v2989
          %v2991 = vmul.f32 %v2988, %v2990
          %v2992 = vadd.f32 %v2988, %v2991
          %vm2993 = vweird.f32 %v2944
          %vm2994 = vweird.f32 %v2988
          %vm2995 = vmor %vm2993, %vm2994
          %v2996 = vsel %vm2995, %v2988, %v2992
          %v2997 = vand.u32 2147483647, %v2944
          %vm2998 = vcmp.eq.f32.partialorder %v2997, 8.507059e+37
          %v2999 = vand.u32 %v2944, 2147483648
          %v3000 = vor.u32 1.1754944e-38, %v2999
          %v3001 = vsel %vm2998, %v3000, %v2996
          %v3002 = vmul.f32 1.0, %v3001
          %v3003 = vrcp.pop %v2945
          %v3004 = vmul.f32 %v2945, %v3003
          %v3005 = vsub.f32 1.0, %v3004
          %v3006 = vmul.f32 %v3003, %v3005
          %v3007 = vadd.f32 %v3003, %v3006
          %vm3008 = vweird.f32 %v2945
          %vm3009 = vweird.f32 %v3003
          %vm3010 = vmor %vm3008, %vm3009
          %v3011 = vsel %vm3010, %v3003, %v3007
          %v3012 = vand.u32 2147483647, %v2945
          %vm3013 = vcmp.eq.f32.partialorder %v3012, 8.507059e+37
          %v3014 = vand.u32 %v2945, 2147483648
          %v3015 = vor.u32 1.1754944e-38, %v3014
          %v3016 = vsel %vm3013, %v3015, %v3011
          %v3017 = vmul.f32 1.0, %v3016
          %v3018 = vrcp.pop %v2946
          %v3019 = vmul.f32 %v2946, %v3018
          %v3020 = vsub.f32 1.0, %v3019
          %v3021 = vmul.f32 %v3018, %v3020
          %v3022 = vadd.f32 %v3018, %v3021
          %vm3023 = vweird.f32 %v2946
          %vm3024 = vweird.f32 %v3018
          %vm3025 = vmor %vm3023, %vm3024
          %v3026 = vsel %vm3025, %v3018, %v3022
          %v3027 = vand.u32 2147483647, %v2946
          %vm3028 = vcmp.eq.f32.partialorder %v3027, 8.507059e+37
          %v3029 = vand.u32 %v2946, 2147483648
          %v3030 = vor.u32 1.1754944e-38, %v3029
          %v3031 = vsel %vm3028, %v3030, %v3026
          %v3032 = vmul.f32 1.0, %v3031
          %v3033 = vrcp.pop %v2947
          %v3034 = vmul.f32 %v2947, %v3033
          %v3035 = vsub.f32 1.0, %v3034
          %v3036 = vmul.f32 %v3033, %v3035
          %v3037 = vadd.f32 %v3033, %v3036
          %vm3038 = vweird.f32 %v2947
          %vm3039 = vweird.f32 %v3033
          %vm3040 = vmor %vm3038, %vm3039
          %v3041 = vsel %vm3040, %v3033, %v3037
          %v3042 = vand.u32 2147483647, %v2947
          %vm3043 = vcmp.eq.f32.partialorder %v3042, 8.507059e+37
          %v3044 = vand.u32 %v2947, 2147483648
          %v3045 = vor.u32 1.1754944e-38, %v3044
          %v3046 = vsel %vm3043, %v3045, %v3041
          %v3047 = vmul.f32 1.0, %v3046
          %v3048 = vrcp.pop %v2948
          %v3049 = vmul.f32 %v2948, %v3048
          %v3050 = vsub.f32 1.0, %v3049
          %v3051 = vmul.f32 %v3048, %v3050
          %v3052 = vadd.f32 %v3048, %v3051
          %vm3053 = vweird.f32 %v2948
          %vm3054 = vweird.f32 %v3048
          %vm3055 = vmor %vm3053, %vm3054
          %v3056 = vsel %vm3055, %v3048, %v3052
          %v3057 = vand.u32 2147483647, %v2948
          %vm3058 = vcmp.eq.f32.partialorder %v3057, 8.507059e+37
          %v3059 = vand.u32 %v2948, 2147483648
          %v3060 = vor.u32 1.1754944e-38, %v3059
          %v3061 = vsel %vm3058, %v3060, %v3056
          %v3062 = vmul.f32 1.0, %v3061
          %v3063 = vrcp.pop %v2949
          %v3064 = vmul.f32 %v2949, %v3063
          %v3065 = vsub.f32 1.0, %v3064
          %v3066 = vmul.f32 %v3063, %v3065
          %v3067 = vadd.f32 %v3063, %v3066
          %vm3068 = vweird.f32 %v2949
          %vm3069 = vweird.f32 %v3063
          %vm3070 = vmor %vm3068, %vm3069
          %v3071 = vsel %vm3070, %v3063, %v3067
          %v3072 = vand.u32 2147483647, %v2949
          %vm3073 = vcmp.eq.f32.partialorder %v3072, 8.507059e+37
          %v3074 = vand.u32 %v2949, 2147483648
          %v3075 = vor.u32 1.1754944e-38, %v3074
          %v3076 = vsel %vm3073, %v3075, %v3071
          %v3077 = vmul.f32 1.0, %v3076
          %v3078 = vrcp.pop %v2950
          %v3079 = vmul.f32 %v2950, %v3078
          %v3080 = vsub.f32 1.0, %v3079
          %v3081 = vmul.f32 %v3078, %v3080
          %v3082 = vadd.f32 %v3078, %v3081
          %vm3083 = vweird.f32 %v2950
          %vm3084 = vweird.f32 %v3078
          %vm3085 = vmor %vm3083, %vm3084
          %v3086 = vsel %vm3085, %v3078, %v3082
          %v3087 = vand.u32 2147483647, %v2950
          %vm3088 = vcmp.eq.f32.partialorder %v3087, 8.507059e+37
          %v3089 = vand.u32 %v2950, 2147483648
          %v3090 = vor.u32 1.1754944e-38, %v3089
          %v3091 = vsel %vm3088, %v3090, %v3086
          %v3092 = vmul.f32 1.0, %v3091
          %v3093 = vrcp.pop %v2951
          %v3094 = vmul.f32 %v2951, %v3093
          %v3095 = vsub.f32 1.0, %v3094
          %v3096 = vmul.f32 %v3093, %v3095
          %v3097 = vadd.f32 %v3093, %v3096
          %vm3098 = vweird.f32 %v2951
          %vm3099 = vweird.f32 %v3093
          %vm3100 = vmor %vm3098, %vm3099
          %v3101 = vsel %vm3100, %v3093, %v3097
          %v3102 = vand.u32 2147483647, %v2951
          %vm3103 = vcmp.eq.f32.partialorder %v3102, 8.507059e+37
          %v3104 = vand.u32 %v2951, 2147483648
          %v3105 = vor.u32 1.1754944e-38, %v3104
          %v3106 = vsel %vm3103, %v3105, %v3101
          %v3107 = vmul.f32 1.0, %v3106
          %v3108 = vrcp.pop %v2952
          %v3109 = vmul.f32 %v2952, %v3108
          %v3110 = vsub.f32 1.0, %v3109
          %v3111 = vmul.f32 %v3108, %v3110
          %v3112 = vadd.f32 %v3108, %v3111
          %vm3113 = vweird.f32 %v2952
          %vm3114 = vweird.f32 %v3108
          %vm3115 = vmor %vm3113, %vm3114
          %v3116 = vsel %vm3115, %v3108, %v3112
          %v3117 = vand.u32 2147483647, %v2952
          %vm3118 = vcmp.eq.f32.partialorder %v3117, 8.507059e+37
          %v3119 = vand.u32 %v2952, 2147483648
          %v3120 = vor.u32 1.1754944e-38, %v3119
          %v3121 = vsel %vm3118, %v3120, %v3116
          %v3122 = vmul.f32 1.0, %v3121
          %v3123 = vrcp.pop %v2953
          %v3124 = vmul.f32 %v2953, %v3123
          %v3125 = vsub.f32 1.0, %v3124
          %v3126 = vmul.f32 %v3123, %v3125
          %v3127 = vadd.f32 %v3123, %v3126
          %vm3128 = vweird.f32 %v2953
          %vm3129 = vweird.f32 %v3123
          %vm3130 = vmor %vm3128, %vm3129
          %v3131 = vsel %vm3130, %v3123, %v3127
          %v3132 = vand.u32 2147483647, %v2953
          %vm3133 = vcmp.eq.f32.partialorder %v3132, 8.507059e+37
          %v3134 = vand.u32 %v2953, 2147483648
          %v3135 = vor.u32 1.1754944e-38, %v3134
          %v3136 = vsel %vm3133, %v3135, %v3131
          %v3137 = vmul.f32 1.0, %v3136
          %v3138 = vrcp.pop %v2954
          %v3139 = vmul.f32 %v2954, %v3138
          %v3140 = vsub.f32 1.0, %v3139
          %v3141 = vmul.f32 %v3138, %v3140
          %v3142 = vadd.f32 %v3138, %v3141
          %vm3143 = vweird.f32 %v2954
          %vm3144 = vweird.f32 %v3138
          %vm3145 = vmor %vm3143, %vm3144
          %v3146 = vsel %vm3145, %v3138, %v3142
          %v3147 = vand.u32 2147483647, %v2954
          %vm3148 = vcmp.eq.f32.partialorder %v3147, 8.507059e+37
          %v3149 = vand.u32 %v2954, 2147483648
          %v3150 = vor.u32 1.1754944e-38, %v3149
          %v3151 = vsel %vm3148, %v3150, %v3146
          %v3152 = vmul.f32 1.0, %v3151
          %v3153 = vrcp.pop %v2955
          %v3154 = vmul.f32 %v2955, %v3153
          %v3155 = vsub.f32 1.0, %v3154
          %v3156 = vmul.f32 %v3153, %v3155
          %v3157 = vadd.f32 %v3153, %v3156
          %vm3158 = vweird.f32 %v2955
          %vm3159 = vweird.f32 %v3153
          %vm3160 = vmor %vm3158, %vm3159
          %v3161 = vsel %vm3160, %v3153, %v3157
          %v3162 = vand.u32 2147483647, %v2955
          %vm3163 = vcmp.eq.f32.partialorder %v3162, 8.507059e+37
          %v3164 = vand.u32 %v2955, 2147483648
          %v3165 = vor.u32 1.1754944e-38, %v3164
          %v3166 = vsel %vm3163, %v3165, %v3161
          %v3167 = vmul.f32 1.0, %v3166
          %v3168 = vrcp.pop %v2956
          %v3169 = vmul.f32 %v2956, %v3168
          %v3170 = vsub.f32 1.0, %v3169
          %v3171 = vmul.f32 %v3168, %v3170
          %v3172 = vadd.f32 %v3168, %v3171
          %vm3173 = vweird.f32 %v2956
          %vm3174 = vweird.f32 %v3168
          %vm3175 = vmor %vm3173, %vm3174
          %v3176 = vsel %vm3175, %v3168, %v3172
          %v3177 = vand.u32 2147483647, %v2956
          %vm3178 = vcmp.eq.f32.partialorder %v3177, 8.507059e+37
          %v3179 = vand.u32 %v2956, 2147483648
          %v3180 = vor.u32 1.1754944e-38, %v3179
          %v3181 = vsel %vm3178, %v3180, %v3176
          %v3182 = vmul.f32 1.0, %v3181
          %v3183 = vrcp.pop %v2957
          %v3184 = vmul.f32 %v2957, %v3183
          %v3185 = vsub.f32 1.0, %v3184
          %v3186 = vmul.f32 %v3183, %v3185
          %v3187 = vadd.f32 %v3183, %v3186
          %vm3188 = vweird.f32 %v2957
          %vm3189 = vweird.f32 %v3183
          %vm3190 = vmor %vm3188, %vm3189
          %v3191 = vsel %vm3190, %v3183, %v3187
          %v3192 = vand.u32 2147483647, %v2957
          %vm3193 = vcmp.eq.f32.partialorder %v3192, 8.507059e+37
          %v3194 = vand.u32 %v2957, 2147483648
          %v3195 = vor.u32 1.1754944e-38, %v3194
          %v3196 = vsel %vm3193, %v3195, %v3191
          %v3197 = vmul.f32 1.0, %v3196
          %v3198 = vmul.f32 %v2878, %v2972
          %v3199 = vmul.f32 %v2879, %v2987
          %v3200 = vmul.f32 %v2880, %v3002
          %v3201 = vmul.f32 %v2881, %v3017
          %v3202 = vmul.f32 %v2882, %v3032
          %v3203 = vmul.f32 %v2883, %v3047
          %v3204 = vmul.f32 %v2884, %v3062
          %v3205 = vmul.f32 %v2885, %v3077
          %v3206 = vmul.f32 %v2886, %v3092
          %v3207 = vmul.f32 %v2887, %v3107
          %v3208 = vmul.f32 %v2888, %v3122
          %v3209 = vmul.f32 %v2889, %v3137
          %v3210 = vmul.f32 %v2890, %v3152
          %v3211 = vmul.f32 %v2891, %v3167
          %v3212 = vmul.f32 %v2892, %v3182
          %v3213 = vmul.f32 %v2893, %v3197
          %v3214 = vpack.c.bf16 %v3200, %v3198
          %v3215 = vpack.c.bf16 %v3201, %v3199
          %v3216 = vpack.c.bf16 %v3204, %v3202
          %v3217 = vpack.c.bf16 %v3205, %v3203
          %v3218 = vpack.c.bf16 %v3208, %v3206
          %v3219 = vpack.c.bf16 %v3209, %v3207
          %v3220 = vpack.c.bf16 %v3212, %v3210
          %v3221 = vpack.c.bf16 %v3213, %v3211
          %v3222 = vld [vmem:[%s8] sm:$0xf]
          %v3223 = vld [vmem:[%s8 + $0x4] sm:$0xf]
          %v3224 = vld [vmem:[%s8 + $0x8] sm:$0xf]
          %v3225 = vld [vmem:[%s8 + $0xc] sm:$0xf]
          %v3226 = vld [vmem:[%s8 + $0x10] sm:$0xf]
          %v3227 = vld [vmem:[%s8 + $0x14] sm:$0xf]
          %v3228 = vld [vmem:[%s8 + $0x18] sm:$0xf]
          %v3229 = vld [vmem:[%s8 + $0x1c] sm:$0xf]
          %v3230 = vld [vmem:[%s8 + $0x20] sm:$0xf]
          %v3231 = vld [vmem:[%s8 + $0x24] sm:$0xf]
          %v3232 = vld [vmem:[%s8 + $0x28] sm:$0xf]
          %v3233 = vld [vmem:[%s8 + $0x2c] sm:$0xf]
          %v3234 = vld [vmem:[%s8 + $0x30] sm:$0xf]
          %v3235 = vld [vmem:[%s8 + $0x34] sm:$0xf]
          %v3236 = vld [vmem:[%s8 + $0x38] sm:$0xf]
          %v3237 = vld [vmem:[%s8 + $0x3c] sm:$0xf]
          %v3238 = vld [vmem:[%s8 + $0x40] sm:$0xf]
          %v3239 = vld [vmem:[%s8 + $0x44] sm:$0xf]
          %v3240 = vld [vmem:[%s8 + $0x48] sm:$0xf]
          %v3241 = vld [vmem:[%s8 + $0x4c] sm:$0xf]
          %v3242 = vld [vmem:[%s8 + $0x50] sm:$0xf]
          %v3243 = vld [vmem:[%s8 + $0x54] sm:$0xf]
          %v3244 = vld [vmem:[%s8 + $0x58] sm:$0xf]
          %v3245 = vld [vmem:[%s8 + $0x5c] sm:$0xf]
          %v3246 = vld [vmem:[%s8 + $0x60] sm:$0xf]
          %v3247 = vld [vmem:[%s8 + $0x64] sm:$0xf]
          %v3248 = vld [vmem:[%s8 + $0x68] sm:$0xf]
          %v3249 = vld [vmem:[%s8 + $0x6c] sm:$0xf]
          %v3250 = vld [vmem:[%s8 + $0x70] sm:$0xf]
          %v3251 = vld [vmem:[%s8 + $0x74] sm:$0xf]
          %v3252 = vld [vmem:[%s8 + $0x78] sm:$0xf]
          %v3253 = vld [vmem:[%s8 + $0x7c] sm:$0xf]
          %v3254 = vld [vmem:[%s9] sm:$0x1]
          %v3256 = vperm.slane %v3254, 0
          %v3290 = vunpack.c.l.b16 %v3222
          %v3291 = vunpack.c.l.b16 %v3223
          %v3292 = vunpack.c.l.b16 %v3224
          %v3293 = vunpack.c.l.b16 %v3225
          %v3294 = vunpack.c.l.b16 %v3226
          %v3295 = vunpack.c.l.b16 %v3227
          %v3296 = vunpack.c.l.b16 %v3228
          %v3297 = vunpack.c.l.b16 %v3229
          %v3298 = vunpack.c.l.b16 %v3230
          %v3299 = vunpack.c.l.b16 %v3231
          %v3300 = vunpack.c.l.b16 %v3232
          %v3301 = vunpack.c.l.b16 %v3233
          %v3302 = vunpack.c.l.b16 %v3234
          %v3303 = vunpack.c.l.b16 %v3235
          %v3304 = vunpack.c.l.b16 %v3236
          %v3305 = vunpack.c.l.b16 %v3237
          %v3306 = vunpack.c.l.b16 %v3238
          %v3307 = vunpack.c.l.b16 %v3239
          %v3308 = vunpack.c.l.b16 %v3240
          %v3309 = vunpack.c.l.b16 %v3241
          %v3310 = vunpack.c.l.b16 %v3242
          %v3311 = vunpack.c.l.b16 %v3243
          %v3312 = vunpack.c.l.b16 %v3244
          %v3313 = vunpack.c.l.b16 %v3245
          %v3314 = vunpack.c.l.b16 %v3246
          %v3315 = vunpack.c.l.b16 %v3247
          %v3316 = vunpack.c.l.b16 %v3248
          %v3317 = vunpack.c.l.b16 %v3249
          %v3318 = vunpack.c.l.b16 %v3250
          %v3319 = vunpack.c.l.b16 %v3251
          %v3320 = vunpack.c.l.b16 %v3252
          %v3321 = vunpack.c.l.b16 %v3253
          %v3322 = vpack.c.b16 %v3291, %v3290
          %v3323 = vpack.c.b16 %v3293, %v3292
          %v3324 = vpack.c.b16 %v3295, %v3294
          %v3325 = vpack.c.b16 %v3297, %v3296
          %v3326 = vpack.c.b16 %v3299, %v3298
          %v3327 = vpack.c.b16 %v3301, %v3300
          %v3328 = vpack.c.b16 %v3303, %v3302
          %v3329 = vpack.c.b16 %v3305, %v3304
          %v3330 = vpack.c.b16 %v3307, %v3306
          %v3331 = vpack.c.b16 %v3309, %v3308
          %v3332 = vpack.c.b16 %v3311, %v3310
          %v3333 = vpack.c.b16 %v3313, %v3312
          %v3334 = vpack.c.b16 %v3315, %v3314
          %v3335 = vpack.c.b16 %v3317, %v3316
          %v3336 = vpack.c.b16 %v3319, %v3318
          %v3337 = vpack.c.b16 %v3321, %v3320
          %3354 = vmatpush.bf16.msra.mxu0 %v3329
          %3355 = vmatpush.bf16.msra.mxu0 %v3328
          %3356 = vmatpush.bf16.msra.mxu0 %v3327
          %3357 = vmatpush.bf16.msra.mxu0 %v3326
          %3358 = vmatpush.bf16.msra.mxu0 %v3325
          %3359 = vmatpush.bf16.msra.mxu0 %v3324
          %3360 = vmatpush.bf16.msra.mxu0 %v3323
          %3361 = vmatpush.bf16.msra.mxu0 %v3322
          %3362 = vmatmul.bf16.gmra.mxu0 %v3214
          %v3363 = vpop.f32.mrf.mxu0
          %v3364 = vadd.f32 %v3256, %v3363
          %v3365 = vpop.f32.mrf.mxu0
          %v3366 = vadd.f32 %v3256, %v3365
          %3367 = vmatmul.bf16.gmra.mxu0 %v3216
          %v3368 = vpop.f32.mrf.mxu0
          %v3369 = vadd.f32 %v3256, %v3368
          %v3370 = vpop.f32.mrf.mxu0
          %v3371 = vadd.f32 %v3256, %v3370
          %3372 = vmatmul.bf16.gmra.mxu0 %v3218
          %v3373 = vpop.f32.mrf.mxu0
          %v3374 = vadd.f32 %v3256, %v3373
          %v3375 = vpop.f32.mrf.mxu0
          %v3376 = vadd.f32 %v3256, %v3375
          %3377 = vmatmul.bf16.gmra.mxu0 %v3220
          %v3378 = vpop.f32.mrf.mxu0
          %v3379 = vadd.f32 %v3256, %v3378
          %v3380 = vpop.f32.mrf.mxu0
          %v3381 = vadd.f32 %v3256, %v3380
          %3382 = vdwg.mxu0
          %3383 = vmatpush.bf16.msra.mxu0 %v3337
          %3384 = vmatpush.bf16.msra.mxu0 %v3336
          %3385 = vmatpush.bf16.msra.mxu0 %v3335
          %3386 = vmatpush.bf16.msra.mxu0 %v3334
          %3387 = vmatpush.bf16.msra.mxu0 %v3333
          %3388 = vmatpush.bf16.msra.mxu0 %v3332
          %3389 = vmatpush.bf16.msra.mxu0 %v3331
          %3390 = vmatpush.bf16.msra.mxu0 %v3330
          %3391 = vmatmul.bf16.gmra.mxu0 %v3215
          %v3392 = vpop.f32.mrf.mxu0
          %v3393 = vadd.f32 %v3364, %v3392
          %v3394 = vpop.f32.mrf.mxu0
          %v3395 = vadd.f32 %v3366, %v3394
          %3396 = vmatmul.bf16.gmra.mxu0 %v3217
          %v3397 = vpop.f32.mrf.mxu0
          %v3398 = vadd.f32 %v3369, %v3397
          %v3399 = vpop.f32.mrf.mxu0
          %v3400 = vadd.f32 %v3371, %v3399
          %3401 = vmatmul.bf16.gmra.mxu0 %v3219
          %v3402 = vpop.f32.mrf.mxu0
          %v3403 = vadd.f32 %v3374, %v3402
          %v3404 = vpop.f32.mrf.mxu0
          %v3405 = vadd.f32 %v3376, %v3404
          %3406 = vmatmul.bf16.gmra.mxu0 %v3221
          %v3407 = vpop.f32.mrf.mxu0
          %v3408 = vadd.f32 %v3379, %v3407
          %v3409 = vpop.f32.mrf.mxu0
          %v3410 = vadd.f32 %v3381, %v3409
          %3411 = vdwg.mxu0
          %vm3412 = vcmask 171008
          %v3413 = vsel %vm3412, %v3393, -inf
          %v3414 = vsel %vm3412, %v3395, -inf
          %v3415 = vsel %vm3412, %v3398, -inf
          %v3416 = vsel %vm3412, %v3400, -inf
          %v3417 = vsel %vm3412, %v3403, -inf
          %v3418 = vmax.f32 %v3413, %v3417
          %v3419 = vsel %vm3412, %v3405, -inf
          %v3420 = vmax.f32 %v3414, %v3419
          %v3421 = vsel %vm3412, %v3408, -inf
          %v3422 = vmax.f32 %v3415, %v3421
          %v3423 = vsel %vm3412, %v3410, -inf
          %v3424 = vmax.f32 %v3416, %v3423
          %v3425 = vmax.f32 %v3418, %v3420
          %v3426 = vmax.f32 %v3422, %v3424
          %v3427 = vmax.f32 %v3425, %v3426
          %v3428 = vrot.slane %v3427, 4
          %v3429 = vmax.f32 %v3427, %v3428
          %v3430 = vrot.slane %v3429, 2
          %v3431 = vmax.f32 %v3429, %v3430
          %v3432 = vrot.slane %v3431, 1
          %v3433 = vmax.f32 %v3431, %v3432
          %v3434 = vsub.f32 %v3393, %v3433
          %v3435 = vsub.f32 %v3395, %v3433
          %v3436 = vsub.f32 %v3398, %v3433
          %v3437 = vsub.f32 %v3400, %v3433
          %v3438 = vsub.f32 %v3403, %v3433
          %v3439 = vsub.f32 %v3405, %v3433
          %v3440 = vsub.f32 %v3408, %v3433
          %v3441 = vsub.f32 %v3410, %v3433
          %v3442 = vmul.f32 %v3434, 1.442695
          %v3443 = vpow.pop %v3442
          %v3444 = vmul.f32 %v3435, 1.442695
          %v3445 = vpow.pop %v3444
          %v3446 = vmul.f32 %v3436, 1.442695
          %v3447 = vpow.pop %v3446
          %v3448 = vmul.f32 %v3437, 1.442695
          %v3449 = vpow.pop %v3448
          %v3450 = vmul.f32 %v3438, 1.442695
          %v3451 = vpow.pop %v3450
          %v3452 = vmul.f32 %v3439, 1.442695
          %v3453 = vpow.pop %v3452
          %v3454 = vmul.f32 %v3440, 1.442695
          %v3455 = vpow.pop %v3454
          %v3456 = vmul.f32 %v3441, 1.442695
          %v3457 = vpow.pop %v3456
          %v3458 = vld [vmem:[%s10] sm:$0xf]
          %v3459 = vld [vmem:[%s10 + $0x4] sm:$0xf]
          %v3460 = vld [vmem:[%s10 + $0x8] sm:$0xf]
          %v3461 = vld [vmem:[%s10 + $0xc] sm:$0xf]
          %v3462 = vld [vmem:[%s10 + $0x10] sm:$0xf]
          %v3463 = vld [vmem:[%s10 + $0x14] sm:$0xf]
          %v3464 = vld [vmem:[%s10 + $0x18] sm:$0xf]
          %v3465 = vld [vmem:[%s10 + $0x1c] sm:$0xf]
          %v3466 = vld [vmem:[%s10 + $0x20] sm:$0xf]
          %v3467 = vld [vmem:[%s10 + $0x24] sm:$0xf]
          %v3468 = vld [vmem:[%s10 + $0x28] sm:$0xf]
          %v3469 = vld [vmem:[%s10 + $0x2c] sm:$0xf]
          %v3470 = vld [vmem:[%s10 + $0x30] sm:$0xf]
          %v3471 = vld [vmem:[%s10 + $0x34] sm:$0xf]
          %v3472 = vld [vmem:[%s10 + $0x38] sm:$0xf]
          %v3473 = vld [vmem:[%s10 + $0x3c] sm:$0xf]
          %v3474 = vld [vmem:[%s10 + $0x40] sm:$0xf]
          %v3475 = vld [vmem:[%s10 + $0x44] sm:$0xf]
          %v3476 = vld [vmem:[%s10 + $0x48] sm:$0xf]
          %v3477 = vld [vmem:[%s10 + $0x4c] sm:$0xf]
          %v3478 = vld [vmem:[%s10 + $0x50] sm:$0xf]
          %v3479 = vld [vmem:[%s10 + $0x54] sm:$0xf]
          %v3480 = vld [vmem:[%s10 + $0x58] sm:$0xf]
          %v3481 = vld [vmem:[%s10 + $0x5c] sm:$0xf]
          %v3482 = vld [vmem:[%s10 + $0x60] sm:$0xf]
          %v3483 = vld [vmem:[%s10 + $0x64] sm:$0xf]
          %v3484 = vld [vmem:[%s10 + $0x68] sm:$0xf]
          %v3485 = vld [vmem:[%s10 + $0x6c] sm:$0xf]
          %v3486 = vld [vmem:[%s10 + $0x70] sm:$0xf]
          %v3487 = vld [vmem:[%s10 + $0x74] sm:$0xf]
          %v3488 = vld [vmem:[%s10 + $0x78] sm:$0xf]
          %v3489 = vld [vmem:[%s10 + $0x7c] sm:$0xf]
          %v3490 = vld [vmem:[%s10 + $0x80] sm:$0xf]
          %v3491 = vld [vmem:[%s10 + $0x84] sm:$0xf]
          %v3492 = vld [vmem:[%s10 + $0x88] sm:$0xf]
          %v3493 = vld [vmem:[%s10 + $0x8c] sm:$0xf]
          %v3494 = vld [vmem:[%s10 + $0x90] sm:$0xf]
          %v3495 = vld [vmem:[%s10 + $0x94] sm:$0xf]
          %v3496 = vld [vmem:[%s10 + $0x98] sm:$0xf]
          %v3497 = vld [vmem:[%s10 + $0x9c] sm:$0xf]
          %v3498 = vld [vmem:[%s10 + $0xa0] sm:$0xf]
          %v3499 = vld [vmem:[%s10 + $0xa4] sm:$0xf]
          %v3500 = vld [vmem:[%s10 + $0xa8] sm:$0xf]
          %v3501 = vld [vmem:[%s10 + $0xac] sm:$0xf]
          %v3502 = vld [vmem:[%s10 + $0xb0] sm:$0xf]
          %v3503 = vld [vmem:[%s10 + $0xb4] sm:$0xf]
          %v3504 = vld [vmem:[%s10 + $0xb8] sm:$0xf]
          %v3505 = vld [vmem:[%s10 + $0xbc] sm:$0xf]
          %v3506 = vld [vmem:[%s10 + $0xc0] sm:$0xf]
          %v3507 = vld [vmem:[%s10 + $0xc4] sm:$0xf]
          %v3508 = vld [vmem:[%s10 + $0xc8] sm:$0xf]
          %v3509 = vld [vmem:[%s10 + $0xcc] sm:$0xf]
          %v3510 = vld [vmem:[%s10 + $0xd0] sm:$0xf]
          %v3511 = vld [vmem:[%s10 + $0xd4] sm:$0xf]
          %v3512 = vld [vmem:[%s10 + $0xd8] sm:$0xf]
          %v3513 = vld [vmem:[%s10 + $0xdc] sm:$0xf]
          %v3514 = vld [vmem:[%s10 + $0xe0] sm:$0xf]
          %v3515 = vld [vmem:[%s10 + $0xe4] sm:$0xf]
          %v3516 = vld [vmem:[%s10 + $0xe8] sm:$0xf]
          %v3517 = vld [vmem:[%s10 + $0xec] sm:$0xf]
          %v3518 = vld [vmem:[%s10 + $0xf0] sm:$0xf]
          %v3519 = vld [vmem:[%s10 + $0xf4] sm:$0xf]
          %v3520 = vld [vmem:[%s10 + $0xf8] sm:$0xf]
          %v3521 = vld [vmem:[%s10 + $0xfc] sm:$0xf]
          %v3586 = vunpack.c.l.b16 %v3458
          %v3587 = vunpack.c.l.b16 %v3459
          %v3588 = vunpack.c.l.b16 %v3460
          %v3589 = vunpack.c.l.b16 %v3461
          %v3590 = vunpack.c.l.b16 %v3462
          %v3591 = vunpack.c.l.b16 %v3463
          %v3592 = vunpack.c.l.b16 %v3464
          %v3593 = vunpack.c.l.b16 %v3465
          %v3594 = vunpack.c.l.b16 %v3466
          %v3595 = vunpack.c.l.b16 %v3467
          %v3596 = vunpack.c.l.b16 %v3468
          %v3597 = vunpack.c.l.b16 %v3469
          %v3598 = vunpack.c.l.b16 %v3470
          %v3599 = vunpack.c.l.b16 %v3471
          %v3600 = vunpack.c.l.b16 %v3472
          %v3601 = vunpack.c.l.b16 %v3473
          %v3602 = vunpack.c.l.b16 %v3474
          %v3603 = vunpack.c.l.b16 %v3475
          %v3604 = vunpack.c.l.b16 %v3476
          %v3605 = vunpack.c.l.b16 %v3477
          %v3606 = vunpack.c.l.b16 %v3478
          %v3607 = vunpack.c.l.b16 %v3479
          %v3608 = vunpack.c.l.b16 %v3480
          %v3609 = vunpack.c.l.b16 %v3481
          %v3610 = vunpack.c.l.b16 %v3482
          %v3611 = vunpack.c.l.b16 %v3483
          %v3612 = vunpack.c.l.b16 %v3484
          %v3613 = vunpack.c.l.b16 %v3485
          %v3614 = vunpack.c.l.b16 %v3486
          %v3615 = vunpack.c.l.b16 %v3487
          %v3616 = vunpack.c.l.b16 %v3488
          %v3617 = vunpack.c.l.b16 %v3489
          %v3618 = vunpack.c.l.b16 %v3490
          %v3619 = vunpack.c.l.b16 %v3491
          %v3620 = vunpack.c.l.b16 %v3492
          %v3621 = vunpack.c.l.b16 %v3493
          %v3622 = vunpack.c.l.b16 %v3494
          %v3623 = vunpack.c.l.b16 %v3495
          %v3624 = vunpack.c.l.b16 %v3496
          %v3625 = vunpack.c.l.b16 %v3497
          %v3626 = vunpack.c.l.b16 %v3498
          %v3627 = vunpack.c.l.b16 %v3499
          %v3628 = vunpack.c.l.b16 %v3500
          %v3629 = vunpack.c.l.b16 %v3501
          %v3630 = vunpack.c.l.b16 %v3502
          %v3631 = vunpack.c.l.b16 %v3503
          %v3632 = vunpack.c.l.b16 %v3504
          %v3633 = vunpack.c.l.b16 %v3505
          %v3634 = vunpack.c.l.b16 %v3506
          %v3635 = vunpack.c.l.b16 %v3507
          %v3636 = vunpack.c.l.b16 %v3508
          %v3637 = vunpack.c.l.b16 %v3509
          %v3638 = vunpack.c.l.b16 %v3510
          %v3639 = vunpack.c.l.b16 %v3511
          %v3640 = vunpack.c.l.b16 %v3512
          %v3641 = vunpack.c.l.b16 %v3513
          %v3642 = vunpack.c.l.b16 %v3514
          %v3643 = vunpack.c.l.b16 %v3515
          %v3644 = vunpack.c.l.b16 %v3516
          %v3645 = vunpack.c.l.b16 %v3517
          %v3646 = vunpack.c.l.b16 %v3518
          %v3647 = vunpack.c.l.b16 %v3519
          %v3648 = vunpack.c.l.b16 %v3520
          %v3649 = vunpack.c.l.b16 %v3521
          %v3650 = vpack.c.b16 %v3587, %v3586
          %v3651 = vpack.c.b16 %v3589, %v3588
          %v3652 = vpack.c.b16 %v3591, %v3590
          %v3653 = vpack.c.b16 %v3593, %v3592
          %v3654 = vpack.c.b16 %v3595, %v3594
          %v3655 = vpack.c.b16 %v3597, %v3596
          %v3656 = vpack.c.b16 %v3599, %v3598
          %v3657 = vpack.c.b16 %v3601, %v3600
          %v3658 = vpack.c.b16 %v3603, %v3602
          %v3659 = vpack.c.b16 %v3605, %v3604
          %v3660 = vpack.c.b16 %v3607, %v3606
          %v3661 = vpack.c.b16 %v3609, %v3608
          %v3662 = vpack.c.b16 %v3611, %v3610
          %v3663 = vpack.c.b16 %v3613, %v3612
          %v3664 = vpack.c.b16 %v3615, %v3614
          %v3665 = vpack.c.b16 %v3617, %v3616
          %v3666 = vpack.c.b16 %v3619, %v3618
          %v3667 = vpack.c.b16 %v3621, %v3620
          %v3668 = vpack.c.b16 %v3623, %v3622
          %v3669 = vpack.c.b16 %v3625, %v3624
          %v3670 = vpack.c.b16 %v3627, %v3626
          %v3671 = vpack.c.b16 %v3629, %v3628
          %v3672 = vpack.c.b16 %v3631, %v3630
          %v3673 = vpack.c.b16 %v3633, %v3632
          %v3674 = vpack.c.b16 %v3635, %v3634
          %v3675 = vpack.c.b16 %v3637, %v3636
          %v3676 = vpack.c.b16 %v3639, %v3638
          %v3677 = vpack.c.b16 %v3641, %v3640
          %v3678 = vpack.c.b16 %v3643, %v3642
          %v3679 = vpack.c.b16 %v3645, %v3644
          %v3680 = vpack.c.b16 %v3647, %v3646
          %v3681 = vpack.c.b16 %v3649, %v3648
          %3714 = vmatpush.bf16.msra.mxu0 %v3657
          %3715 = vmatpush.bf16.msra.mxu0 %v3656
          %3716 = vmatpush.bf16.msra.mxu0 %v3655
          %3717 = vmatpush.bf16.msra.mxu0 %v3654
          %3718 = vmatpush.bf16.msra.mxu0 %v3653
          %3719 = vmatpush.bf16.msra.mxu0 %v3652
          %3720 = vmatpush.bf16.msra.mxu0 %v3651
          %3721 = vmatpush.bf16.msra.mxu0 %v3650
          %3722 = vmatmul.bf16.gmra.mxu0 %v1620
          %v3723 = vpop.f32.mrf.mxu0
          %v3724 = vadd.f32 0.0, %v3723
          %v3725 = vpop.f32.mrf.mxu0
          %v3726 = vadd.f32 0.0, %v3725
          %3727 = vmatmul.bf16.gmra.mxu0 %v1624
          %v3728 = vpop.f32.mrf.mxu0
          %v3729 = vadd.f32 0.0, %v3728
          %v3730 = vpop.f32.mrf.mxu0
          %v3731 = vadd.f32 0.0, %v3730
          %3732 = vmatmul.bf16.gmra.mxu0 %v1628
          %v3733 = vpop.f32.mrf.mxu0
          %v3734 = vadd.f32 0.0, %v3733
          %v3735 = vpop.f32.mrf.mxu0
          %v3736 = vadd.f32 0.0, %v3735
          %3737 = vmatmul.bf16.gmra.mxu0 %v1632
          %v3738 = vpop.f32.mrf.mxu0
          %v3739 = vadd.f32 0.0, %v3738
          %v3740 = vpop.f32.mrf.mxu0
          %v3741 = vadd.f32 0.0, %v3740
          %3742 = vdwg.mxu0
          %3743 = vmatpush.bf16.msra.mxu0 %v3665
          %3744 = vmatpush.bf16.msra.mxu0 %v3664
          %3745 = vmatpush.bf16.msra.mxu0 %v3663
          %3746 = vmatpush.bf16.msra.mxu0 %v3662
          %3747 = vmatpush.bf16.msra.mxu0 %v3661
          %3748 = vmatpush.bf16.msra.mxu0 %v3660
          %3749 = vmatpush.bf16.msra.mxu0 %v3659
          %3750 = vmatpush.bf16.msra.mxu0 %v3658
          %3751 = vmatmul.bf16.gmra.mxu0 %v1621
          %v3752 = vpop.f32.mrf.mxu0
          %v3753 = vadd.f32 %v3724, %v3752
          %v3754 = vpop.f32.mrf.mxu0
          %v3755 = vadd.f32 %v3726, %v3754
          %3756 = vmatmul.bf16.gmra.mxu0 %v1625
          %v3757 = vpop.f32.mrf.mxu0
          %v3758 = vadd.f32 %v3729, %v3757
          %v3759 = vpop.f32.mrf.mxu0
          %v3760 = vadd.f32 %v3731, %v3759
          %3761 = vmatmul.bf16.gmra.mxu0 %v1629
          %v3762 = vpop.f32.mrf.mxu0
          %v3763 = vadd.f32 %v3734, %v3762
          %v3764 = vpop.f32.mrf.mxu0
          %v3765 = vadd.f32 %v3736, %v3764
          %3766 = vmatmul.bf16.gmra.mxu0 %v1633
          %v3767 = vpop.f32.mrf.mxu0
          %v3768 = vadd.f32 %v3739, %v3767
          %v3769 = vpop.f32.mrf.mxu0
          %v3770 = vadd.f32 %v3741, %v3769
          %3771 = vdwg.mxu0
          %3772 = vmatpush.bf16.msra.mxu0 %v3673
          %3773 = vmatpush.bf16.msra.mxu0 %v3672
          %3774 = vmatpush.bf16.msra.mxu0 %v3671
          %3775 = vmatpush.bf16.msra.mxu0 %v3670
          %3776 = vmatpush.bf16.msra.mxu0 %v3669
          %3777 = vmatpush.bf16.msra.mxu0 %v3668
          %3778 = vmatpush.bf16.msra.mxu0 %v3667
          %3779 = vmatpush.bf16.msra.mxu0 %v3666
          %3780 = vmatmul.bf16.gmra.mxu0 %v1622
          %v3781 = vpop.f32.mrf.mxu0
          %v3782 = vadd.f32 %v3753, %v3781
          %v3783 = vpop.f32.mrf.mxu0
          %v3784 = vadd.f32 %v3755, %v3783
          %3785 = vmatmul.bf16.gmra.mxu0 %v1626
          %v3786 = vpop.f32.mrf.mxu0
          %v3787 = vadd.f32 %v3758, %v3786
          %v3788 = vpop.f32.mrf.mxu0
          %v3789 = vadd.f32 %v3760, %v3788
          %3790 = vmatmul.bf16.gmra.mxu0 %v1630
          %v3791 = vpop.f32.mrf.mxu0
          %v3792 = vadd.f32 %v3763, %v3791
          %v3793 = vpop.f32.mrf.mxu0
          %v3794 = vadd.f32 %v3765, %v3793
          %3795 = vmatmul.bf16.gmra.mxu0 %v1634
          %v3796 = vpop.f32.mrf.mxu0
          %v3797 = vadd.f32 %v3768, %v3796
          %v3798 = vpop.f32.mrf.mxu0
          %v3799 = vadd.f32 %v3770, %v3798
          %3800 = vdwg.mxu0
          %3801 = vmatpush.bf16.msra.mxu0 %v3681
          %3802 = vmatpush.bf16.msra.mxu0 %v3680
          %3803 = vmatpush.bf16.msra.mxu0 %v3679
          %3804 = vmatpush.bf16.msra.mxu0 %v3678
          %3805 = vmatpush.bf16.msra.mxu0 %v3677
          %3806 = vmatpush.bf16.msra.mxu0 %v3676
          %3807 = vmatpush.bf16.msra.mxu0 %v3675
          %3808 = vmatpush.bf16.msra.mxu0 %v3674
          %3809 = vmatmul.bf16.gmra.mxu0 %v1623
          %v3810 = vpop.f32.mrf.mxu0
          %v3811 = vadd.f32 %v3782, %v3810
          %v3812 = vpop.f32.mrf.mxu0
          %v3813 = vadd.f32 %v3784, %v3812
          %3814 = vmatmul.bf16.gmra.mxu0 %v1627
          %v3815 = vpop.f32.mrf.mxu0
          %v3816 = vadd.f32 %v3787, %v3815
          %v3817 = vpop.f32.mrf.mxu0
          %v3818 = vadd.f32 %v3789, %v3817
          %3819 = vmatmul.bf16.gmra.mxu0 %v1631
          %v3820 = vpop.f32.mrf.mxu0
          %v3821 = vadd.f32 %v3792, %v3820
          %v3822 = vpop.f32.mrf.mxu0
          %v3823 = vadd.f32 %v3794, %v3822
          %3824 = vmatmul.bf16.gmra.mxu0 %v1635
          %v3825 = vpop.f32.mrf.mxu0
          %v3826 = vadd.f32 %v3797, %v3825
          %v3827 = vpop.f32.mrf.mxu0
          %v3828 = vadd.f32 %v3799, %v3827
          %3829 = vdwg.mxu0
          %v3830 = vmul.f32 %v3443, %v3811
          %v3831 = vmul.f32 %v3445, %v3813
          %v3832 = vmul.f32 %v3447, %v3816
          %v3833 = vmul.f32 %v3449, %v3818
          %v3834 = vmul.f32 %v3451, %v3821
          %v3835 = vmul.f32 %v3453, %v3823
          %v3836 = vmul.f32 %v3455, %v3826
          %v3837 = vmul.f32 %v3457, %v3828
          %v3838 = vsel %vm3412, %v3830, 0.0
          %v3839 = vsel %vm3412, %v3831, 0.0
          %v3840 = vadd.f32 %v3838, %v3839
          %v3841 = vsel %vm3412, %v3832, 0.0
          %v3842 = vadd.f32 %v3840, %v3841
          %v3843 = vsel %vm3412, %v3833, 0.0
          %v3844 = vadd.f32 %v3842, %v3843
          %v3845 = vsel %vm3412, %v3834, 0.0
          %v3846 = vadd.f32 %v3844, %v3845
          %v3847 = vsel %vm3412, %v3835, 0.0
          %v3848 = vadd.f32 %v3846, %v3847
          %v3849 = vsel %vm3412, %v3836, 0.0
          %v3850 = vadd.f32 %v3848, %v3849
          %v3851 = vsel %vm3412, %v3837, 0.0
          %v3852 = vadd.f32 %v3850, %v3851
          %v3853 = vrot.slane %v3852, 4
          %v3854 = vadd.f32 %v3852, %v3853
          %v3855 = vrot.slane %v3854, 2
          %v3856 = vadd.f32 %v3854, %v3855
          %v3857 = vrot.slane %v3856, 1
          %v3858 = vadd.f32 %v3856, %v3857
          %v3859 = vsel %vm3412, %v3443, 0.0
          %v3860 = vsel %vm3412, %v3445, 0.0
          %v3861 = vadd.f32 %v3859, %v3860
          %v3862 = vsel %vm3412, %v3447, 0.0
          %v3863 = vadd.f32 %v3861, %v3862
          %v3864 = vsel %vm3412, %v3449, 0.0
          %v3865 = vadd.f32 %v3863, %v3864
          %v3866 = vsel %vm3412, %v3451, 0.0
          %v3867 = vadd.f32 %v3865, %v3866
          %v3868 = vsel %vm3412, %v3453, 0.0
          %v3869 = vadd.f32 %v3867, %v3868
          %v3870 = vsel %vm3412, %v3455, 0.0
          %v3871 = vadd.f32 %v3869, %v3870
          %v3872 = vsel %vm3412, %v3457, 0.0
          %v3873 = vadd.f32 %v3871, %v3872
          %v3874 = vrot.slane %v3873, 4
          %v3875 = vadd.f32 %v3873, %v3874
          %v3876 = vrot.slane %v3875, 2
          %v3877 = vadd.f32 %v3875, %v3876
          %v3878 = vrot.slane %v3877, 1
          %v3879 = vadd.f32 %v3877, %v3878
          %v3880 = vrcp.pop %v3879
          %v3881 = vmul.f32 %v3858, %v3880
          %v3882 = vld [vmem:[%s11] sm:$0x1]
          %v3883 = vadd.f32 %v3881, %v3882
          %vm3884 = vcmask 163840
          %3885 = vst.msk [vmem:[#allocation9] sm:$0x1] %vm3884, %v3883
        $region122: #{tpu_custom_call.1} parent=101 // pred_fallthru
          _
        // Predicated region
        $region123: #{tpu_custom_call.1} parent=101 // pred_check
          %p3886 = pneg %p303
        $region124: #{tpu_custom_call.1} parent=101 // pred_check_branch
          %3888 = sbr.rel (%p3886) target = $region126
        $region125: #{tpu_custom_call.1} parent=101 // pred_region
          %3890 = vsyncadd [#allocation6], 0
          %s3892 = sshll.u32 [#allocation9], 4
          %s3893 = int_to_ptr.vmem [resolvable:$true] %s3892
          %s3894 = sshll.u32 %s12, 4
          %s3895 = int_to_ptr.hbm [resolvable:$true] %s3894
          %3897 = dma.vmem_to_hbm [thread:$0]  %s3893, 16, %s3895, [#allocation6]
        $region126: #{tpu_custom_call.1} parent=101 // pred_fallthru
          _
        // Predicated region
        $region127: #{tpu_custom_call.1} parent=101 // pred_check
          %p3898 = pneg %p303
        $region128: #{tpu_custom_call.1} parent=101 // pred_check_branch
          %3900 = sbr.rel (%p3898) target = $region130
        $region129: #{tpu_custom_call.1} parent=101 // pred_region
          %3902 = dma.done [#allocation6], 16
        $region130: #{tpu_custom_call.1} parent=101 // pred_fallthru
          _
      $region102: #{tpu_custom_call.1} parent=5 // pred_fallthru
        _
      %p3903 = scmp.le.s32.totalorder 2, %s23
      // Predicated region
      $region131: #{tpu_custom_call.1} parent=5 // pred_check
        %p3904 = pneg %p3903
      $region132: #{tpu_custom_call.1} parent=5 // pred_check_branch
        %3906 = sbr.rel (%p3904) target = $region134
      $region133: #{tpu_custom_call.1} parent=5 // pred_region
        %s3907 = ssub.s32 %s23, 2
      $region134: #{tpu_custom_call.1} parent=5 // pred_fallthru
        _
    $region6: #{tpu_custom_call.1} parent=1 // loop_footer
      %s27 = sadd.s32 1, %s23
    $region7: #{tpu_custom_call.1} parent=1 // loop_footer_branch
      %22 = sbr.rel target = $region3
    $region8: #{tpu_custom_call.1} parent=1 // loop_exit
      _
    %3908 = vsyncpa [#allocation5], 1
    %s3909 = scalar_lea.sflag [#allocation5], 1
    %3910 = vsyncpa %s3909, 1
    %3911 = vsyncpa [#allocation8], 1
    %3912 = vsyncpa [#allocation6], 1
    %s3913 = scalar_lea.sflag [#allocation6], 1
    %3914 = vsyncpa %s3913, 1

</llo_original>
